<compile_context>
chip_gen: v5e
topology: v5e:2x2
jax: 0.10.0
libtpu: 0.0.40
codegen_flags: <defaults>
</compile_context>

<pallas_src>
import jax
import jax.numpy as jnp
from jax.experimental import pallas as pl
from jax.experimental.pallas import tpu as pltpu

INPUT_DIM = 784
HIDDEN_DIM = 400
LATENT_DIM = 20


def vae_forward_kernel(
    x_ref, eps_ref,
    w1_ref, b1_ref,      # encoder layer 1: (input_dim, hidden_dim) bf16, (1, hidden_dim) f32
    w2_ref, b2_ref,      # encoder layer 2: (hidden_dim, 2*latent_dim) bf16, (1, 2*latent_dim) f32
    w3_ref, b3_ref,      # decoder layer 1: (latent_dim, hidden_dim) bf16, (1, hidden_dim) f32
    w4_ref, b4_ref,      # decoder layer 2: (hidden_dim, input_dim) bf16, (1, input_dim) f32
    recon_ref, mulv_ref,
):
    latent_dim = eps_ref.shape[1]

    x = x_ref[...]                                                   # (tile, 784) bf16

    # ---- encoder ----
    h = jnp.dot(x, w1_ref[...], preferred_element_type=jnp.float32) + b1_ref[...]
    h = jnp.maximum(h, 0.0).astype(jnp.bfloat16)                     # ReLU
    mu_logvar = (
        jnp.dot(h, w2_ref[...], preferred_element_type=jnp.float32) + b2_ref[...]
    )                                                                # (tile, 40) f32

    mu = mu_logvar[:, :latent_dim]
    logvar = mu_logvar[:, latent_dim:]

    # ---- reparameterize: z = mu + eps * exp(0.5 * logvar) ----
    z = (mu + eps_ref[...] * jnp.exp(0.5 * logvar)).astype(jnp.bfloat16)

    # ---- decoder ----
    h2 = jnp.dot(z, w3_ref[...], preferred_element_type=jnp.float32) + b3_ref[...]
    h2 = jnp.maximum(h2, 0.0).astype(jnp.bfloat16)                   # ReLU
    logits = (
        jnp.dot(h2, w4_ref[...], preferred_element_type=jnp.float32) + b4_ref[...]
    )

    recon_ref[...] = jax.nn.sigmoid(logits)
    mulv_ref[...] = mu_logvar                                        # packed (mu | logvar)


def vae_forward(x, eps, params, *, batch_tile=256):
    """x: (B, C, H, W) or (B, input_dim); eps: (B, latent_dim).

    Returns (reconstruction, mu, logvar), all f32, shapes (B, 784)/(B, 20)/(B, 20).
    """
    batch = x.shape[0]
    x_flat = x.reshape(batch, INPUT_DIM).astype(jnp.bfloat16)
    eps = eps.astype(jnp.float32)

    # Tile: at least 8 rows (full sublanes); pad batch to a multiple of the tile.
    if batch >= batch_tile:
        tile = batch_tile
    else:
        tile = max(8, -(-batch // 8) * 8)
    padded = -(-batch // tile) * tile
    if padded != batch:
        pad = padded - batch
        x_flat = jnp.pad(x_flat, ((0, pad), (0, 0)))
        eps = jnp.pad(eps, ((0, pad), (0, 0)))

    grid = (padded // tile,)

    def tiled(width):
        return pl.BlockSpec((tile, width), lambda i: (i, 0))

    def resident(shape):
        # Constant block index -> DMA'd once, stays VMEM-resident across the grid.
        return pl.BlockSpec(shape, lambda i: (0, 0))

    in_specs = [
        tiled(INPUT_DIM),                              # x
        tiled(LATENT_DIM),                             # eps
        resident((INPUT_DIM, HIDDEN_DIM)), resident((1, HIDDEN_DIM)),      # w1, b1
        resident((HIDDEN_DIM, 2 * LATENT_DIM)), resident((1, 2 * LATENT_DIM)),  # w2, b2
        resident((LATENT_DIM, HIDDEN_DIM)), resident((1, HIDDEN_DIM)),     # w3, b3
        resident((HIDDEN_DIM, INPUT_DIM)), resident((1, INPUT_DIM)),       # w4, b4
    ]
    out_specs = (
        tiled(INPUT_DIM),                              # reconstruction
        tiled(2 * LATENT_DIM),                         # packed mu|logvar
    )
    out_shape = (
        jax.ShapeDtypeStruct((padded, INPUT_DIM), jnp.float32),
        jax.ShapeDtypeStruct((padded, 2 * LATENT_DIM), jnp.float32),
    )

    # Advisory cost estimate (flops / transcendentals / bytes moved).
    mm_flops_per_row = 2 * (
        INPUT_DIM * HIDDEN_DIM + HIDDEN_DIM * 2 * LATENT_DIM
        + LATENT_DIM * HIDDEN_DIM + HIDDEN_DIM * INPUT_DIM
    )
    weight_bytes = 2 * (
        INPUT_DIM * HIDDEN_DIM + HIDDEN_DIM * 2 * LATENT_DIM
        + LATENT_DIM * HIDDEN_DIM + HIDDEN_DIM * INPUT_DIM
    ) + 4 * (2 * HIDDEN_DIM + 2 * LATENT_DIM + INPUT_DIM)
    act_bytes_per_row = INPUT_DIM * 2 + LATENT_DIM * 4 + INPUT_DIM * 4 + 2 * LATENT_DIM * 4
    cost = pl.CostEstimate(
        flops=padded * mm_flops_per_row,
        transcendentals=padded * (LATENT_DIM + INPUT_DIM),
        bytes_accessed=weight_bytes + padded * act_bytes_per_row,
    )

    recon, mu_logvar = pl.pallas_call(
        vae_forward_kernel,
        out_shape=out_shape,
        grid=grid,
        in_specs=in_specs,
        out_specs=out_specs,
        compiler_params=pltpu.CompilerParams(
            dimension_semantics=("parallel",),
        ),
        cost_estimate=cost,
    )(
        x_flat, eps,
        params["w1"], params["b1"],
        params["w2"], params["b2"],
        params["w3"], params["b3"],
        params["w4"], params["b4"],
    )

    recon = recon[:batch]
    mu = mu_logvar[:batch, :LATENT_DIM]
    logvar = mu_logvar[:batch, LATENT_DIM:]
    return recon, mu, logvar


def init_params(key):
    """Parameter init matching the PyTorch layer shapes.

    PyTorch nn.Linear(in, out) has weight (out, in); we store the transpose
    (in, out) so the kernel does x @ W.  Weights are kept in bfloat16 (MXU /
    HBM-bandwidth optimization); biases stay f32 and 2-D (1, out) for TPU.
    """
    ks = jax.random.split(key, 8)

    def linear(kw, kb, fan_in, fan_out):
        bound = 1.0 / jnp.sqrt(fan_in)
        w = jax.random.uniform(kw, (fan_in, fan_out), jnp.float32, -bound, bound)
        b = jax.random.uniform(kb, (1, fan_out), jnp.float32, -bound, bound)
        return w.astype(jnp.bfloat16), b

    w1, b1 = linear(ks[0], ks[1], INPUT_DIM, HIDDEN_DIM)
    w2, b2 = linear(ks[2], ks[3], HIDDEN_DIM, 2 * LATENT_DIM)
    w3, b3 = linear(ks[4], ks[5], LATENT_DIM, HIDDEN_DIM)
    w4, b4 = linear(ks[6], ks[7], HIDDEN_DIM, INPUT_DIM)
    return dict(w1=w1, b1=b1, w2=w2, b2=b2, w3=w3, b3=b3, w4=w4, b4=b4)


def vae_forward_ref(x, eps, params):
    """Plain-JAX reference (same bf16-compute / f32-accumulate recipe)."""
    batch = x.shape[0]
    xf = x.reshape(batch, INPUT_DIM).astype(jnp.bfloat16)
    h = jnp.maximum(
        jnp.dot(xf, params["w1"], preferred_element_type=jnp.float32) + params["b1"], 0.0)
    ml = jnp.dot(h.astype(jnp.bfloat16), params["w2"],
                 preferred_element_type=jnp.float32) + params["b2"]
    mu, logvar = ml[:, :LATENT_DIM], ml[:, LATENT_DIM:]
    z = (mu + eps * jnp.exp(0.5 * logvar)).astype(jnp.bfloat16)
    h2 = jnp.maximum(
        jnp.dot(z, params["w3"], preferred_element_type=jnp.float32) + params["b3"], 0.0)
    recon = jax.nn.sigmoid(
        jnp.dot(h2.astype(jnp.bfloat16), params["w4"],
                preferred_element_type=jnp.float32) + params["b4"])
    return recon, mu, logvar


if __name__ == "__main__":
    key = jax.random.PRNGKey(0)
    k_param, k_x, k_eps = jax.random.split(key, 3)
    params = init_params(k_param)

    # --- small MNIST-shaped batch (padded to one 8-row tile internally) ---
    batch = 4
    x = jax.random.normal(k_x, (batch, 1, 28, 28), jnp.float32)
    eps = jax.random.normal(k_eps, (batch, LATENT_DIM), jnp.float32)

    recon, mu, logvar = vae_forward(x, eps, params)
    jax.block_until_ready((recon, mu, logvar))

    r_ref, mu_ref, lv_ref = vae_forward_ref(x, eps, params)
    assert recon.shape == (batch, INPUT_DIM)
    assert mu.shape == (batch, LATENT_DIM)
    assert logvar.shape == (batch, LATENT_DIM)
    assert jnp.allclose(recon, r_ref, atol=2e-2, rtol=2e-2)
    assert jnp.allclose(mu, mu_ref, atol=2e-2, rtol=2e-2)
    assert jnp.allclose(logvar, lv_ref, atol=2e-2, rtol=2e-2)

    # --- larger batch: exercises the batch grid with VMEM-resident weights ---
    batch2 = 384
    x2 = jax.random.normal(k_x, (batch2, 1, 28, 28), jnp.float32)
    eps2 = jax.random.normal(k_eps, (batch2, LATENT_DIM), jnp.float32)
    recon2, mu2, lv2 = vae_forward(x2, eps2, params, batch_tile=128)
    jax.block_until_ready((recon2, mu2, lv2))

    r2_ref, mu2_ref, lv2_ref = vae_forward_ref(x2, eps2, params)
    assert recon2.shape == (batch2, INPUT_DIM)
    assert jnp.allclose(recon2, r2_ref, atol=2e-2, rtol=2e-2)
    assert jnp.allclose(mu2, mu2_ref, atol=2e-2, rtol=2e-2)
    assert jnp.allclose(lv2, lv2_ref, atol=2e-2, rtol=2e-2)

    print("KERNEL_OK")
</pallas_src>

<mosaic_0001>
module attributes {stable_mosaic.version = 11 : i64} {
  func.func @vae_forward_kernel(%arg0: i32, %arg1: memref<8x784xbf16, #tpu.memory_space<vmem>>, %arg2: memref<8x20xf32, #tpu.memory_space<vmem>>, %arg3: memref<784x400xbf16, #tpu.memory_space<vmem>>, %arg4: memref<1x400xf32, #tpu.memory_space<vmem>>, %arg5: memref<400x40xbf16, #tpu.memory_space<vmem>>, %arg6: memref<1x40xf32, #tpu.memory_space<vmem>>, %arg7: memref<20x400xbf16, #tpu.memory_space<vmem>>, %arg8: memref<1x400xf32, #tpu.memory_space<vmem>>, %arg9: memref<400x784xbf16, #tpu.memory_space<vmem>>, %arg10: memref<1x784xf32, #tpu.memory_space<vmem>>, %arg11: memref<8x784xf32, #tpu.memory_space<vmem>>, %arg12: memref<8x40xf32, #tpu.memory_space<vmem>>) attributes {dimension_semantics = [#tpu.dimension_semantics<parallel>], iteration_bounds = array<i64: 1>, scalar_prefetch = 0 : i64, scratch_operands = 0 : i64, tpu.core_type = #tpu.core_type<tc>, window_params = [{transform_indices = @transform_0, window_bounds = array<i64: 8, 784>}, {transform_indices = @transform_1, window_bounds = array<i64: 8, 20>}, {pipeline_mode = #tpu.pipeline_mode<synchronous>, transform_indices = @transform_2, window_bounds = array<i64: 784, 400>}, {pipeline_mode = #tpu.pipeline_mode<synchronous>, transform_indices = @transform_3, window_bounds = array<i64: 1, 400>}, {pipeline_mode = #tpu.pipeline_mode<synchronous>, transform_indices = @transform_4, window_bounds = array<i64: 400, 40>}, {pipeline_mode = #tpu.pipeline_mode<synchronous>, transform_indices = @transform_5, window_bounds = array<i64: 1, 40>}, {pipeline_mode = #tpu.pipeline_mode<synchronous>, transform_indices = @transform_6, window_bounds = array<i64: 20, 400>}, {pipeline_mode = #tpu.pipeline_mode<synchronous>, transform_indices = @transform_7, window_bounds = array<i64: 1, 400>}, {pipeline_mode = #tpu.pipeline_mode<synchronous>, transform_indices = @transform_8, window_bounds = array<i64: 400, 784>}, {pipeline_mode = #tpu.pipeline_mode<synchronous>, transform_indices = @transform_9, window_bounds = array<i64: 1, 784>}, {transform_indices = @transform_10, window_bounds = array<i64: 8, 784>}, {transform_indices = @transform_11, window_bounds = array<i64: 8, 40>}]} {
    %c0 = arith.constant 0 : index
    %c0_0 = arith.constant 0 : index
    %0 = vector.load %arg1[%c0, %c0_0] : memref<8x784xbf16, #tpu.memory_space<vmem>>, vector<8x784xbf16>
    %c0_1 = arith.constant 0 : index
    %c0_2 = arith.constant 0 : index
    %1 = vector.load %arg3[%c0_1, %c0_2] : memref<784x400xbf16, #tpu.memory_space<vmem>>, vector<784x400xbf16>
    %cst = arith.constant dense<0.000000e+00> : vector<8x400xf32>
    %2 = tpu.matmul %0, %1, %cst {dimension_numbers = #tpu.dot_dimension_numbers<[1], [0], [0], [1], [0, 0, 1, 1], [], []>} : vector<8x784xbf16>, vector<784x400xbf16>, vector<8x400xf32> -> vector<8x400xf32>
    %c0_3 = arith.constant 0 : index
    %c0_4 = arith.constant 0 : index
    %3 = vector.load %arg4[%c0_3, %c0_4] : memref<1x400xf32, #tpu.memory_space<vmem>>, vector<1x400xf32>
    %4 = vector.broadcast %3 : vector<1x400xf32> to vector<8x400xf32>
    %5 = arith.addf %2, %4 : vector<8x400xf32>
    %cst_5 = arith.constant 0.000000e+00 : f32
    %6 = vector.broadcast %cst_5 : f32 to vector<8x400xf32>
    %7 = arith.maximumf %5, %6 : vector<8x400xf32>
    %8 = arith.truncf %7 : vector<8x400xf32> to vector<8x400xbf16>
    %c0_6 = arith.constant 0 : index
    %c0_7 = arith.constant 0 : index
    %9 = vector.load %arg5[%c0_6, %c0_7] : memref<400x40xbf16, #tpu.memory_space<vmem>>, vector<400x40xbf16>
    %cst_8 = arith.constant dense<0.000000e+00> : vector<8x40xf32>
    %10 = tpu.matmul %8, %9, %cst_8 {dimension_numbers = #tpu.dot_dimension_numbers<[1], [0], [0], [1], [0, 0, 1, 1], [], []>} : vector<8x400xbf16>, vector<400x40xbf16>, vector<8x40xf32> -> vector<8x40xf32>
    %c0_9 = arith.constant 0 : index
    %c0_10 = arith.constant 0 : index
    %11 = vector.load %arg6[%c0_9, %c0_10] : memref<1x40xf32, #tpu.memory_space<vmem>>, vector<1x40xf32>
    %12 = vector.broadcast %11 : vector<1x40xf32> to vector<8x40xf32>
    %13 = arith.addf %10, %12 : vector<8x40xf32>
    %14 = vector.extract_strided_slice %13 {offsets = [0, 0], sizes = [8, 20], strides = [1, 1]} : vector<8x40xf32> to vector<8x20xf32>
    %15 = vector.extract_strided_slice %13 {offsets = [0, 20], sizes = [8, 20], strides = [1, 1]} : vector<8x40xf32> to vector<8x20xf32>
    %c0_11 = arith.constant 0 : index
    %c0_12 = arith.constant 0 : index
    %16 = vector.load %arg2[%c0_11, %c0_12] : memref<8x20xf32, #tpu.memory_space<vmem>>, vector<8x20xf32>
    %cst_13 = arith.constant 5.000000e-01 : f32
    %17 = vector.broadcast %cst_13 : f32 to vector<8x20xf32>
    %18 = arith.mulf %17, %15 : vector<8x20xf32>
    %19 = math.exp %18 : vector<8x20xf32>
    %20 = arith.mulf %16, %19 : vector<8x20xf32>
    %21 = arith.addf %14, %20 : vector<8x20xf32>
    %22 = arith.truncf %21 : vector<8x20xf32> to vector<8x20xbf16>
    %c0_14 = arith.constant 0 : index
    %c0_15 = arith.constant 0 : index
    %23 = vector.load %arg7[%c0_14, %c0_15] : memref<20x400xbf16, #tpu.memory_space<vmem>>, vector<20x400xbf16>
    %cst_16 = arith.constant dense<0.000000e+00> : vector<8x400xf32>
    %24 = tpu.matmul %22, %23, %cst_16 {dimension_numbers = #tpu.dot_dimension_numbers<[1], [0], [0], [1], [0, 0, 1, 1], [], []>} : vector<8x20xbf16>, vector<20x400xbf16>, vector<8x400xf32> -> vector<8x400xf32>
    %c0_17 = arith.constant 0 : index
    %c0_18 = arith.constant 0 : index
    %25 = vector.load %arg8[%c0_17, %c0_18] : memref<1x400xf32, #tpu.memory_space<vmem>>, vector<1x400xf32>
    %26 = vector.broadcast %25 : vector<1x400xf32> to vector<8x400xf32>
    %27 = arith.addf %24, %26 : vector<8x400xf32>
    %cst_19 = arith.constant 0.000000e+00 : f32
    %28 = vector.broadcast %cst_19 : f32 to vector<8x400xf32>
    %29 = arith.maximumf %27, %28 : vector<8x400xf32>
    %30 = arith.truncf %29 : vector<8x400xf32> to vector<8x400xbf16>
    %c0_20 = arith.constant 0 : index
    %c0_21 = arith.constant 0 : index
    %31 = vector.load %arg9[%c0_20, %c0_21] : memref<400x784xbf16, #tpu.memory_space<vmem>>, vector<400x784xbf16>
    %cst_22 = arith.constant dense<0.000000e+00> : vector<8x784xf32>
    %32 = tpu.matmul %30, %31, %cst_22 {dimension_numbers = #tpu.dot_dimension_numbers<[1], [0], [0], [1], [0, 0, 1, 1], [], []>} : vector<8x400xbf16>, vector<400x784xbf16>, vector<8x784xf32> -> vector<8x784xf32>
    %c0_23 = arith.constant 0 : index
    %c0_24 = arith.constant 0 : index
    %33 = vector.load %arg10[%c0_23, %c0_24] : memref<1x784xf32, #tpu.memory_space<vmem>>, vector<1x784xf32>
    %34 = vector.broadcast %33 : vector<1x784xf32> to vector<8x784xf32>
    %35 = arith.addf %32, %34 : vector<8x784xf32>
    %36 = arith.negf %35 : vector<8x784xf32>
    %37 = math.exp %36 : vector<8x784xf32>
    %cst_25 = arith.constant 1.000000e+00 : f32
    %38 = vector.broadcast %cst_25 : f32 to vector<8x784xf32>
    %39 = arith.addf %38, %37 : vector<8x784xf32>
    %40 = arith.divf %38, %39 : vector<8x784xf32>
    %c0_26 = arith.constant 0 : index
    %c0_27 = arith.constant 0 : index
    %41 = vector.load %arg11[%c0_26, %c0_27] : memref<8x784xf32, #tpu.memory_space<vmem>>, vector<8x784xf32>
    tpu.vector_store %arg11[%c0_26, %c0_27], %40 {strides = array<i32>} : memref<8x784xf32, #tpu.memory_space<vmem>>, vector<8x784xf32>,
    %c0_28 = arith.constant 0 : index
    %c0_29 = arith.constant 0 : index
    %42 = vector.load %arg12[%c0_28, %c0_29] : memref<8x40xf32, #tpu.memory_space<vmem>>, vector<8x40xf32>
    tpu.vector_store %arg12[%c0_28, %c0_29], %13 {strides = array<i32>} : memref<8x40xf32, #tpu.memory_space<vmem>>, vector<8x40xf32>,
    return
  }
  func.func @transform_0(%arg0: i32) -> (i32, i32) {
    %c0_i32 = arith.constant 0 : i32
    %c0_i32_0 = arith.constant 0 : i32
    return %arg0, %c0_i32 : i32, i32
  }
  func.func @transform_1(%arg0: i32) -> (i32, i32) {
    %c0_i32 = arith.constant 0 : i32
    %c0_i32_0 = arith.constant 0 : i32
    return %arg0, %c0_i32 : i32, i32
  }
  func.func @transform_2(%arg0: i32) -> (i32, i32) {
    %c0_i32 = arith.constant 0 : i32
    %c0_i32_0 = arith.constant 0 : i32
    %c0_i32_1 = arith.constant 0 : i32
    return %c0_i32, %c0_i32_0 : i32, i32
  }
  func.func @transform_3(%arg0: i32) -> (i32, i32) {
    %c0_i32 = arith.constant 0 : i32
    %c0_i32_0 = arith.constant 0 : i32
    %c0_i32_1 = arith.constant 0 : i32
    return %c0_i32, %c0_i32_0 : i32, i32
  }
  func.func @transform_4(%arg0: i32) -> (i32, i32) {
    %c0_i32 = arith.constant 0 : i32
    %c0_i32_0 = arith.constant 0 : i32
    %c0_i32_1 = arith.constant 0 : i32
    return %c0_i32, %c0_i32_0 : i32, i32
  }
  func.func @transform_5(%arg0: i32) -> (i32, i32) {
    %c0_i32 = arith.constant 0 : i32
    %c0_i32_0 = arith.constant 0 : i32
    %c0_i32_1 = arith.constant 0 : i32
    return %c0_i32, %c0_i32_0 : i32, i32
  }
  func.func @transform_6(%arg0: i32) -> (i32, i32) {
    %c0_i32 = arith.constant 0 : i32
    %c0_i32_0 = arith.constant 0 : i32
    %c0_i32_1 = arith.constant 0 : i32
    return %c0_i32, %c0_i32_0 : i32, i32
  }
  func.func @transform_7(%arg0: i32) -> (i32, i32) {
    %c0_i32 = arith.constant 0 : i32
    %c0_i32_0 = arith.constant 0 : i32
    %c0_i32_1 = arith.constant 0 : i32
    return %c0_i32, %c0_i32_0 : i32, i32
  }
  func.func @transform_8(%arg0: i32) -> (i32, i32) {
    %c0_i32 = arith.constant 0 : i32
    %c0_i32_0 = arith.constant 0 : i32
    %c0_i32_1 = arith.constant 0 : i32
    return %c0_i32, %c0_i32_0 : i32, i32
  }
  func.func @transform_9(%arg0: i32) -> (i32, i32) {
    %c0_i32 = arith.constant 0 : i32
    %c0_i32_0 = arith.constant 0 : i32
    %c0_i32_1 = arith.constant 0 : i32
    return %c0_i32, %c0_i32_0 : i32, i32
  }
  func.func @transform_10(%arg0: i32) -> (i32, i32) {
    %c0_i32 = arith.constant 0 : i32
    %c0_i32_0 = arith.constant 0 : i32
    return %arg0, %c0_i32 : i32, i32
  }
  func.func @transform_11(%arg0: i32) -> (i32, i32) {
    %c0_i32 = arith.constant 0 : i32
    %c0_i32_0 = arith.constant 0 : i32
    return %arg0, %c0_i32 : i32, i32
  }
}

</mosaic_0001>

<llo_original>
// kernel: tpu_custom_call.1
$region0: #{tpu_custom_call.1}
  #allocation0 [shape = 'u32[]', space=smem, size = 0x4, offset = 0x4, fixed_abs, tag = 'smem constant byte address 0x4 - core index']
  #allocation1 [shape = 'u32[72,128]{1,0:T(1,128)}', space=vmem, size = 0x9000, scoped, tag = 'internal scratch']
  %s0 = inlined_call_operand.vmem [shape: bf16[8,784], index: 0, kind: input, shape index: {}]
  %s1 = inlined_call_operand.vmem [shape: f32[8,20], index: 1, kind: input, shape index: {}]
  %s2 = inlined_call_operand.vmem [shape: bf16[784,400], index: 2, kind: input, shape index: {}]
  %s3 = inlined_call_operand.vmem [shape: f32[1,400], index: 3, kind: input, shape index: {}]
  %s4 = inlined_call_operand.vmem [shape: bf16[400,40], index: 4, kind: input, shape index: {}]
  %s5 = inlined_call_operand.vmem [shape: f32[1,40], index: 5, kind: input, shape index: {}]
  %s6 = inlined_call_operand.vmem [shape: bf16[20,400], index: 6, kind: input, shape index: {}]
  %s7 = inlined_call_operand.vmem [shape: f32[1,400], index: 7, kind: input, shape index: {}]
  %s8 = inlined_call_operand.vmem [shape: bf16[400,784], index: 8, kind: input, shape index: {}]
  %s9 = inlined_call_operand.vmem [shape: f32[1,784], index: 9, kind: input, shape index: {}]
  %s10 = inlined_call_operand.hbm [shape: f32[8,784], index: 10, kind: output, shape index: {0}]
  %s11 = inlined_call_operand.hbm [shape: f32[8,40], index: 11, kind: output, shape index: {1}]
  %12 = xla_tuple %s10, %s11
  %s13 = sld [smem:[#allocation0]]
  $region58: #{tpu_custom_call.1} parent=0
    _
  %s15 = ssub.s32 1, %s13
  %s16 = scalar_select 0, %s15, %s13
  $region1: #{tpu_custom_call.1} parent=0
    #allocation2 [shape = 'u8[28672]{0}', space=vmem, size = 0x7000, scoped, tag = 'output window, operand 0, single buffered']
    #allocation3 [shape = 's32[1]{0}', space=sflag, size = 0x4, scoped, tag = 'scoped memory for tpu_custom_call.1']
    #allocation4 [shape = 'u8[4096]{0}', space=vmem, size = 0x1000, scoped, tag = 'output window, operand 1, single buffered']
    #allocation5 [shape = 's32[1]{0}', space=sflag, size = 0x4, scoped, tag = 'scoped memory for tpu_custom_call.1']
    %17 = vsyncpa [#allocation3], 0
    %18 = vsyncpa [#allocation5], 0
    // Predicated region
    $region2: #{tpu_custom_call.1} parent=1 // pred_check
      _
    $region3: #{tpu_custom_call.1} parent=1 // pred_check_branch
      %20 = sbr.rel (0) target = $region5
    $region4: #{tpu_custom_call.1} parent=1 // pred_region
      _
    $region5: #{tpu_custom_call.1} parent=1 // pred_fallthru
      _
    // Predicated region
    $region6: #{tpu_custom_call.1} parent=1 // pred_check
      _
    $region7: #{tpu_custom_call.1} parent=1 // pred_check_branch
      %22 = sbr.rel (0) target = $region9
    $region8: #{tpu_custom_call.1} parent=1 // pred_region
      _
    $region9: #{tpu_custom_call.1} parent=1 // pred_fallthru
      _
    // Predicated region
    $region10: #{tpu_custom_call.1} parent=1 // pred_check
      _
    $region11: #{tpu_custom_call.1} parent=1 // pred_check_branch
      %24 = sbr.rel (0) target = $region13
    $region12: #{tpu_custom_call.1} parent=1 // pred_region
      _
    $region13: #{tpu_custom_call.1} parent=1 // pred_fallthru
      _
    // Predicated region
    $region14: #{tpu_custom_call.1} parent=1 // pred_check
      _
    $region15: #{tpu_custom_call.1} parent=1 // pred_check_branch
      %26 = sbr.rel (0) target = $region17
    $region16: #{tpu_custom_call.1} parent=1 // pred_region
      _
    $region17: #{tpu_custom_call.1} parent=1 // pred_fallthru
      _
    // Predicated region
    $region18: #{tpu_custom_call.1} parent=1 // pred_check
      _
    $region19: #{tpu_custom_call.1} parent=1 // pred_check_branch
      %28 = sbr.rel (0) target = $region21
    $region20: #{tpu_custom_call.1} parent=1 // pred_region
      _
    $region21: #{tpu_custom_call.1} parent=1 // pred_fallthru
      _
    // Predicated region
    $region22: #{tpu_custom_call.1} parent=1 // pred_check
      _
    $region23: #{tpu_custom_call.1} parent=1 // pred_check_branch
      %30 = sbr.rel (0) target = $region25
    $region24: #{tpu_custom_call.1} parent=1 // pred_region
      _
    $region25: #{tpu_custom_call.1} parent=1 // pred_fallthru
      _
    // Predicated region
    $region26: #{tpu_custom_call.1} parent=1 // pred_check
      _
    $region27: #{tpu_custom_call.1} parent=1 // pred_check_branch
      %32 = sbr.rel (0) target = $region29
    $region28: #{tpu_custom_call.1} parent=1 // pred_region
      _
    $region29: #{tpu_custom_call.1} parent=1 // pred_fallthru
      _
    // Predicated region
    $region30: #{tpu_custom_call.1} parent=1 // pred_check
      _
    $region31: #{tpu_custom_call.1} parent=1 // pred_check_branch
      %34 = sbr.rel (0) target = $region33
    $region32: #{tpu_custom_call.1} parent=1 // pred_region
      _
    $region33: #{tpu_custom_call.1} parent=1 // pred_fallthru
      _
    // Predicated region
    $region34: #{tpu_custom_call.1} parent=1 // pred_check
      _
    $region35: #{tpu_custom_call.1} parent=1 // pred_check_branch
      %36 = sbr.rel (0) target = $region37
    $region36: #{tpu_custom_call.1} parent=1 // pred_region
      _
    $region37: #{tpu_custom_call.1} parent=1 // pred_fallthru
      _
    // Predicated region
    $region38: #{tpu_custom_call.1} parent=1 // pred_check
      _
    $region39: #{tpu_custom_call.1} parent=1 // pred_check_branch
      %38 = sbr.rel (0) target = $region41
    $region40: #{tpu_custom_call.1} parent=1 // pred_region
      _
    $region41: #{tpu_custom_call.1} parent=1 // pred_fallthru
      _
    %v40 = vld [vmem:[%s0] sm:$0xff]
    %v41 = vld [vmem:[%s0 + $0x8] sm:$0xff]
    %v42 = vld [vmem:[%s0 + $0x10] sm:$0xff]
    %v43 = vld [vmem:[%s0 + $0x18] sm:$0xf]
    %v44 = vld [vmem:[%s2] sm:$0xff]
    %v45 = vld [vmem:[%s2 + $0x8] sm:$0xff]
    %v46 = vld [vmem:[%s2 + $0x10] sm:$0xff]
    %v47 = vld [vmem:[%s2 + $0x18] sm:$0xff]
    %v48 = vld [vmem:[%s2 + $0x20] sm:$0xff]
    %v49 = vld [vmem:[%s2 + $0x28] sm:$0xff]
    %v50 = vld [vmem:[%s2 + $0x30] sm:$0xff]
    %v51 = vld [vmem:[%s2 + $0x38] sm:$0xff]
    %v52 = vld [vmem:[%s2 + $0x40] sm:$0xff]
    %v53 = vld [vmem:[%s2 + $0x48] sm:$0xff]
    %v54 = vld [vmem:[%s2 + $0x50] sm:$0xff]
    %v55 = vld [vmem:[%s2 + $0x58] sm:$0xff]
    %v56 = vld [vmem:[%s2 + $0x60] sm:$0xff]
    %v57 = vld [vmem:[%s2 + $0x68] sm:$0xff]
    %v58 = vld [vmem:[%s2 + $0x70] sm:$0xff]
    %v59 = vld [vmem:[%s2 + $0x78] sm:$0xff]
    %v60 = vld [vmem:[%s2 + $0x80] sm:$0xff]
    %v61 = vld [vmem:[%s2 + $0x88] sm:$0xff]
    %v62 = vld [vmem:[%s2 + $0x90] sm:$0xff]
    %v63 = vld [vmem:[%s2 + $0x98] sm:$0xff]
    %v64 = vld [vmem:[%s2 + $0xa0] sm:$0xff]
    %v65 = vld [vmem:[%s2 + $0xa8] sm:$0xff]
    %v66 = vld [vmem:[%s2 + $0xb0] sm:$0xff]
    %v67 = vld [vmem:[%s2 + $0xb8] sm:$0xff]
    %v68 = vld [vmem:[%s2 + $0xc0] sm:$0xff]
    %v69 = vld [vmem:[%s2 + $0xc8] sm:$0xff]
    %v70 = vld [vmem:[%s2 + $0xd0] sm:$0xff]
    %v71 = vld [vmem:[%s2 + $0xd8] sm:$0xff]
    %v72 = vld [vmem:[%s2 + $0xe0] sm:$0xff]
    %v73 = vld [vmem:[%s2 + $0xe8] sm:$0xff]
    %v74 = vld [vmem:[%s2 + $0xf0] sm:$0xff]
    %v75 = vld [vmem:[%s2 + $0xf8] sm:$0xff]
    %v76 = vld [vmem:[%s2 + $0x100] sm:$0xff]
    %v77 = vld [vmem:[%s2 + $0x108] sm:$0xff]
    %v78 = vld [vmem:[%s2 + $0x110] sm:$0xff]
    %v79 = vld [vmem:[%s2 + $0x118] sm:$0xff]
    %v80 = vld [vmem:[%s2 + $0x120] sm:$0xff]
    %v81 = vld [vmem:[%s2 + $0x128] sm:$0xff]
    %v82 = vld [vmem:[%s2 + $0x130] sm:$0xff]
    %v83 = vld [vmem:[%s2 + $0x138] sm:$0xff]
    %v84 = vld [vmem:[%s2 + $0x140] sm:$0xff]
    %v85 = vld [vmem:[%s2 + $0x148] sm:$0xff]
    %v86 = vld [vmem:[%s2 + $0x150] sm:$0xff]
    %v87 = vld [vmem:[%s2 + $0x158] sm:$0xff]
    %v88 = vld [vmem:[%s2 + $0x160] sm:$0xff]
    %v89 = vld [vmem:[%s2 + $0x168] sm:$0xff]
    %v90 = vld [vmem:[%s2 + $0x170] sm:$0xff]
    %v91 = vld [vmem:[%s2 + $0x178] sm:$0xff]
    %v92 = vld [vmem:[%s2 + $0x180] sm:$0xff]
    %v93 = vld [vmem:[%s2 + $0x188] sm:$0xff]
    %v94 = vld [vmem:[%s2 + $0x190] sm:$0xff]
    %v95 = vld [vmem:[%s2 + $0x198] sm:$0xff]
    %v96 = vld [vmem:[%s2 + $0x1a0] sm:$0xff]
    %v97 = vld [vmem:[%s2 + $0x1a8] sm:$0xff]
    %v98 = vld [vmem:[%s2 + $0x1b0] sm:$0xff]
    %v99 = vld [vmem:[%s2 + $0x1b8] sm:$0xff]
    %v100 = vld [vmem:[%s2 + $0x1c0] sm:$0xff]
    %v101 = vld [vmem:[%s2 + $0x1c8] sm:$0xff]
    %v102 = vld [vmem:[%s2 + $0x1d0] sm:$0xff]
    %v103 = vld [vmem:[%s2 + $0x1d8] sm:$0xff]
    %v104 = vld [vmem:[%s2 + $0x1e0] sm:$0xff]
    %v105 = vld [vmem:[%s2 + $0x1e8] sm:$0xff]
    %v106 = vld [vmem:[%s2 + $0x1f0] sm:$0xff]
    %v107 = vld [vmem:[%s2 + $0x1f8] sm:$0xff]
    %v108 = vld [vmem:[%s2 + $0x200] sm:$0xff]
    %v109 = vld [vmem:[%s2 + $0x208] sm:$0xff]
    %v110 = vld [vmem:[%s2 + $0x210] sm:$0xff]
    %v111 = vld [vmem:[%s2 + $0x218] sm:$0xff]
    %v112 = vld [vmem:[%s2 + $0x220] sm:$0xff]
    %v113 = vld [vmem:[%s2 + $0x228] sm:$0xff]
    %v114 = vld [vmem:[%s2 + $0x230] sm:$0xff]
    %v115 = vld [vmem:[%s2 + $0x238] sm:$0xff]
    %v116 = vld [vmem:[%s2 + $0x240] sm:$0xff]
    %v117 = vld [vmem:[%s2 + $0x248] sm:$0xff]
    %v118 = vld [vmem:[%s2 + $0x250] sm:$0xff]
    %v119 = vld [vmem:[%s2 + $0x258] sm:$0xff]
    %v120 = vld [vmem:[%s2 + $0x260] sm:$0xff]
    %v121 = vld [vmem:[%s2 + $0x268] sm:$0xff]
    %v122 = vld [vmem:[%s2 + $0x270] sm:$0xff]
    %v123 = vld [vmem:[%s2 + $0x278] sm:$0xff]
    %v124 = vld [vmem:[%s2 + $0x280] sm:$0xff]
    %v125 = vld [vmem:[%s2 + $0x288] sm:$0xff]
    %v126 = vld [vmem:[%s2 + $0x290] sm:$0xff]
    %v127 = vld [vmem:[%s2 + $0x298] sm:$0xff]
    %v128 = vld [vmem:[%s2 + $0x2a0] sm:$0xff]
    %v129 = vld [vmem:[%s2 + $0x2a8] sm:$0xff]
    %v130 = vld [vmem:[%s2 + $0x2b0] sm:$0xff]
    %v131 = vld [vmem:[%s2 + $0x2b8] sm:$0xff]
    %v132 = vld [vmem:[%s2 + $0x2c0] sm:$0xff]
    %v133 = vld [vmem:[%s2 + $0x2c8] sm:$0xff]
    %v134 = vld [vmem:[%s2 + $0x2d0] sm:$0xff]
    %v135 = vld [vmem:[%s2 + $0x2d8] sm:$0xff]
    %v136 = vld [vmem:[%s2 + $0x2e0] sm:$0xff]
    %v137 = vld [vmem:[%s2 + $0x2e8] sm:$0xff]
    %v138 = vld [vmem:[%s2 + $0x2f0] sm:$0xff]
    %v139 = vld [vmem:[%s2 + $0x2f8] sm:$0xff]
    %v140 = vld [vmem:[%s2 + $0x300] sm:$0xff]
    %v141 = vld [vmem:[%s2 + $0x308] sm:$0xff]
    %v142 = vld [vmem:[%s2 + $0x310] sm:$0xff]
    %v143 = vld [vmem:[%s2 + $0x318] sm:$0xff]
    %v144 = vld [vmem:[%s2 + $0x320] sm:$0xff]
    %v145 = vld [vmem:[%s2 + $0x328] sm:$0xff]
    %v146 = vld [vmem:[%s2 + $0x330] sm:$0xff]
    %v147 = vld [vmem:[%s2 + $0x338] sm:$0xff]
    %v148 = vld [vmem:[%s2 + $0x340] sm:$0xff]
    %v149 = vld [vmem:[%s2 + $0x348] sm:$0xff]
    %v150 = vld [vmem:[%s2 + $0x350] sm:$0xff]
    %v151 = vld [vmem:[%s2 + $0x358] sm:$0xff]
    %v152 = vld [vmem:[%s2 + $0x360] sm:$0xff]
    %v153 = vld [vmem:[%s2 + $0x368] sm:$0xff]
    %v154 = vld [vmem:[%s2 + $0x370] sm:$0xff]
    %v155 = vld [vmem:[%s2 + $0x378] sm:$0xff]
    %v156 = vld [vmem:[%s2 + $0x380] sm:$0xff]
    %v157 = vld [vmem:[%s2 + $0x388] sm:$0xff]
    %v158 = vld [vmem:[%s2 + $0x390] sm:$0xff]
    %v159 = vld [vmem:[%s2 + $0x398] sm:$0xff]
    %v160 = vld [vmem:[%s2 + $0x3a0] sm:$0xff]
    %v161 = vld [vmem:[%s2 + $0x3a8] sm:$0xff]
    %v162 = vld [vmem:[%s2 + $0x3b0] sm:$0xff]
    %v163 = vld [vmem:[%s2 + $0x3b8] sm:$0xff]
    %v164 = vld [vmem:[%s2 + $0x3c0] sm:$0xff]
    %v165 = vld [vmem:[%s2 + $0x3c8] sm:$0xff]
    %v166 = vld [vmem:[%s2 + $0x3d0] sm:$0xff]
    %v167 = vld [vmem:[%s2 + $0x3d8] sm:$0xff]
    %v168 = vld [vmem:[%s2 + $0x3e0] sm:$0xff]
    %v169 = vld [vmem:[%s2 + $0x3e8] sm:$0xff]
    %v170 = vld [vmem:[%s2 + $0x3f0] sm:$0xff]
    %v171 = vld [vmem:[%s2 + $0x3f8] sm:$0xff]
    %v172 = vld [vmem:[%s2 + $0x400] sm:$0xff]
    %v173 = vld [vmem:[%s2 + $0x408] sm:$0xff]
    %v174 = vld [vmem:[%s2 + $0x410] sm:$0xff]
    %v175 = vld [vmem:[%s2 + $0x418] sm:$0xff]
    %v176 = vld [vmem:[%s2 + $0x420] sm:$0xff]
    %v177 = vld [vmem:[%s2 + $0x428] sm:$0xff]
    %v178 = vld [vmem:[%s2 + $0x430] sm:$0xff]
    %v179 = vld [vmem:[%s2 + $0x438] sm:$0xff]
    %v180 = vld [vmem:[%s2 + $0x440] sm:$0xff]
    %v181 = vld [vmem:[%s2 + $0x448] sm:$0xff]
    %v182 = vld [vmem:[%s2 + $0x450] sm:$0xff]
    %v183 = vld [vmem:[%s2 + $0x458] sm:$0xff]
    %v184 = vld [vmem:[%s2 + $0x460] sm:$0xff]
    %v185 = vld [vmem:[%s2 + $0x468] sm:$0xff]
    %v186 = vld [vmem:[%s2 + $0x470] sm:$0xff]
    %v187 = vld [vmem:[%s2 + $0x478] sm:$0xff]
    %v188 = vld [vmem:[%s2 + $0x480] sm:$0xff]
    %v189 = vld [vmem:[%s2 + $0x488] sm:$0xff]
    %v190 = vld [vmem:[%s2 + $0x490] sm:$0xff]
    %v191 = vld [vmem:[%s2 + $0x498] sm:$0xff]
    %v192 = vld [vmem:[%s2 + $0x4a0] sm:$0xff]
    %v193 = vld [vmem:[%s2 + $0x4a8] sm:$0xff]
    %v194 = vld [vmem:[%s2 + $0x4b0] sm:$0xff]
    %v195 = vld [vmem:[%s2 + $0x4b8] sm:$0xff]
    %v196 = vld [vmem:[%s2 + $0x4c0] sm:$0xff]
    %v197 = vld [vmem:[%s2 + $0x4c8] sm:$0xff]
    %v198 = vld [vmem:[%s2 + $0x4d0] sm:$0xff]
    %v199 = vld [vmem:[%s2 + $0x4d8] sm:$0xff]
    %v200 = vld [vmem:[%s2 + $0x4e0] sm:$0xff]
    %v201 = vld [vmem:[%s2 + $0x4e8] sm:$0xff]
    %v202 = vld [vmem:[%s2 + $0x4f0] sm:$0xff]
    %v203 = vld [vmem:[%s2 + $0x4f8] sm:$0xff]
    %v204 = vld [vmem:[%s2 + $0x500] sm:$0xff]
    %v205 = vld [vmem:[%s2 + $0x508] sm:$0xff]
    %v206 = vld [vmem:[%s2 + $0x510] sm:$0xff]
    %v207 = vld [vmem:[%s2 + $0x518] sm:$0xff]
    %v208 = vld [vmem:[%s2 + $0x520] sm:$0xff]
    %v209 = vld [vmem:[%s2 + $0x528] sm:$0xff]
    %v210 = vld [vmem:[%s2 + $0x530] sm:$0xff]
    %v211 = vld [vmem:[%s2 + $0x538] sm:$0xff]
    %v212 = vld [vmem:[%s2 + $0x540] sm:$0xff]
    %v213 = vld [vmem:[%s2 + $0x548] sm:$0xff]
    %v214 = vld [vmem:[%s2 + $0x550] sm:$0xff]
    %v215 = vld [vmem:[%s2 + $0x558] sm:$0xff]
    %v216 = vld [vmem:[%s2 + $0x560] sm:$0xff]
    %v217 = vld [vmem:[%s2 + $0x568] sm:$0xff]
    %v218 = vld [vmem:[%s2 + $0x570] sm:$0xff]
    %v219 = vld [vmem:[%s2 + $0x578] sm:$0xff]
    %v220 = vld [vmem:[%s2 + $0x580] sm:$0xff]
    %v221 = vld [vmem:[%s2 + $0x588] sm:$0xff]
    %v222 = vld [vmem:[%s2 + $0x590] sm:$0xff]
    %v223 = vld [vmem:[%s2 + $0x598] sm:$0xff]
    %v224 = vld [vmem:[%s2 + $0x5a0] sm:$0xff]
    %v225 = vld [vmem:[%s2 + $0x5a8] sm:$0xff]
    %v226 = vld [vmem:[%s2 + $0x5b0] sm:$0xff]
    %v227 = vld [vmem:[%s2 + $0x5b8] sm:$0xff]
    %v228 = vld [vmem:[%s2 + $0x5c0] sm:$0xff]
    %v229 = vld [vmem:[%s2 + $0x5c8] sm:$0xff]
    %v230 = vld [vmem:[%s2 + $0x5d0] sm:$0xff]
    %v231 = vld [vmem:[%s2 + $0x5d8] sm:$0xff]
    %v232 = vld [vmem:[%s2 + $0x5e0] sm:$0xff]
    %v233 = vld [vmem:[%s2 + $0x5e8] sm:$0xff]
    %v234 = vld [vmem:[%s2 + $0x5f0] sm:$0xff]
    %v235 = vld [vmem:[%s2 + $0x5f8] sm:$0xff]
    %v236 = vld [vmem:[%s2 + $0x600] sm:$0xff]
    %v237 = vld [vmem:[%s2 + $0x608] sm:$0xff]
    %v238 = vld [vmem:[%s2 + $0x610] sm:$0xff]
    %v239 = vld [vmem:[%s2 + $0x618] sm:$0xff]
    %v240 = vld [vmem:[%s3] sm:$0xf]
    %v242 = vperm.slane %v240, 0
    %v243 = vperm.slane %v240, 1
    %v244 = vperm.slane %v240, 2
    %v245 = vperm.slane %v240, 3
    %v254 = vunpack.c.l.b16 %v40
    %v255 = vunpack.c.h.b16 %v40
    %v256 = vunpack.c.l.b16 %v41
    %v257 = vunpack.c.h.b16 %v41
    %v258 = vunpack.c.l.b16 %v42
    %v259 = vunpack.c.h.b16 %v42
    %v260 = vunpack.c.l.b16 %v43
    %v261 = vpack.c.b16 %v254, %v254
    %v262 = vpack.c.b16 %v255, %v255
    %v263 = vpack.c.b16 %v256, %v256
    %v264 = vpack.c.b16 %v257, %v257
    %v265 = vpack.c.b16 %v258, %v258
    %v266 = vpack.c.b16 %v259, %v259
    %v267 = vpack.c.b16 %v260, %v260
    %v470 = vunpack.c.l.b16 %v44
    %v471 = vunpack.c.h.b16 %v44
    %v472 = vunpack.c.l.b16 %v45
    %v473 = vunpack.c.h.b16 %v45
    %v474 = vunpack.c.l.b16 %v46
    %v475 = vunpack.c.h.b16 %v46
    %v476 = vunpack.c.l.b16 %v47
    %v477 = vunpack.c.h.b16 %v47
    %v478 = vunpack.c.l.b16 %v48
    %v479 = vunpack.c.h.b16 %v48
    %v480 = vunpack.c.l.b16 %v49
    %v481 = vunpack.c.h.b16 %v49
    %v482 = vunpack.c.l.b16 %v50
    %v483 = vunpack.c.h.b16 %v50
    %v484 = vunpack.c.l.b16 %v51
    %v485 = vunpack.c.h.b16 %v51
    %v486 = vunpack.c.l.b16 %v52
    %v487 = vunpack.c.h.b16 %v52
    %v488 = vunpack.c.l.b16 %v53
    %v489 = vunpack.c.h.b16 %v53
    %v490 = vunpack.c.l.b16 %v54
    %v491 = vunpack.c.h.b16 %v54
    %v492 = vunpack.c.l.b16 %v55
    %v493 = vunpack.c.h.b16 %v55
    %v494 = vunpack.c.l.b16 %v56
    %v495 = vunpack.c.h.b16 %v56
    %v496 = vunpack.c.l.b16 %v57
    %v497 = vunpack.c.h.b16 %v57
    %v498 = vunpack.c.l.b16 %v58
    %v499 = vunpack.c.h.b16 %v58
    %v500 = vunpack.c.l.b16 %v59
    %v501 = vunpack.c.h.b16 %v59
    %v502 = vunpack.c.l.b16 %v60
    %v503 = vunpack.c.h.b16 %v60
    %v504 = vunpack.c.l.b16 %v61
    %v505 = vunpack.c.h.b16 %v61
    %v506 = vunpack.c.l.b16 %v62
    %v507 = vunpack.c.h.b16 %v62
    %v508 = vunpack.c.l.b16 %v63
    %v509 = vunpack.c.h.b16 %v63
    %v510 = vunpack.c.l.b16 %v64
    %v511 = vunpack.c.h.b16 %v64
    %v512 = vunpack.c.l.b16 %v65
    %v513 = vunpack.c.h.b16 %v65
    %v514 = vunpack.c.l.b16 %v66
    %v515 = vunpack.c.h.b16 %v66
    %v516 = vunpack.c.l.b16 %v67
    %v517 = vunpack.c.h.b16 %v67
    %v518 = vunpack.c.l.b16 %v68
    %v519 = vunpack.c.h.b16 %v68
    %v520 = vunpack.c.l.b16 %v69
    %v521 = vunpack.c.h.b16 %v69
    %v522 = vunpack.c.l.b16 %v70
    %v523 = vunpack.c.h.b16 %v70
    %v524 = vunpack.c.l.b16 %v71
    %v525 = vunpack.c.h.b16 %v71
    %v526 = vunpack.c.l.b16 %v72
    %v527 = vunpack.c.h.b16 %v72
    %v528 = vunpack.c.l.b16 %v73
    %v529 = vunpack.c.h.b16 %v73
    %v530 = vunpack.c.l.b16 %v74
    %v531 = vunpack.c.h.b16 %v74
    %v532 = vunpack.c.l.b16 %v75
    %v533 = vunpack.c.h.b16 %v75
    %v534 = vunpack.c.l.b16 %v76
    %v535 = vunpack.c.h.b16 %v76
    %v536 = vunpack.c.l.b16 %v77
    %v537 = vunpack.c.h.b16 %v77
    %v538 = vunpack.c.l.b16 %v78
    %v539 = vunpack.c.h.b16 %v78
    %v540 = vunpack.c.l.b16 %v79
    %v541 = vunpack.c.h.b16 %v79
    %v542 = vunpack.c.l.b16 %v80
    %v543 = vunpack.c.h.b16 %v80
    %v544 = vunpack.c.l.b16 %v81
    %v545 = vunpack.c.h.b16 %v81
    %v546 = vunpack.c.l.b16 %v82
    %v547 = vunpack.c.h.b16 %v82
    %v548 = vunpack.c.l.b16 %v83
    %v549 = vunpack.c.h.b16 %v83
    %v550 = vunpack.c.l.b16 %v84
    %v551 = vunpack.c.h.b16 %v84
    %v552 = vunpack.c.l.b16 %v85
    %v553 = vunpack.c.h.b16 %v85
    %v554 = vunpack.c.l.b16 %v86
    %v555 = vunpack.c.h.b16 %v86
    %v556 = vunpack.c.l.b16 %v87
    %v557 = vunpack.c.h.b16 %v87
    %v558 = vunpack.c.l.b16 %v88
    %v559 = vunpack.c.h.b16 %v88
    %v560 = vunpack.c.l.b16 %v89
    %v561 = vunpack.c.h.b16 %v89
    %v562 = vunpack.c.l.b16 %v90
    %v563 = vunpack.c.h.b16 %v90
    %v564 = vunpack.c.l.b16 %v91
    %v565 = vunpack.c.h.b16 %v91
    %v566 = vunpack.c.l.b16 %v92
    %v567 = vunpack.c.h.b16 %v92
    %v568 = vunpack.c.l.b16 %v93
    %v569 = vunpack.c.h.b16 %v93
    %v570 = vunpack.c.l.b16 %v94
    %v571 = vunpack.c.h.b16 %v94
    %v572 = vunpack.c.l.b16 %v95
    %v573 = vunpack.c.h.b16 %v95
    %v574 = vunpack.c.l.b16 %v96
    %v575 = vunpack.c.h.b16 %v96
    %v576 = vunpack.c.l.b16 %v97
    %v577 = vunpack.c.h.b16 %v97
    %v578 = vunpack.c.l.b16 %v98
    %v579 = vunpack.c.h.b16 %v98
    %v580 = vunpack.c.l.b16 %v99
    %v581 = vunpack.c.h.b16 %v99
    %v582 = vunpack.c.l.b16 %v100
    %v583 = vunpack.c.h.b16 %v100
    %v584 = vunpack.c.l.b16 %v101
    %v585 = vunpack.c.h.b16 %v101
    %v586 = vunpack.c.l.b16 %v102
    %v587 = vunpack.c.h.b16 %v102
    %v588 = vunpack.c.l.b16 %v103
    %v589 = vunpack.c.h.b16 %v103
    %v590 = vunpack.c.l.b16 %v104
    %v591 = vunpack.c.h.b16 %v104
    %v592 = vunpack.c.l.b16 %v105
    %v593 = vunpack.c.h.b16 %v105
    %v594 = vunpack.c.l.b16 %v106
    %v595 = vunpack.c.h.b16 %v106
    %v596 = vunpack.c.l.b16 %v107
    %v597 = vunpack.c.h.b16 %v107
    %v598 = vunpack.c.l.b16 %v108
    %v599 = vunpack.c.h.b16 %v108
    %v600 = vunpack.c.l.b16 %v109
    %v601 = vunpack.c.h.b16 %v109
    %v602 = vunpack.c.l.b16 %v110
    %v603 = vunpack.c.h.b16 %v110
    %v604 = vunpack.c.l.b16 %v111
    %v605 = vunpack.c.h.b16 %v111
    %v606 = vunpack.c.l.b16 %v112
    %v607 = vunpack.c.h.b16 %v112
    %v608 = vunpack.c.l.b16 %v113
    %v609 = vunpack.c.h.b16 %v113
    %v610 = vunpack.c.l.b16 %v114
    %v611 = vunpack.c.h.b16 %v114
    %v612 = vunpack.c.l.b16 %v115
    %v613 = vunpack.c.h.b16 %v115
    %v614 = vunpack.c.l.b16 %v116
    %v615 = vunpack.c.h.b16 %v116
    %v616 = vunpack.c.l.b16 %v117
    %v617 = vunpack.c.h.b16 %v117
    %v618 = vunpack.c.l.b16 %v118
    %v619 = vunpack.c.h.b16 %v118
    %v620 = vunpack.c.l.b16 %v119
    %v621 = vunpack.c.h.b16 %v119
    %v622 = vunpack.c.l.b16 %v120
    %v623 = vunpack.c.h.b16 %v120
    %v624 = vunpack.c.l.b16 %v121
    %v625 = vunpack.c.h.b16 %v121
    %v626 = vunpack.c.l.b16 %v122
    %v627 = vunpack.c.h.b16 %v122
    %v628 = vunpack.c.l.b16 %v123
    %v629 = vunpack.c.h.b16 %v123
    %v630 = vunpack.c.l.b16 %v124
    %v631 = vunpack.c.h.b16 %v124
    %v632 = vunpack.c.l.b16 %v125
    %v633 = vunpack.c.h.b16 %v125
    %v634 = vunpack.c.l.b16 %v126
    %v635 = vunpack.c.h.b16 %v126
    %v636 = vunpack.c.l.b16 %v127
    %v637 = vunpack.c.h.b16 %v127
    %v638 = vunpack.c.l.b16 %v128
    %v639 = vunpack.c.h.b16 %v128
    %v640 = vunpack.c.l.b16 %v129
    %v641 = vunpack.c.h.b16 %v129
    %v642 = vunpack.c.l.b16 %v130
    %v643 = vunpack.c.h.b16 %v130
    %v644 = vunpack.c.l.b16 %v131
    %v645 = vunpack.c.h.b16 %v131
    %v646 = vunpack.c.l.b16 %v132
    %v647 = vunpack.c.h.b16 %v132
    %v648 = vunpack.c.l.b16 %v133
    %v649 = vunpack.c.h.b16 %v133
    %v650 = vunpack.c.l.b16 %v134
    %v651 = vunpack.c.h.b16 %v134
    %v652 = vunpack.c.l.b16 %v135
    %v653 = vunpack.c.h.b16 %v135
    %v654 = vunpack.c.l.b16 %v136
    %v655 = vunpack.c.h.b16 %v136
    %v656 = vunpack.c.l.b16 %v137
    %v657 = vunpack.c.h.b16 %v137
    %v658 = vunpack.c.l.b16 %v138
    %v659 = vunpack.c.h.b16 %v138
    %v660 = vunpack.c.l.b16 %v139
    %v661 = vunpack.c.h.b16 %v139
    %v662 = vunpack.c.l.b16 %v140
    %v663 = vunpack.c.h.b16 %v140
    %v664 = vunpack.c.l.b16 %v141
    %v665 = vunpack.c.h.b16 %v141
    %v666 = vunpack.c.l.b16 %v142
    %v667 = vunpack.c.h.b16 %v142
    %v668 = vunpack.c.l.b16 %v143
    %v669 = vunpack.c.h.b16 %v143
    %v670 = vunpack.c.l.b16 %v144
    %v671 = vunpack.c.h.b16 %v144
    %v672 = vunpack.c.l.b16 %v145
    %v673 = vunpack.c.h.b16 %v145
    %v674 = vunpack.c.l.b16 %v146
    %v675 = vunpack.c.h.b16 %v146
    %v676 = vunpack.c.l.b16 %v147
    %v677 = vunpack.c.h.b16 %v147
    %v678 = vunpack.c.l.b16 %v148
    %v679 = vunpack.c.h.b16 %v148
    %v680 = vunpack.c.l.b16 %v149
    %v681 = vunpack.c.h.b16 %v149
    %v682 = vunpack.c.l.b16 %v150
    %v683 = vunpack.c.h.b16 %v150
    %v684 = vunpack.c.l.b16 %v151
    %v685 = vunpack.c.h.b16 %v151
    %v686 = vunpack.c.l.b16 %v152
    %v687 = vunpack.c.h.b16 %v152
    %v688 = vunpack.c.l.b16 %v153
    %v689 = vunpack.c.h.b16 %v153
    %v690 = vunpack.c.l.b16 %v154
    %v691 = vunpack.c.h.b16 %v154
    %v692 = vunpack.c.l.b16 %v155
    %v693 = vunpack.c.h.b16 %v155
    %v694 = vunpack.c.l.b16 %v156
    %v695 = vunpack.c.h.b16 %v156
    %v696 = vunpack.c.l.b16 %v157
    %v697 = vunpack.c.h.b16 %v157
    %v698 = vunpack.c.l.b16 %v158
    %v699 = vunpack.c.h.b16 %v158
    %v700 = vunpack.c.l.b16 %v159
    %v701 = vunpack.c.h.b16 %v159
    %v702 = vunpack.c.l.b16 %v160
    %v703 = vunpack.c.h.b16 %v160
    %v704 = vunpack.c.l.b16 %v161
    %v705 = vunpack.c.h.b16 %v161
    %v706 = vunpack.c.l.b16 %v162
    %v707 = vunpack.c.h.b16 %v162
    %v708 = vunpack.c.l.b16 %v163
    %v709 = vunpack.c.h.b16 %v163
    %v710 = vunpack.c.l.b16 %v164
    %v711 = vunpack.c.h.b16 %v164
    %v712 = vunpack.c.l.b16 %v165
    %v713 = vunpack.c.h.b16 %v165
    %v714 = vunpack.c.l.b16 %v166
    %v715 = vunpack.c.h.b16 %v166
    %v716 = vunpack.c.l.b16 %v167
    %v717 = vunpack.c.h.b16 %v167
    %v718 = vunpack.c.l.b16 %v168
    %v719 = vunpack.c.h.b16 %v168
    %v720 = vunpack.c.l.b16 %v169
    %v721 = vunpack.c.h.b16 %v169
    %v722 = vunpack.c.l.b16 %v170
    %v723 = vunpack.c.h.b16 %v170
    %v724 = vunpack.c.l.b16 %v171
    %v725 = vunpack.c.h.b16 %v171
    %v726 = vunpack.c.l.b16 %v172
    %v727 = vunpack.c.h.b16 %v172
    %v728 = vunpack.c.l.b16 %v173
    %v729 = vunpack.c.h.b16 %v173
    %v730 = vunpack.c.l.b16 %v174
    %v731 = vunpack.c.h.b16 %v174
    %v732 = vunpack.c.l.b16 %v175
    %v733 = vunpack.c.h.b16 %v175
    %v734 = vunpack.c.l.b16 %v176
    %v735 = vunpack.c.h.b16 %v176
    %v736 = vunpack.c.l.b16 %v177
    %v737 = vunpack.c.h.b16 %v177
    %v738 = vunpack.c.l.b16 %v178
    %v739 = vunpack.c.h.b16 %v178
    %v740 = vunpack.c.l.b16 %v179
    %v741 = vunpack.c.h.b16 %v179
    %v742 = vunpack.c.l.b16 %v180
    %v743 = vunpack.c.h.b16 %v180
    %v744 = vunpack.c.l.b16 %v181
    %v745 = vunpack.c.h.b16 %v181
    %v746 = vunpack.c.l.b16 %v182
    %v747 = vunpack.c.h.b16 %v182
    %v748 = vunpack.c.l.b16 %v183
    %v749 = vunpack.c.h.b16 %v183
    %v750 = vunpack.c.l.b16 %v184
    %v751 = vunpack.c.h.b16 %v184
    %v752 = vunpack.c.l.b16 %v185
    %v753 = vunpack.c.h.b16 %v185
    %v754 = vunpack.c.l.b16 %v186
    %v755 = vunpack.c.h.b16 %v186
    %v756 = vunpack.c.l.b16 %v187
    %v757 = vunpack.c.h.b16 %v187
    %v758 = vunpack.c.l.b16 %v188
    %v759 = vunpack.c.h.b16 %v188
    %v760 = vunpack.c.l.b16 %v189
    %v761 = vunpack.c.h.b16 %v189
    %v762 = vunpack.c.l.b16 %v190
    %v763 = vunpack.c.h.b16 %v190
    %v764 = vunpack.c.l.b16 %v191
    %v765 = vunpack.c.h.b16 %v191
    %v766 = vunpack.c.l.b16 %v192
    %v767 = vunpack.c.h.b16 %v192
    %v768 = vunpack.c.l.b16 %v193
    %v769 = vunpack.c.h.b16 %v193
    %v770 = vunpack.c.l.b16 %v194
    %v771 = vunpack.c.h.b16 %v194
    %v772 = vunpack.c.l.b16 %v195
    %v773 = vunpack.c.h.b16 %v195
    %v774 = vunpack.c.l.b16 %v196
    %v775 = vunpack.c.h.b16 %v196
    %v776 = vunpack.c.l.b16 %v197
    %v777 = vunpack.c.h.b16 %v197
    %v778 = vunpack.c.l.b16 %v198
    %v779 = vunpack.c.h.b16 %v198
    %v780 = vunpack.c.l.b16 %v199
    %v781 = vunpack.c.h.b16 %v199
    %v782 = vunpack.c.l.b16 %v200
    %v783 = vunpack.c.h.b16 %v200
    %v784 = vunpack.c.l.b16 %v201
    %v785 = vunpack.c.h.b16 %v201
    %v786 = vunpack.c.l.b16 %v202
    %v787 = vunpack.c.h.b16 %v202
    %v788 = vunpack.c.l.b16 %v203
    %v789 = vunpack.c.h.b16 %v203
    %v790 = vunpack.c.l.b16 %v204
    %v791 = vunpack.c.h.b16 %v204
    %v792 = vunpack.c.l.b16 %v205
    %v793 = vunpack.c.h.b16 %v205
    %v794 = vunpack.c.l.b16 %v206
    %v795 = vunpack.c.h.b16 %v206
    %v796 = vunpack.c.l.b16 %v207
    %v797 = vunpack.c.h.b16 %v207
    %v798 = vunpack.c.l.b16 %v208
    %v799 = vunpack.c.h.b16 %v208
    %v800 = vunpack.c.l.b16 %v209
    %v801 = vunpack.c.h.b16 %v209
    %v802 = vunpack.c.l.b16 %v210
    %v803 = vunpack.c.h.b16 %v210
    %v804 = vunpack.c.l.b16 %v211
    %v805 = vunpack.c.h.b16 %v211
    %v806 = vunpack.c.l.b16 %v212
    %v807 = vunpack.c.h.b16 %v212
    %v808 = vunpack.c.l.b16 %v213
    %v809 = vunpack.c.h.b16 %v213
    %v810 = vunpack.c.l.b16 %v214
    %v811 = vunpack.c.h.b16 %v214
    %v812 = vunpack.c.l.b16 %v215
    %v813 = vunpack.c.h.b16 %v215
    %v814 = vunpack.c.l.b16 %v216
    %v815 = vunpack.c.h.b16 %v216
    %v816 = vunpack.c.l.b16 %v217
    %v817 = vunpack.c.h.b16 %v217
    %v818 = vunpack.c.l.b16 %v218
    %v819 = vunpack.c.h.b16 %v218
    %v820 = vunpack.c.l.b16 %v219
    %v821 = vunpack.c.h.b16 %v219
    %v822 = vunpack.c.l.b16 %v220
    %v823 = vunpack.c.h.b16 %v220
    %v824 = vunpack.c.l.b16 %v221
    %v825 = vunpack.c.h.b16 %v221
    %v826 = vunpack.c.l.b16 %v222
    %v827 = vunpack.c.h.b16 %v222
    %v828 = vunpack.c.l.b16 %v223
    %v829 = vunpack.c.h.b16 %v223
    %v830 = vunpack.c.l.b16 %v224
    %v831 = vunpack.c.h.b16 %v224
    %v832 = vunpack.c.l.b16 %v225
    %v833 = vunpack.c.h.b16 %v225
    %v834 = vunpack.c.l.b16 %v226
    %v835 = vunpack.c.h.b16 %v226
    %v836 = vunpack.c.l.b16 %v227
    %v837 = vunpack.c.h.b16 %v227
    %v838 = vunpack.c.l.b16 %v228
    %v839 = vunpack.c.h.b16 %v228
    %v840 = vunpack.c.l.b16 %v229
    %v841 = vunpack.c.h.b16 %v229
    %v842 = vunpack.c.l.b16 %v230
    %v843 = vunpack.c.h.b16 %v230
    %v844 = vunpack.c.l.b16 %v231
    %v845 = vunpack.c.h.b16 %v231
    %v846 = vunpack.c.l.b16 %v232
    %v847 = vunpack.c.h.b16 %v232
    %v848 = vunpack.c.l.b16 %v233
    %v849 = vunpack.c.h.b16 %v233
    %v850 = vunpack.c.l.b16 %v234
    %v851 = vunpack.c.h.b16 %v234
    %v852 = vunpack.c.l.b16 %v235
    %v853 = vunpack.c.h.b16 %v235
    %v854 = vunpack.c.l.b16 %v236
    %v855 = vunpack.c.h.b16 %v236
    %v856 = vunpack.c.l.b16 %v237
    %v857 = vunpack.c.h.b16 %v237
    %v858 = vunpack.c.l.b16 %v238
    %v859 = vunpack.c.h.b16 %v238
    %v860 = vunpack.c.l.b16 %v239
    %v861 = vunpack.c.h.b16 %v239
    %v862 = vpack.c.b16 %v474, %v470
    %v863 = vpack.c.b16 %v475, %v471
    %v864 = vpack.c.b16 %v476, %v472
    %v865 = vpack.c.b16 %v477, %v473
    %v866 = vpack.c.b16 %v482, %v478
    %v867 = vpack.c.b16 %v483, %v479
    %v868 = vpack.c.b16 %v484, %v480
    %v869 = vpack.c.b16 %v485, %v481
    %v870 = vpack.c.b16 %v490, %v486
    %v871 = vpack.c.b16 %v491, %v487
    %v872 = vpack.c.b16 %v492, %v488
    %v873 = vpack.c.b16 %v493, %v489
    %v874 = vpack.c.b16 %v498, %v494
    %v875 = vpack.c.b16 %v499, %v495
    %v876 = vpack.c.b16 %v500, %v496
    %v877 = vpack.c.b16 %v501, %v497
    %v878 = vpack.c.b16 %v506, %v502
    %v879 = vpack.c.b16 %v507, %v503
    %v880 = vpack.c.b16 %v508, %v504
    %v881 = vpack.c.b16 %v509, %v505
    %v882 = vpack.c.b16 %v514, %v510
    %v883 = vpack.c.b16 %v515, %v511
    %v884 = vpack.c.b16 %v516, %v512
    %v885 = vpack.c.b16 %v517, %v513
    %v886 = vpack.c.b16 %v522, %v518
    %v887 = vpack.c.b16 %v523, %v519
    %v888 = vpack.c.b16 %v524, %v520
    %v889 = vpack.c.b16 %v525, %v521
    %v890 = vpack.c.b16 %v530, %v526
    %v891 = vpack.c.b16 %v531, %v527
    %v892 = vpack.c.b16 %v532, %v528
    %v893 = vpack.c.b16 %v533, %v529
    %v894 = vpack.c.b16 %v538, %v534
    %v895 = vpack.c.b16 %v539, %v535
    %v896 = vpack.c.b16 %v540, %v536
    %v897 = vpack.c.b16 %v541, %v537
    %v898 = vpack.c.b16 %v546, %v542
    %v899 = vpack.c.b16 %v547, %v543
    %v900 = vpack.c.b16 %v548, %v544
    %v901 = vpack.c.b16 %v549, %v545
    %v902 = vpack.c.b16 %v554, %v550
    %v903 = vpack.c.b16 %v555, %v551
    %v904 = vpack.c.b16 %v556, %v552
    %v905 = vpack.c.b16 %v557, %v553
    %v906 = vpack.c.b16 %v562, %v558
    %v907 = vpack.c.b16 %v563, %v559
    %v908 = vpack.c.b16 %v564, %v560
    %v909 = vpack.c.b16 %v565, %v561
    %v910 = vpack.c.b16 %v570, %v566
    %v911 = vpack.c.b16 %v571, %v567
    %v912 = vpack.c.b16 %v572, %v568
    %v913 = vpack.c.b16 %v573, %v569
    %v914 = vpack.c.b16 %v578, %v574
    %v915 = vpack.c.b16 %v579, %v575
    %v916 = vpack.c.b16 %v580, %v576
    %v917 = vpack.c.b16 %v581, %v577
    %v918 = vpack.c.b16 %v586, %v582
    %v919 = vpack.c.b16 %v587, %v583
    %v920 = vpack.c.b16 %v588, %v584
    %v921 = vpack.c.b16 %v589, %v585
    %v922 = vpack.c.b16 %v594, %v590
    %v923 = vpack.c.b16 %v595, %v591
    %v924 = vpack.c.b16 %v596, %v592
    %v925 = vpack.c.b16 %v597, %v593
    %v926 = vpack.c.b16 %v602, %v598
    %v927 = vpack.c.b16 %v603, %v599
    %v928 = vpack.c.b16 %v604, %v600
    %v929 = vpack.c.b16 %v605, %v601
    %v930 = vpack.c.b16 %v610, %v606
    %v931 = vpack.c.b16 %v611, %v607
    %v932 = vpack.c.b16 %v612, %v608
    %v933 = vpack.c.b16 %v613, %v609
    %v934 = vpack.c.b16 %v618, %v614
    %v935 = vpack.c.b16 %v619, %v615
    %v936 = vpack.c.b16 %v620, %v616
    %v937 = vpack.c.b16 %v621, %v617
    %v938 = vpack.c.b16 %v626, %v622
    %v939 = vpack.c.b16 %v627, %v623
    %v940 = vpack.c.b16 %v628, %v624
    %v941 = vpack.c.b16 %v629, %v625
    %v942 = vpack.c.b16 %v634, %v630
    %v943 = vpack.c.b16 %v635, %v631
    %v944 = vpack.c.b16 %v636, %v632
    %v945 = vpack.c.b16 %v637, %v633
    %v946 = vpack.c.b16 %v642, %v638
    %v947 = vpack.c.b16 %v643, %v639
    %v948 = vpack.c.b16 %v644, %v640
    %v949 = vpack.c.b16 %v645, %v641
    %v950 = vpack.c.b16 %v650, %v646
    %v951 = vpack.c.b16 %v651, %v647
    %v952 = vpack.c.b16 %v652, %v648
    %v953 = vpack.c.b16 %v653, %v649
    %v954 = vpack.c.b16 %v658, %v654
    %v955 = vpack.c.b16 %v659, %v655
    %v956 = vpack.c.b16 %v660, %v656
    %v957 = vpack.c.b16 %v661, %v657
    %v958 = vpack.c.b16 %v666, %v662
    %v959 = vpack.c.b16 %v667, %v663
    %v960 = vpack.c.b16 %v668, %v664
    %v961 = vpack.c.b16 %v669, %v665
    %v962 = vpack.c.b16 %v674, %v670
    %v963 = vpack.c.b16 %v675, %v671
    %v964 = vpack.c.b16 %v676, %v672
    %v965 = vpack.c.b16 %v677, %v673
    %v966 = vpack.c.b16 %v682, %v678
    %v967 = vpack.c.b16 %v683, %v679
    %v968 = vpack.c.b16 %v684, %v680
    %v969 = vpack.c.b16 %v685, %v681
    %v970 = vpack.c.b16 %v690, %v686
    %v971 = vpack.c.b16 %v691, %v687
    %v972 = vpack.c.b16 %v692, %v688
    %v973 = vpack.c.b16 %v693, %v689
    %v974 = vpack.c.b16 %v698, %v694
    %v975 = vpack.c.b16 %v699, %v695
    %v976 = vpack.c.b16 %v700, %v696
    %v977 = vpack.c.b16 %v701, %v697
    %v978 = vpack.c.b16 %v706, %v702
    %v979 = vpack.c.b16 %v707, %v703
    %v980 = vpack.c.b16 %v708, %v704
    %v981 = vpack.c.b16 %v709, %v705
    %v982 = vpack.c.b16 %v714, %v710
    %v983 = vpack.c.b16 %v715, %v711
    %v984 = vpack.c.b16 %v716, %v712
    %v985 = vpack.c.b16 %v717, %v713
    %v986 = vpack.c.b16 %v722, %v718
    %v987 = vpack.c.b16 %v723, %v719
    %v988 = vpack.c.b16 %v724, %v720
    %v989 = vpack.c.b16 %v725, %v721
    %v990 = vpack.c.b16 %v730, %v726
    %v991 = vpack.c.b16 %v731, %v727
    %v992 = vpack.c.b16 %v732, %v728
    %v993 = vpack.c.b16 %v733, %v729
    %v994 = vpack.c.b16 %v738, %v734
    %v995 = vpack.c.b16 %v739, %v735
    %v996 = vpack.c.b16 %v740, %v736
    %v997 = vpack.c.b16 %v741, %v737
    %v998 = vpack.c.b16 %v746, %v742
    %v999 = vpack.c.b16 %v747, %v743
    %v1000 = vpack.c.b16 %v748, %v744
    %v1001 = vpack.c.b16 %v749, %v745
    %v1002 = vpack.c.b16 %v754, %v750
    %v1003 = vpack.c.b16 %v755, %v751
    %v1004 = vpack.c.b16 %v756, %v752
    %v1005 = vpack.c.b16 %v757, %v753
    %v1006 = vpack.c.b16 %v762, %v758
    %v1007 = vpack.c.b16 %v763, %v759
    %v1008 = vpack.c.b16 %v764, %v760
    %v1009 = vpack.c.b16 %v765, %v761
    %v1010 = vpack.c.b16 %v770, %v766
    %v1011 = vpack.c.b16 %v771, %v767
    %v1012 = vpack.c.b16 %v772, %v768
    %v1013 = vpack.c.b16 %v773, %v769
    %v1014 = vpack.c.b16 %v778, %v774
    %v1015 = vpack.c.b16 %v779, %v775
    %v1016 = vpack.c.b16 %v780, %v776
    %v1017 = vpack.c.b16 %v781, %v777
    %v1018 = vpack.c.b16 %v786, %v782
    %v1019 = vpack.c.b16 %v787, %v783
    %v1020 = vpack.c.b16 %v788, %v784
    %v1021 = vpack.c.b16 %v789, %v785
    %v1022 = vpack.c.b16 %v794, %v790
    %v1023 = vpack.c.b16 %v795, %v791
    %v1024 = vpack.c.b16 %v796, %v792
    %v1025 = vpack.c.b16 %v797, %v793
    %v1026 = vpack.c.b16 %v802, %v798
    %v1027 = vpack.c.b16 %v803, %v799
    %v1028 = vpack.c.b16 %v804, %v800
    %v1029 = vpack.c.b16 %v805, %v801
    %v1030 = vpack.c.b16 %v810, %v806
    %v1031 = vpack.c.b16 %v811, %v807
    %v1032 = vpack.c.b16 %v812, %v808
    %v1033 = vpack.c.b16 %v813, %v809
    %v1034 = vpack.c.b16 %v818, %v814
    %v1035 = vpack.c.b16 %v819, %v815
    %v1036 = vpack.c.b16 %v820, %v816
    %v1037 = vpack.c.b16 %v821, %v817
    %v1038 = vpack.c.b16 %v826, %v822
    %v1039 = vpack.c.b16 %v827, %v823
    %v1040 = vpack.c.b16 %v828, %v824
    %v1041 = vpack.c.b16 %v829, %v825
    %v1042 = vpack.c.b16 %v834, %v830
    %v1043 = vpack.c.b16 %v835, %v831
    %v1044 = vpack.c.b16 %v836, %v832
    %v1045 = vpack.c.b16 %v837, %v833
    %v1046 = vpack.c.b16 %v842, %v838
    %v1047 = vpack.c.b16 %v843, %v839
    %v1048 = vpack.c.b16 %v844, %v840
    %v1049 = vpack.c.b16 %v845, %v841
    %v1050 = vpack.c.b16 %v850, %v846
    %v1051 = vpack.c.b16 %v851, %v847
    %v1052 = vpack.c.b16 %v852, %v848
    %v1053 = vpack.c.b16 %v853, %v849
    %v1054 = vpack.c.b16 %v858, %v854
    %v1055 = vpack.c.b16 %v859, %v855
    %v1056 = vpack.c.b16 %v860, %v856
    %v1057 = vpack.c.b16 %v861, %v857
    %vm1254 = vcmask 130048
    %v1256 = vsel %vm1254, %v267, 0
    %1258 = vmatpush.bf16.msra.mxu0 %v890
    %1259 = vmatpush.bf16.msra.mxu0 %v886
    %1260 = vmatpush.bf16.msra.mxu0 %v882
    %1261 = vmatpush.bf16.msra.mxu0 %v878
    %1262 = vmatpush.bf16.msra.mxu0 %v874
    %1263 = vmatpush.bf16.msra.mxu0 %v870
    %1264 = vmatpush.bf16.msra.mxu0 %v866
    %1265 = vmatpush.bf16.msra.mxu0 %v862
    %1266 = vmatmul.bf16.gmra.mxu0 %v261
    %v1267 = vpop.f32.mrf.mxu0
    %v1268 = vadd.f32 %v242, %v1267
    %v1269 = vpop.f32.mrf.mxu0
    %1270 = vdwg.mxu0
    %1271 = vmatpush.bf16.msra.mxu0 %v922
    %1272 = vmatpush.bf16.msra.mxu0 %v918
    %1273 = vmatpush.bf16.msra.mxu0 %v914
    %1274 = vmatpush.bf16.msra.mxu0 %v910
    %1275 = vmatpush.bf16.msra.mxu0 %v906
    %1276 = vmatpush.bf16.msra.mxu0 %v902
    %1277 = vmatpush.bf16.msra.mxu0 %v898
    %1278 = vmatpush.bf16.msra.mxu0 %v894
    %1279 = vmatmul.bf16.gmra.mxu0 %v262
    %v1280 = vpop.f32.mrf.mxu0
    %v1281 = vadd.f32 %v1268, %v1280
    %v1282 = vpop.f32.mrf.mxu0
    %1283 = vdwg.mxu0
    %1284 = vmatpush.bf16.msra.mxu0 %v954
    %1285 = vmatpush.bf16.msra.mxu0 %v950
    %1286 = vmatpush.bf16.msra.mxu0 %v946
    %1287 = vmatpush.bf16.msra.mxu0 %v942
    %1288 = vmatpush.bf16.msra.mxu0 %v938
    %1289 = vmatpush.bf16.msra.mxu0 %v934
    %1290 = vmatpush.bf16.msra.mxu0 %v930
    %1291 = vmatpush.bf16.msra.mxu0 %v926
    %1292 = vmatmul.bf16.gmra.mxu0 %v263
    %v1293 = vpop.f32.mrf.mxu0
    %v1294 = vadd.f32 %v1281, %v1293
    %v1295 = vpop.f32.mrf.mxu0
    %1296 = vdwg.mxu0
    %1297 = vmatpush.bf16.msra.mxu0 %v986
    %1298 = vmatpush.bf16.msra.mxu0 %v982
    %1299 = vmatpush.bf16.msra.mxu0 %v978
    %1300 = vmatpush.bf16.msra.mxu0 %v974
    %1301 = vmatpush.bf16.msra.mxu0 %v970
    %1302 = vmatpush.bf16.msra.mxu0 %v966
    %1303 = vmatpush.bf16.msra.mxu0 %v962
    %1304 = vmatpush.bf16.msra.mxu0 %v958
    %1305 = vmatmul.bf16.gmra.mxu0 %v264
    %v1306 = vpop.f32.mrf.mxu0
    %v1307 = vadd.f32 %v1294, %v1306
    %v1308 = vpop.f32.mrf.mxu0
    %1309 = vdwg.mxu0
    %1310 = vmatpush.bf16.msra.mxu0 %v1018
    %1311 = vmatpush.bf16.msra.mxu0 %v1014
    %1312 = vmatpush.bf16.msra.mxu0 %v1010
    %1313 = vmatpush.bf16.msra.mxu0 %v1006
    %1314 = vmatpush.bf16.msra.mxu0 %v1002
    %1315 = vmatpush.bf16.msra.mxu0 %v998
    %1316 = vmatpush.bf16.msra.mxu0 %v994
    %1317 = vmatpush.bf16.msra.mxu0 %v990
    %1318 = vmatmul.bf16.gmra.mxu0 %v265
    %v1319 = vpop.f32.mrf.mxu0
    %v1320 = vadd.f32 %v1307, %v1319
    %v1321 = vpop.f32.mrf.mxu0
    %1322 = vdwg.mxu0
    %1323 = vmatpush.bf16.msra.mxu0 %v1050
    %1324 = vmatpush.bf16.msra.mxu0 %v1046
    %1325 = vmatpush.bf16.msra.mxu0 %v1042
    %1326 = vmatpush.bf16.msra.mxu0 %v1038
    %1327 = vmatpush.bf16.msra.mxu0 %v1034
    %1328 = vmatpush.bf16.msra.mxu0 %v1030
    %1329 = vmatpush.bf16.msra.mxu0 %v1026
    %1330 = vmatpush.bf16.msra.mxu0 %v1022
    %1331 = vmatmul.bf16.gmra.mxu0 %v266
    %v1332 = vpop.f32.mrf.mxu0
    %v1333 = vadd.f32 %v1320, %v1332
    %v1334 = vpop.f32.mrf.mxu0
    %1335 = vdwg.mxu0
    %1336 = vmatpush.bf16.msra.mxu0 0
    %1337 = vmatpush.bf16.msra.mxu0 0
    %1338 = vmatpush.bf16.msra.mxu0 0
    %1339 = vmatpush.bf16.msra.mxu0 0
    %1340 = vmatpush.bf16.msra.mxu0 0
    %1341 = vmatpush.bf16.msra.mxu0 0
    %1342 = vmatpush.bf16.msra.mxu0 0
    %1343 = vmatpush.bf16.msra.mxu0 %v1054
    %1344 = vmatmul.bf16.gmra.mxu0 %v1256
    %v1345 = vpop.f32.mrf.mxu0
    %v1346 = vadd.f32 %v1333, %v1345
    %v1347 = vpop.f32.mrf.mxu0
    %1348 = vdwg.mxu0
    %1349 = vmatpush.bf16.msra.mxu0 %v891
    %1350 = vmatpush.bf16.msra.mxu0 %v887
    %1351 = vmatpush.bf16.msra.mxu0 %v883
    %1352 = vmatpush.bf16.msra.mxu0 %v879
    %1353 = vmatpush.bf16.msra.mxu0 %v875
    %1354 = vmatpush.bf16.msra.mxu0 %v871
    %1355 = vmatpush.bf16.msra.mxu0 %v867
    %1356 = vmatpush.bf16.msra.mxu0 %v863
    %1357 = vmatmul.bf16.gmra.mxu0 %v261
    %v1358 = vpop.f32.mrf.mxu0
    %v1359 = vadd.f32 %v243, %v1358
    %v1360 = vpop.f32.mrf.mxu0
    %1361 = vdwg.mxu0
    %1362 = vmatpush.bf16.msra.mxu0 %v923
    %1363 = vmatpush.bf16.msra.mxu0 %v919
    %1364 = vmatpush.bf16.msra.mxu0 %v915
    %1365 = vmatpush.bf16.msra.mxu0 %v911
    %1366 = vmatpush.bf16.msra.mxu0 %v907
    %1367 = vmatpush.bf16.msra.mxu0 %v903
    %1368 = vmatpush.bf16.msra.mxu0 %v899
    %1369 = vmatpush.bf16.msra.mxu0 %v895
    %1370 = vmatmul.bf16.gmra.mxu0 %v262
    %v1371 = vpop.f32.mrf.mxu0
    %v1372 = vadd.f32 %v1359, %v1371
    %v1373 = vpop.f32.mrf.mxu0
    %1374 = vdwg.mxu0
    %1375 = vmatpush.bf16.msra.mxu0 %v955
    %1376 = vmatpush.bf16.msra.mxu0 %v951
    %1377 = vmatpush.bf16.msra.mxu0 %v947
    %1378 = vmatpush.bf16.msra.mxu0 %v943
    %1379 = vmatpush.bf16.msra.mxu0 %v939
    %1380 = vmatpush.bf16.msra.mxu0 %v935
    %1381 = vmatpush.bf16.msra.mxu0 %v931
    %1382 = vmatpush.bf16.msra.mxu0 %v927
    %1383 = vmatmul.bf16.gmra.mxu0 %v263
    %v1384 = vpop.f32.mrf.mxu0
    %v1385 = vadd.f32 %v1372, %v1384
    %v1386 = vpop.f32.mrf.mxu0
    %1387 = vdwg.mxu0
    %1388 = vmatpush.bf16.msra.mxu0 %v987
    %1389 = vmatpush.bf16.msra.mxu0 %v983
    %1390 = vmatpush.bf16.msra.mxu0 %v979
    %1391 = vmatpush.bf16.msra.mxu0 %v975
    %1392 = vmatpush.bf16.msra.mxu0 %v971
    %1393 = vmatpush.bf16.msra.mxu0 %v967
    %1394 = vmatpush.bf16.msra.mxu0 %v963
    %1395 = vmatpush.bf16.msra.mxu0 %v959
    %1396 = vmatmul.bf16.gmra.mxu0 %v264
    %v1397 = vpop.f32.mrf.mxu0
    %v1398 = vadd.f32 %v1385, %v1397
    %v1399 = vpop.f32.mrf.mxu0
    %1400 = vdwg.mxu0
    %1401 = vmatpush.bf16.msra.mxu0 %v1019
    %1402 = vmatpush.bf16.msra.mxu0 %v1015
    %1403 = vmatpush.bf16.msra.mxu0 %v1011
    %1404 = vmatpush.bf16.msra.mxu0 %v1007
    %1405 = vmatpush.bf16.msra.mxu0 %v1003
    %1406 = vmatpush.bf16.msra.mxu0 %v999
    %1407 = vmatpush.bf16.msra.mxu0 %v995
    %1408 = vmatpush.bf16.msra.mxu0 %v991
    %1409 = vmatmul.bf16.gmra.mxu0 %v265
    %v1410 = vpop.f32.mrf.mxu0
    %v1411 = vadd.f32 %v1398, %v1410
    %v1412 = vpop.f32.mrf.mxu0
    %1413 = vdwg.mxu0
    %1414 = vmatpush.bf16.msra.mxu0 %v1051
    %1415 = vmatpush.bf16.msra.mxu0 %v1047
    %1416 = vmatpush.bf16.msra.mxu0 %v1043
    %1417 = vmatpush.bf16.msra.mxu0 %v1039
    %1418 = vmatpush.bf16.msra.mxu0 %v1035
    %1419 = vmatpush.bf16.msra.mxu0 %v1031
    %1420 = vmatpush.bf16.msra.mxu0 %v1027
    %1421 = vmatpush.bf16.msra.mxu0 %v1023
    %1422 = vmatmul.bf16.gmra.mxu0 %v266
    %v1423 = vpop.f32.mrf.mxu0
    %v1424 = vadd.f32 %v1411, %v1423
    %v1425 = vpop.f32.mrf.mxu0
    %1426 = vdwg.mxu0
    %1427 = vmatpush.bf16.msra.mxu0 0
    %1428 = vmatpush.bf16.msra.mxu0 0
    %1429 = vmatpush.bf16.msra.mxu0 0
    %1430 = vmatpush.bf16.msra.mxu0 0
    %1431 = vmatpush.bf16.msra.mxu0 0
    %1432 = vmatpush.bf16.msra.mxu0 0
    %1433 = vmatpush.bf16.msra.mxu0 0
    %1434 = vmatpush.bf16.msra.mxu0 %v1055
    %1435 = vmatmul.bf16.gmra.mxu0 %v1256
    %v1436 = vpop.f32.mrf.mxu0
    %v1437 = vadd.f32 %v1424, %v1436
    %v1438 = vpop.f32.mrf.mxu0
    %1439 = vdwg.mxu0
    %1440 = vmatpush.bf16.msra.mxu0 %v892
    %1441 = vmatpush.bf16.msra.mxu0 %v888
    %1442 = vmatpush.bf16.msra.mxu0 %v884
    %1443 = vmatpush.bf16.msra.mxu0 %v880
    %1444 = vmatpush.bf16.msra.mxu0 %v876
    %1445 = vmatpush.bf16.msra.mxu0 %v872
    %1446 = vmatpush.bf16.msra.mxu0 %v868
    %1447 = vmatpush.bf16.msra.mxu0 %v864
    %1448 = vmatmul.bf16.gmra.mxu0 %v261
    %v1449 = vpop.f32.mrf.mxu0
    %v1450 = vadd.f32 %v244, %v1449
    %v1451 = vpop.f32.mrf.mxu0
    %1452 = vdwg.mxu0
    %1453 = vmatpush.bf16.msra.mxu0 %v924
    %1454 = vmatpush.bf16.msra.mxu0 %v920
    %1455 = vmatpush.bf16.msra.mxu0 %v916
    %1456 = vmatpush.bf16.msra.mxu0 %v912
    %1457 = vmatpush.bf16.msra.mxu0 %v908
    %1458 = vmatpush.bf16.msra.mxu0 %v904
    %1459 = vmatpush.bf16.msra.mxu0 %v900
    %1460 = vmatpush.bf16.msra.mxu0 %v896
    %1461 = vmatmul.bf16.gmra.mxu0 %v262
    %v1462 = vpop.f32.mrf.mxu0
    %v1463 = vadd.f32 %v1450, %v1462
    %v1464 = vpop.f32.mrf.mxu0
    %1465 = vdwg.mxu0
    %1466 = vmatpush.bf16.msra.mxu0 %v956
    %1467 = vmatpush.bf16.msra.mxu0 %v952
    %1468 = vmatpush.bf16.msra.mxu0 %v948
    %1469 = vmatpush.bf16.msra.mxu0 %v944
    %1470 = vmatpush.bf16.msra.mxu0 %v940
    %1471 = vmatpush.bf16.msra.mxu0 %v936
    %1472 = vmatpush.bf16.msra.mxu0 %v932
    %1473 = vmatpush.bf16.msra.mxu0 %v928
    %1474 = vmatmul.bf16.gmra.mxu0 %v263
    %v1475 = vpop.f32.mrf.mxu0
    %v1476 = vadd.f32 %v1463, %v1475
    %v1477 = vpop.f32.mrf.mxu0
    %1478 = vdwg.mxu0
    %1479 = vmatpush.bf16.msra.mxu0 %v988
    %1480 = vmatpush.bf16.msra.mxu0 %v984
    %1481 = vmatpush.bf16.msra.mxu0 %v980
    %1482 = vmatpush.bf16.msra.mxu0 %v976
    %1483 = vmatpush.bf16.msra.mxu0 %v972
    %1484 = vmatpush.bf16.msra.mxu0 %v968
    %1485 = vmatpush.bf16.msra.mxu0 %v964
    %1486 = vmatpush.bf16.msra.mxu0 %v960
    %1487 = vmatmul.bf16.gmra.mxu0 %v264
    %v1488 = vpop.f32.mrf.mxu0
    %v1489 = vadd.f32 %v1476, %v1488
    %v1490 = vpop.f32.mrf.mxu0
    %1491 = vdwg.mxu0
    %1492 = vmatpush.bf16.msra.mxu0 %v1020
    %1493 = vmatpush.bf16.msra.mxu0 %v1016
    %1494 = vmatpush.bf16.msra.mxu0 %v1012
    %1495 = vmatpush.bf16.msra.mxu0 %v1008
    %1496 = vmatpush.bf16.msra.mxu0 %v1004
    %1497 = vmatpush.bf16.msra.mxu0 %v1000
    %1498 = vmatpush.bf16.msra.mxu0 %v996
    %1499 = vmatpush.bf16.msra.mxu0 %v992
    %1500 = vmatmul.bf16.gmra.mxu0 %v265
    %v1501 = vpop.f32.mrf.mxu0
    %v1502 = vadd.f32 %v1489, %v1501
    %v1503 = vpop.f32.mrf.mxu0
    %1504 = vdwg.mxu0
    %1505 = vmatpush.bf16.msra.mxu0 %v1052
    %1506 = vmatpush.bf16.msra.mxu0 %v1048
    %1507 = vmatpush.bf16.msra.mxu0 %v1044
    %1508 = vmatpush.bf16.msra.mxu0 %v1040
    %1509 = vmatpush.bf16.msra.mxu0 %v1036
    %1510 = vmatpush.bf16.msra.mxu0 %v1032
    %1511 = vmatpush.bf16.msra.mxu0 %v1028
    %1512 = vmatpush.bf16.msra.mxu0 %v1024
    %1513 = vmatmul.bf16.gmra.mxu0 %v266
    %v1514 = vpop.f32.mrf.mxu0
    %v1515 = vadd.f32 %v1502, %v1514
    %v1516 = vpop.f32.mrf.mxu0
    %1517 = vdwg.mxu0
    %1518 = vmatpush.bf16.msra.mxu0 0
    %1519 = vmatpush.bf16.msra.mxu0 0
    %1520 = vmatpush.bf16.msra.mxu0 0
    %1521 = vmatpush.bf16.msra.mxu0 0
    %1522 = vmatpush.bf16.msra.mxu0 0
    %1523 = vmatpush.bf16.msra.mxu0 0
    %1524 = vmatpush.bf16.msra.mxu0 0
    %1525 = vmatpush.bf16.msra.mxu0 %v1056
    %1526 = vmatmul.bf16.gmra.mxu0 %v1256
    %v1527 = vpop.f32.mrf.mxu0
    %v1528 = vadd.f32 %v1515, %v1527
    %v1529 = vpop.f32.mrf.mxu0
    %1530 = vdwg.mxu0
    %1531 = vmatpush.bf16.msra.mxu0 %v893
    %1532 = vmatpush.bf16.msra.mxu0 %v889
    %1533 = vmatpush.bf16.msra.mxu0 %v885
    %1534 = vmatpush.bf16.msra.mxu0 %v881
    %1535 = vmatpush.bf16.msra.mxu0 %v877
    %1536 = vmatpush.bf16.msra.mxu0 %v873
    %1537 = vmatpush.bf16.msra.mxu0 %v869
    %1538 = vmatpush.bf16.msra.mxu0 %v865
    %1539 = vmatmul.bf16.gmra.mxu0 %v261
    %v1540 = vpop.f32.mrf.mxu0
    %v1541 = vadd.f32 %v245, %v1540
    %v1542 = vpop.f32.mrf.mxu0
    %1543 = vdwg.mxu0
    %1544 = vmatpush.bf16.msra.mxu0 %v925
    %1545 = vmatpush.bf16.msra.mxu0 %v921
    %1546 = vmatpush.bf16.msra.mxu0 %v917
    %1547 = vmatpush.bf16.msra.mxu0 %v913
    %1548 = vmatpush.bf16.msra.mxu0 %v909
    %1549 = vmatpush.bf16.msra.mxu0 %v905
    %1550 = vmatpush.bf16.msra.mxu0 %v901
    %1551 = vmatpush.bf16.msra.mxu0 %v897
    %1552 = vmatmul.bf16.gmra.mxu0 %v262
    %v1553 = vpop.f32.mrf.mxu0
    %v1554 = vadd.f32 %v1541, %v1553
    %v1555 = vpop.f32.mrf.mxu0
    %1556 = vdwg.mxu0
    %1557 = vmatpush.bf16.msra.mxu0 %v957
    %1558 = vmatpush.bf16.msra.mxu0 %v953
    %1559 = vmatpush.bf16.msra.mxu0 %v949
    %1560 = vmatpush.bf16.msra.mxu0 %v945
    %1561 = vmatpush.bf16.msra.mxu0 %v941
    %1562 = vmatpush.bf16.msra.mxu0 %v937
    %1563 = vmatpush.bf16.msra.mxu0 %v933
    %1564 = vmatpush.bf16.msra.mxu0 %v929
    %1565 = vmatmul.bf16.gmra.mxu0 %v263
    %v1566 = vpop.f32.mrf.mxu0
    %v1567 = vadd.f32 %v1554, %v1566
    %v1568 = vpop.f32.mrf.mxu0
    %1569 = vdwg.mxu0
    %1570 = vmatpush.bf16.msra.mxu0 %v989
    %1571 = vmatpush.bf16.msra.mxu0 %v985
    %1572 = vmatpush.bf16.msra.mxu0 %v981
    %1573 = vmatpush.bf16.msra.mxu0 %v977
    %1574 = vmatpush.bf16.msra.mxu0 %v973
    %1575 = vmatpush.bf16.msra.mxu0 %v969
    %1576 = vmatpush.bf16.msra.mxu0 %v965
    %1577 = vmatpush.bf16.msra.mxu0 %v961
    %1578 = vmatmul.bf16.gmra.mxu0 %v264
    %v1579 = vpop.f32.mrf.mxu0
    %v1580 = vadd.f32 %v1567, %v1579
    %v1581 = vpop.f32.mrf.mxu0
    %1582 = vdwg.mxu0
    %1583 = vmatpush.bf16.msra.mxu0 %v1021
    %1584 = vmatpush.bf16.msra.mxu0 %v1017
    %1585 = vmatpush.bf16.msra.mxu0 %v1013
    %1586 = vmatpush.bf16.msra.mxu0 %v1009
    %1587 = vmatpush.bf16.msra.mxu0 %v1005
    %1588 = vmatpush.bf16.msra.mxu0 %v1001
    %1589 = vmatpush.bf16.msra.mxu0 %v997
    %1590 = vmatpush.bf16.msra.mxu0 %v993
    %1591 = vmatmul.bf16.gmra.mxu0 %v265
    %v1592 = vpop.f32.mrf.mxu0
    %v1593 = vadd.f32 %v1580, %v1592
    %v1594 = vpop.f32.mrf.mxu0
    %1595 = vdwg.mxu0
    %1596 = vmatpush.bf16.msra.mxu0 %v1053
    %1597 = vmatpush.bf16.msra.mxu0 %v1049
    %1598 = vmatpush.bf16.msra.mxu0 %v1045
    %1599 = vmatpush.bf16.msra.mxu0 %v1041
    %1600 = vmatpush.bf16.msra.mxu0 %v1037
    %1601 = vmatpush.bf16.msra.mxu0 %v1033
    %1602 = vmatpush.bf16.msra.mxu0 %v1029
    %1603 = vmatpush.bf16.msra.mxu0 %v1025
    %1604 = vmatmul.bf16.gmra.mxu0 %v266
    %v1605 = vpop.f32.mrf.mxu0
    %v1606 = vadd.f32 %v1593, %v1605
    %v1607 = vpop.f32.mrf.mxu0
    %1608 = vdwg.mxu0
    %1609 = vmatpush.bf16.msra.mxu0 0
    %1610 = vmatpush.bf16.msra.mxu0 0
    %1611 = vmatpush.bf16.msra.mxu0 0
    %1612 = vmatpush.bf16.msra.mxu0 0
    %1613 = vmatpush.bf16.msra.mxu0 0
    %1614 = vmatpush.bf16.msra.mxu0 0
    %1615 = vmatpush.bf16.msra.mxu0 0
    %1616 = vmatpush.bf16.msra.mxu0 %v1057
    %1617 = vmatmul.bf16.gmra.mxu0 %v1256
    %v1618 = vpop.f32.mrf.mxu0
    %v1619 = vadd.f32 %v1606, %v1618
    %v1620 = vpop.f32.mrf.mxu0
    %1621 = vdwg.mxu0
    %v1622 = vmax.f32 %v1346, 0.0
    %v1623 = vmax.f32 %v1437, 0.0
    %v1624 = vmax.f32 %v1528, 0.0
    %v1625 = vmax.f32 %v1619, 0.0
    %v1626 = vpack.c.bf16 %v1622, %v1622
    %v1627 = vpack.c.bf16 %v1623, %v1623
    %v1628 = vpack.c.bf16 %v1624, %v1624
    %v1629 = vpack.c.bf16 %v1625, %v1625
    %v1630 = vld [vmem:[%s4] sm:$0xf]
    %v1631 = vld [vmem:[%s4 + $0x4] sm:$0xf]
    %v1632 = vld [vmem:[%s4 + $0x8] sm:$0xf]
    %v1633 = vld [vmem:[%s4 + $0xc] sm:$0xf]
    %v1634 = vld [vmem:[%s4 + $0x10] sm:$0xf]
    %v1635 = vld [vmem:[%s4 + $0x14] sm:$0xf]
    %v1636 = vld [vmem:[%s4 + $0x18] sm:$0xf]
    %v1637 = vld [vmem:[%s4 + $0x1c] sm:$0xf]
    %v1638 = vld [vmem:[%s4 + $0x20] sm:$0xf]
    %v1639 = vld [vmem:[%s4 + $0x24] sm:$0xf]
    %v1640 = vld [vmem:[%s4 + $0x28] sm:$0xf]
    %v1641 = vld [vmem:[%s4 + $0x2c] sm:$0xf]
    %v1642 = vld [vmem:[%s4 + $0x30] sm:$0xf]
    %v1643 = vld [vmem:[%s4 + $0x34] sm:$0xf]
    %v1644 = vld [vmem:[%s4 + $0x38] sm:$0xf]
    %v1645 = vld [vmem:[%s4 + $0x3c] sm:$0xf]
    %v1646 = vld [vmem:[%s4 + $0x40] sm:$0xf]
    %v1647 = vld [vmem:[%s4 + $0x44] sm:$0xf]
    %v1648 = vld [vmem:[%s4 + $0x48] sm:$0xf]
    %v1649 = vld [vmem:[%s4 + $0x4c] sm:$0xf]
    %v1650 = vld [vmem:[%s4 + $0x50] sm:$0xf]
    %v1651 = vld [vmem:[%s4 + $0x54] sm:$0xf]
    %v1652 = vld [vmem:[%s4 + $0x58] sm:$0xf]
    %v1653 = vld [vmem:[%s4 + $0x5c] sm:$0xf]
    %v1654 = vld [vmem:[%s4 + $0x60] sm:$0xf]
    %v1655 = vld [vmem:[%s4 + $0x64] sm:$0xf]
    %v1656 = vld [vmem:[%s4 + $0x68] sm:$0xf]
    %v1657 = vld [vmem:[%s4 + $0x6c] sm:$0xf]
    %v1658 = vld [vmem:[%s4 + $0x70] sm:$0xf]
    %v1659 = vld [vmem:[%s4 + $0x74] sm:$0xf]
    %v1660 = vld [vmem:[%s4 + $0x78] sm:$0xf]
    %v1661 = vld [vmem:[%s4 + $0x7c] sm:$0xf]
    %v1662 = vld [vmem:[%s4 + $0x80] sm:$0xf]
    %v1663 = vld [vmem:[%s4 + $0x84] sm:$0xf]
    %v1664 = vld [vmem:[%s4 + $0x88] sm:$0xf]
    %v1665 = vld [vmem:[%s4 + $0x8c] sm:$0xf]
    %v1666 = vld [vmem:[%s4 + $0x90] sm:$0xf]
    %v1667 = vld [vmem:[%s4 + $0x94] sm:$0xf]
    %v1668 = vld [vmem:[%s4 + $0x98] sm:$0xf]
    %v1669 = vld [vmem:[%s4 + $0x9c] sm:$0xf]
    %v1670 = vld [vmem:[%s4 + $0xa0] sm:$0xf]
    %v1671 = vld [vmem:[%s4 + $0xa4] sm:$0xf]
    %v1672 = vld [vmem:[%s4 + $0xa8] sm:$0xf]
    %v1673 = vld [vmem:[%s4 + $0xac] sm:$0xf]
    %v1674 = vld [vmem:[%s4 + $0xb0] sm:$0xf]
    %v1675 = vld [vmem:[%s4 + $0xb4] sm:$0xf]
    %v1676 = vld [vmem:[%s4 + $0xb8] sm:$0xf]
    %v1677 = vld [vmem:[%s4 + $0xbc] sm:$0xf]
    %v1678 = vld [vmem:[%s4 + $0xc0] sm:$0xf]
    %v1679 = vld [vmem:[%s4 + $0xc4] sm:$0xf]
    %v1680 = vld [vmem:[%s5] sm:$0x1]
    %v1682 = vperm.slane %v1680, 0
    %v1734 = vunpack.c.l.b16 %v1630
    %v1735 = vunpack.c.l.b16 %v1631
    %v1736 = vunpack.c.l.b16 %v1632
    %v1737 = vunpack.c.l.b16 %v1633
    %v1738 = vunpack.c.l.b16 %v1634
    %v1739 = vunpack.c.l.b16 %v1635
    %v1740 = vunpack.c.l.b16 %v1636
    %v1741 = vunpack.c.l.b16 %v1637
    %v1742 = vunpack.c.l.b16 %v1638
    %v1743 = vunpack.c.l.b16 %v1639
    %v1744 = vunpack.c.l.b16 %v1640
    %v1745 = vunpack.c.l.b16 %v1641
    %v1746 = vunpack.c.l.b16 %v1642
    %v1747 = vunpack.c.l.b16 %v1643
    %v1748 = vunpack.c.l.b16 %v1644
    %v1749 = vunpack.c.l.b16 %v1645
    %v1750 = vunpack.c.l.b16 %v1646
    %v1751 = vunpack.c.l.b16 %v1647
    %v1752 = vunpack.c.l.b16 %v1648
    %v1753 = vunpack.c.l.b16 %v1649
    %v1754 = vunpack.c.l.b16 %v1650
    %v1755 = vunpack.c.l.b16 %v1651
    %v1756 = vunpack.c.l.b16 %v1652
    %v1757 = vunpack.c.l.b16 %v1653
    %v1758 = vunpack.c.l.b16 %v1654
    %v1759 = vunpack.c.l.b16 %v1655
    %v1760 = vunpack.c.l.b16 %v1656
    %v1761 = vunpack.c.l.b16 %v1657
    %v1762 = vunpack.c.l.b16 %v1658
    %v1763 = vunpack.c.l.b16 %v1659
    %v1764 = vunpack.c.l.b16 %v1660
    %v1765 = vunpack.c.l.b16 %v1661
    %v1766 = vunpack.c.l.b16 %v1662
    %v1767 = vunpack.c.l.b16 %v1663
    %v1768 = vunpack.c.l.b16 %v1664
    %v1769 = vunpack.c.l.b16 %v1665
    %v1770 = vunpack.c.l.b16 %v1666
    %v1771 = vunpack.c.l.b16 %v1667
    %v1772 = vunpack.c.l.b16 %v1668
    %v1773 = vunpack.c.l.b16 %v1669
    %v1774 = vunpack.c.l.b16 %v1670
    %v1775 = vunpack.c.l.b16 %v1671
    %v1776 = vunpack.c.l.b16 %v1672
    %v1777 = vunpack.c.l.b16 %v1673
    %v1778 = vunpack.c.l.b16 %v1674
    %v1779 = vunpack.c.l.b16 %v1675
    %v1780 = vunpack.c.l.b16 %v1676
    %v1781 = vunpack.c.l.b16 %v1677
    %v1782 = vunpack.c.l.b16 %v1678
    %v1783 = vunpack.c.l.b16 %v1679
    %v1784 = vpack.c.b16 %v1735, %v1734
    %v1785 = vpack.c.b16 %v1737, %v1736
    %v1786 = vpack.c.b16 %v1739, %v1738
    %v1787 = vpack.c.b16 %v1741, %v1740
    %v1788 = vpack.c.b16 %v1743, %v1742
    %v1789 = vpack.c.b16 %v1745, %v1744
    %v1790 = vpack.c.b16 %v1747, %v1746
    %v1791 = vpack.c.b16 %v1749, %v1748
    %v1792 = vpack.c.b16 %v1751, %v1750
    %v1793 = vpack.c.b16 %v1753, %v1752
    %v1794 = vpack.c.b16 %v1755, %v1754
    %v1795 = vpack.c.b16 %v1757, %v1756
    %v1796 = vpack.c.b16 %v1759, %v1758
    %v1797 = vpack.c.b16 %v1761, %v1760
    %v1798 = vpack.c.b16 %v1763, %v1762
    %v1799 = vpack.c.b16 %v1765, %v1764
    %v1800 = vpack.c.b16 %v1767, %v1766
    %v1801 = vpack.c.b16 %v1769, %v1768
    %v1802 = vpack.c.b16 %v1771, %v1770
    %v1803 = vpack.c.b16 %v1773, %v1772
    %v1804 = vpack.c.b16 %v1775, %v1774
    %v1805 = vpack.c.b16 %v1777, %v1776
    %v1806 = vpack.c.b16 %v1779, %v1778
    %v1807 = vpack.c.b16 %v1781, %v1780
    %v1808 = vpack.c.b16 %v1783, %v1782
    %v1835 = vsel %vm1254, %v1629, 0
    %1837 = vmatpush.bf16.msra.mxu0 %v1791
    %1838 = vmatpush.bf16.msra.mxu0 %v1790
    %1839 = vmatpush.bf16.msra.mxu0 %v1789
    %1840 = vmatpush.bf16.msra.mxu0 %v1788
    %1841 = vmatpush.bf16.msra.mxu0 %v1787
    %1842 = vmatpush.bf16.msra.mxu0 %v1786
    %1843 = vmatpush.bf16.msra.mxu0 %v1785
    %1844 = vmatpush.bf16.msra.mxu0 %v1784
    %1845 = vmatmul.bf16.gmra.mxu0 %v1626
    %v1846 = vpop.f32.mrf.mxu0
    %v1847 = vadd.f32 %v1682, %v1846
    %v1848 = vpop.f32.mrf.mxu0
    %1849 = vdwg.mxu0
    %1850 = vmatpush.bf16.msra.mxu0 %v1799
    %1851 = vmatpush.bf16.msra.mxu0 %v1798
    %1852 = vmatpush.bf16.msra.mxu0 %v1797
    %1853 = vmatpush.bf16.msra.mxu0 %v1796
    %1854 = vmatpush.bf16.msra.mxu0 %v1795
    %1855 = vmatpush.bf16.msra.mxu0 %v1794
    %1856 = vmatpush.bf16.msra.mxu0 %v1793
    %1857 = vmatpush.bf16.msra.mxu0 %v1792
    %1858 = vmatmul.bf16.gmra.mxu0 %v1627
    %v1859 = vpop.f32.mrf.mxu0
    %v1860 = vadd.f32 %v1847, %v1859
    %v1861 = vpop.f32.mrf.mxu0
    %1862 = vdwg.mxu0
    %1863 = vmatpush.bf16.msra.mxu0 %v1807
    %1864 = vmatpush.bf16.msra.mxu0 %v1806
    %1865 = vmatpush.bf16.msra.mxu0 %v1805
    %1866 = vmatpush.bf16.msra.mxu0 %v1804
    %1867 = vmatpush.bf16.msra.mxu0 %v1803
    %1868 = vmatpush.bf16.msra.mxu0 %v1802
    %1869 = vmatpush.bf16.msra.mxu0 %v1801
    %1870 = vmatpush.bf16.msra.mxu0 %v1800
    %1871 = vmatmul.bf16.gmra.mxu0 %v1628
    %v1872 = vpop.f32.mrf.mxu0
    %v1873 = vadd.f32 %v1860, %v1872
    %v1874 = vpop.f32.mrf.mxu0
    %1875 = vdwg.mxu0
    %1876 = vmatpush.bf16.msra.mxu0 0
    %1877 = vmatpush.bf16.msra.mxu0 0
    %1878 = vmatpush.bf16.msra.mxu0 0
    %1879 = vmatpush.bf16.msra.mxu0 0
    %1880 = vmatpush.bf16.msra.mxu0 0
    %1881 = vmatpush.bf16.msra.mxu0 0
    %1882 = vmatpush.bf16.msra.mxu0 0
    %1883 = vmatpush.bf16.msra.mxu0 %v1808
    %1884 = vmatmul.bf16.gmra.mxu0 %v1835
    %v1885 = vpop.f32.mrf.mxu0
    %v1886 = vadd.f32 %v1873, %v1885
    %v1887 = vpop.f32.mrf.mxu0
    %1888 = vdwg.mxu0
    %v1889 = vld [vmem:[%s1] sm:$0xff]
    %v1890 = vmul.f32 %v1886, 0.5
    %v1891 = vmul.f32 %v1890, 1.442695
    %v1892 = vpow.pop %v1891
    %1894 = vrot.lane.b32.xlu0 %v1892, 108
    %v1895 = vpop.permute.xlu0 %1894
    %v1897 = vmul.f32 %v1889, %v1895
    %v1898 = vadd.f32 %v1886, %v1897
    %v1899 = vpack.c.bf16 %v1898, %v1898
    %v1900 = vld [vmem:[%s6] sm:$0xff]
    %v1901 = vld [vmem:[%s6 + $0x8] sm:$0xff]
    %v1902 = vld [vmem:[%s6 + $0x10] sm:$0xff]
    %v1903 = vld [vmem:[%s6 + $0x18] sm:$0xff]
    %v1904 = vld [vmem:[%s6 + $0x20] sm:$0x33]
    %v1905 = vld [vmem:[%s6 + $0x28] sm:$0x33]
    %v1906 = vld [vmem:[%s7] sm:$0xf]
    %v1908 = vperm.slane %v1906, 0
    %v1909 = vperm.slane %v1906, 1
    %v1910 = vperm.slane %v1906, 2
    %v1911 = vperm.slane %v1906, 3
    %v1922 = vunpack.c.l.b16 %v1900
    %v1923 = vunpack.c.h.b16 %v1900
    %v1924 = vunpack.c.l.b16 %v1901
    %v1925 = vunpack.c.h.b16 %v1901
    %v1926 = vunpack.c.l.b16 %v1902
    %v1927 = vunpack.c.h.b16 %v1902
    %v1928 = vunpack.c.l.b16 %v1903
    %v1929 = vunpack.c.h.b16 %v1903
    %v1930 = vunpack.c.l.b16 %v1904
    %v1931 = vunpack.c.h.b16 %v1904
    %v1932 = vunpack.c.l.b16 %v1905
    %v1933 = vunpack.c.h.b16 %v1905
    %v1934 = vpack.c.b16 %v1926, %v1922
    %v1935 = vpack.c.b16 %v1927, %v1923
    %v1936 = vpack.c.b16 %v1928, %v1924
    %v1937 = vpack.c.b16 %v1929, %v1925
    %v1938 = vpack.c.b16 %v1930, %v1930
    %v1939 = vpack.c.b16 %v1931, %v1931
    %v1940 = vpack.c.b16 %v1932, %v1932
    %v1941 = vpack.c.b16 %v1933, %v1933
    %vm1946 = vcmask 162816
    %v1948 = vsel %vm1946, %v1899, 0
    %vm1950 = vcmask 1041408
    %v1952 = vsel %vm1950, %v1938, 0
    %v1955 = vsel %vm1950, %v1939, 0
    %v1958 = vsel %vm1950, %v1940, 0
    %v1961 = vsel %vm1950, %v1941, 0
    %1963 = vmatpush.bf16.msra.mxu0 0
    %1964 = vmatpush.bf16.msra.mxu0 0
    %1965 = vmatpush.bf16.msra.mxu0 0
    %1966 = vmatpush.bf16.msra.mxu0 0
    %1967 = vmatpush.bf16.msra.mxu0 0
    %1968 = vmatpush.bf16.msra.mxu0 0
    %1969 = vmatpush.bf16.msra.mxu0 %v1952
    %1970 = vmatpush.bf16.msra.mxu0 %v1934
    %1971 = vmatmul.bf16.gmra.mxu0 %v1948
    %v1972 = vpop.f32.mrf.mxu0
    %v1973 = vadd.f32 %v1908, %v1972
    %v1974 = vpop.f32.mrf.mxu0
    %1975 = vdwg.mxu0
    %1976 = vmatpush.bf16.msra.mxu0 0
    %1977 = vmatpush.bf16.msra.mxu0 0
    %1978 = vmatpush.bf16.msra.mxu0 0
    %1979 = vmatpush.bf16.msra.mxu0 0
    %1980 = vmatpush.bf16.msra.mxu0 0
    %1981 = vmatpush.bf16.msra.mxu0 0
    %1982 = vmatpush.bf16.msra.mxu0 %v1955
    %1983 = vmatpush.bf16.msra.mxu0 %v1935
    %1984 = vmatmul.bf16.gmra.mxu0 %v1948
    %v1985 = vpop.f32.mrf.mxu0
    %v1986 = vadd.f32 %v1909, %v1985
    %v1987 = vpop.f32.mrf.mxu0
    %1988 = vdwg.mxu0
    %1989 = vmatpush.bf16.msra.mxu0 0
    %1990 = vmatpush.bf16.msra.mxu0 0
    %1991 = vmatpush.bf16.msra.mxu0 0
    %1992 = vmatpush.bf16.msra.mxu0 0
    %1993 = vmatpush.bf16.msra.mxu0 0
    %1994 = vmatpush.bf16.msra.mxu0 0
    %1995 = vmatpush.bf16.msra.mxu0 %v1958
    %1996 = vmatpush.bf16.msra.mxu0 %v1936
    %1997 = vmatmul.bf16.gmra.mxu0 %v1948
    %v1998 = vpop.f32.mrf.mxu0
    %v1999 = vadd.f32 %v1910, %v1998
    %v2000 = vpop.f32.mrf.mxu0
    %2001 = vdwg.mxu0
    %2002 = vmatpush.bf16.msra.mxu0 0
    %2003 = vmatpush.bf16.msra.mxu0 0
    %2004 = vmatpush.bf16.msra.mxu0 0
    %2005 = vmatpush.bf16.msra.mxu0 0
    %2006 = vmatpush.bf16.msra.mxu0 0
    %2007 = vmatpush.bf16.msra.mxu0 0
    %2008 = vmatpush.bf16.msra.mxu0 %v1961
    %2009 = vmatpush.bf16.msra.mxu0 %v1937
    %2010 = vmatmul.bf16.gmra.mxu0 %v1948
    %v2011 = vpop.f32.mrf.mxu0
    %v2012 = vadd.f32 %v1911, %v2011
    %v2013 = vpop.f32.mrf.mxu0
    %2014 = vdwg.mxu0
    %v2015 = vmax.f32 %v1973, 0.0
    %v2016 = vmax.f32 %v1986, 0.0
    %v2017 = vmax.f32 %v1999, 0.0
    %v2018 = vmax.f32 %v2012, 0.0
    %v2019 = vpack.c.bf16 %v2015, %v2015
    %v2020 = vpack.c.bf16 %v2016, %v2016
    %v2021 = vpack.c.bf16 %v2017, %v2017
    %v2022 = vpack.c.bf16 %v2018, %v2018
    %v2023 = vld [vmem:[%s8] sm:$0xff]
    %v2024 = vld [vmem:[%s8 + $0x8] sm:$0xff]
    %v2025 = vld [vmem:[%s8 + $0x10] sm:$0xff]
    %v2026 = vld [vmem:[%s8 + $0x18] sm:$0xf]
    %v2027 = vld [vmem:[%s8 + $0x1c] sm:$0xff]
    %v2028 = vld [vmem:[%s8 + $0x24] sm:$0xff]
    %v2029 = vld [vmem:[%s8 + $0x2c] sm:$0xff]
    %v2030 = vld [vmem:[%s8 + $0x34] sm:$0xf]
    %v2031 = vld [vmem:[%s8 + $0x38] sm:$0xff]
    %v2032 = vld [vmem:[%s8 + $0x40] sm:$0xff]
    %v2033 = vld [vmem:[%s8 + $0x48] sm:$0xff]
    %v2034 = vld [vmem:[%s8 + $0x50] sm:$0xf]
    %v2035 = vld [vmem:[%s8 + $0x54] sm:$0xff]
    %v2036 = vld [vmem:[%s8 + $0x5c] sm:$0xff]
    %v2037 = vld [vmem:[%s8 + $0x64] sm:$0xff]
    %v2038 = vld [vmem:[%s8 + $0x6c] sm:$0xf]
    %v2039 = vld [vmem:[%s8 + $0x70] sm:$0xff]
    %v2040 = vld [vmem:[%s8 + $0x78] sm:$0xff]
    %v2041 = vld [vmem:[%s8 + $0x80] sm:$0xff]
    %v2042 = vld [vmem:[%s8 + $0x88] sm:$0xf]
    %v2043 = vld [vmem:[%s8 + $0x8c] sm:$0xff]
    %v2044 = vld [vmem:[%s8 + $0x94] sm:$0xff]
    %v2045 = vld [vmem:[%s8 + $0x9c] sm:$0xff]
    %v2046 = vld [vmem:[%s8 + $0xa4] sm:$0xf]
    %v2047 = vld [vmem:[%s8 + $0xa8] sm:$0xff]
    %v2048 = vld [vmem:[%s8 + $0xb0] sm:$0xff]
    %v2049 = vld [vmem:[%s8 + $0xb8] sm:$0xff]
    %v2050 = vld [vmem:[%s8 + $0xc0] sm:$0xf]
    %v2051 = vld [vmem:[%s8 + $0xc4] sm:$0xff]
    %v2052 = vld [vmem:[%s8 + $0xcc] sm:$0xff]
    %v2053 = vld [vmem:[%s8 + $0xd4] sm:$0xff]
    %v2054 = vld [vmem:[%s8 + $0xdc] sm:$0xf]
    %v2055 = vld [vmem:[%s8 + $0xe0] sm:$0xff]
    %v2056 = vld [vmem:[%s8 + $0xe8] sm:$0xff]
    %v2057 = vld [vmem:[%s8 + $0xf0] sm:$0xff]
    %v2058 = vld [vmem:[%s8 + $0xf8] sm:$0xf]
    %v2059 = vld [vmem:[%s8 + $0xfc] sm:$0xff]
    %v2060 = vld [vmem:[%s8 + $0x104] sm:$0xff]
    %v2061 = vld [vmem:[%s8 + $0x10c] sm:$0xff]
    %v2062 = vld [vmem:[%s8 + $0x114] sm:$0xf]
    %v2063 = vld [vmem:[%s8 + $0x118] sm:$0xff]
    %v2064 = vld [vmem:[%s8 + $0x120] sm:$0xff]
    %v2065 = vld [vmem:[%s8 + $0x128] sm:$0xff]
    %v2066 = vld [vmem:[%s8 + $0x130] sm:$0xf]
    %v2067 = vld [vmem:[%s8 + $0x134] sm:$0xff]
    %v2068 = vld [vmem:[%s8 + $0x13c] sm:$0xff]
    %v2069 = vld [vmem:[%s8 + $0x144] sm:$0xff]
    %v2070 = vld [vmem:[%s8 + $0x14c] sm:$0xf]
    %v2071 = vld [vmem:[%s8 + $0x150] sm:$0xff]
    %v2072 = vld [vmem:[%s8 + $0x158] sm:$0xff]
    %v2073 = vld [vmem:[%s8 + $0x160] sm:$0xff]
    %v2074 = vld [vmem:[%s8 + $0x168] sm:$0xf]
    %v2075 = vld [vmem:[%s8 + $0x16c] sm:$0xff]
    %v2076 = vld [vmem:[%s8 + $0x174] sm:$0xff]
    %v2077 = vld [vmem:[%s8 + $0x17c] sm:$0xff]
    %v2078 = vld [vmem:[%s8 + $0x184] sm:$0xf]
    %v2079 = vld [vmem:[%s8 + $0x188] sm:$0xff]
    %v2080 = vld [vmem:[%s8 + $0x190] sm:$0xff]
    %v2081 = vld [vmem:[%s8 + $0x198] sm:$0xff]
    %v2082 = vld [vmem:[%s8 + $0x1a0] sm:$0xf]
    %v2083 = vld [vmem:[%s8 + $0x1a4] sm:$0xff]
    %v2084 = vld [vmem:[%s8 + $0x1ac] sm:$0xff]
    %v2085 = vld [vmem:[%s8 + $0x1b4] sm:$0xff]
    %v2086 = vld [vmem:[%s8 + $0x1bc] sm:$0xf]
    %v2087 = vld [vmem:[%s8 + $0x1c0] sm:$0xff]
    %v2088 = vld [vmem:[%s8 + $0x1c8] sm:$0xff]
    %v2089 = vld [vmem:[%s8 + $0x1d0] sm:$0xff]
    %v2090 = vld [vmem:[%s8 + $0x1d8] sm:$0xf]
    %v2091 = vld [vmem:[%s8 + $0x1dc] sm:$0xff]
    %v2092 = vld [vmem:[%s8 + $0x1e4] sm:$0xff]
    %v2093 = vld [vmem:[%s8 + $0x1ec] sm:$0xff]
    %v2094 = vld [vmem:[%s8 + $0x1f4] sm:$0xf]
    %v2095 = vld [vmem:[%s8 + $0x1f8] sm:$0xff]
    %v2096 = vld [vmem:[%s8 + $0x200] sm:$0xff]
    %v2097 = vld [vmem:[%s8 + $0x208] sm:$0xff]
    %v2098 = vld [vmem:[%s8 + $0x210] sm:$0xf]
    %v2099 = vld [vmem:[%s8 + $0x214] sm:$0xff]
    %v2100 = vld [vmem:[%s8 + $0x21c] sm:$0xff]
    %v2101 = vld [vmem:[%s8 + $0x224] sm:$0xff]
    %v2102 = vld [vmem:[%s8 + $0x22c] sm:$0xf]
    %v2103 = vld [vmem:[%s8 + $0x230] sm:$0xff]
    %v2104 = vld [vmem:[%s8 + $0x238] sm:$0xff]
    %v2105 = vld [vmem:[%s8 + $0x240] sm:$0xff]
    %v2106 = vld [vmem:[%s8 + $0x248] sm:$0xf]
    %v2107 = vld [vmem:[%s8 + $0x24c] sm:$0xff]
    %v2108 = vld [vmem:[%s8 + $0x254] sm:$0xff]
    %v2109 = vld [vmem:[%s8 + $0x25c] sm:$0xff]
    %v2110 = vld [vmem:[%s8 + $0x264] sm:$0xf]
    %v2111 = vld [vmem:[%s8 + $0x268] sm:$0xff]
    %v2112 = vld [vmem:[%s8 + $0x270] sm:$0xff]
    %v2113 = vld [vmem:[%s8 + $0x278] sm:$0xff]
    %v2114 = vld [vmem:[%s8 + $0x280] sm:$0xf]
    %v2115 = vld [vmem:[%s8 + $0x284] sm:$0xff]
    %v2116 = vld [vmem:[%s8 + $0x28c] sm:$0xff]
    %v2117 = vld [vmem:[%s8 + $0x294] sm:$0xff]
    %v2118 = vld [vmem:[%s8 + $0x29c] sm:$0xf]
    %v2119 = vld [vmem:[%s8 + $0x2a0] sm:$0xff]
    %v2120 = vld [vmem:[%s8 + $0x2a8] sm:$0xff]
    %v2121 = vld [vmem:[%s8 + $0x2b0] sm:$0xff]
    %v2122 = vld [vmem:[%s8 + $0x2b8] sm:$0xf]
    %v2123 = vld [vmem:[%s8 + $0x2bc] sm:$0xff]
    %v2124 = vld [vmem:[%s8 + $0x2c4] sm:$0xff]
    %v2125 = vld [vmem:[%s8 + $0x2cc] sm:$0xff]
    %v2126 = vld [vmem:[%s8 + $0x2d4] sm:$0xf]
    %v2127 = vld [vmem:[%s8 + $0x2d8] sm:$0xff]
    %v2128 = vld [vmem:[%s8 + $0x2e0] sm:$0xff]
    %v2129 = vld [vmem:[%s8 + $0x2e8] sm:$0xff]
    %v2130 = vld [vmem:[%s8 + $0x2f0] sm:$0xf]
    %v2131 = vld [vmem:[%s8 + $0x2f4] sm:$0xff]
    %v2132 = vld [vmem:[%s8 + $0x2fc] sm:$0xff]
    %v2133 = vld [vmem:[%s8 + $0x304] sm:$0xff]
    %v2134 = vld [vmem:[%s8 + $0x30c] sm:$0xf]
    %v2135 = vld [vmem:[%s8 + $0x310] sm:$0xff]
    %v2136 = vld [vmem:[%s8 + $0x318] sm:$0xff]
    %v2137 = vld [vmem:[%s8 + $0x320] sm:$0xff]
    %v2138 = vld [vmem:[%s8 + $0x328] sm:$0xf]
    %v2139 = vld [vmem:[%s8 + $0x32c] sm:$0xff]
    %v2140 = vld [vmem:[%s8 + $0x334] sm:$0xff]
    %v2141 = vld [vmem:[%s8 + $0x33c] sm:$0xff]
    %v2142 = vld [vmem:[%s8 + $0x344] sm:$0xf]
    %v2143 = vld [vmem:[%s8 + $0x348] sm:$0xff]
    %v2144 = vld [vmem:[%s8 + $0x350] sm:$0xff]
    %v2145 = vld [vmem:[%s8 + $0x358] sm:$0xff]
    %v2146 = vld [vmem:[%s8 + $0x360] sm:$0xf]
    %v2147 = vld [vmem:[%s8 + $0x364] sm:$0xff]
    %v2148 = vld [vmem:[%s8 + $0x36c] sm:$0xff]
    %v2149 = vld [vmem:[%s8 + $0x374] sm:$0xff]
    %v2150 = vld [vmem:[%s8 + $0x37c] sm:$0xf]
    %v2151 = vld [vmem:[%s8 + $0x380] sm:$0xff]
    %v2152 = vld [vmem:[%s8 + $0x388] sm:$0xff]
    %v2153 = vld [vmem:[%s8 + $0x390] sm:$0xff]
    %v2154 = vld [vmem:[%s8 + $0x398] sm:$0xf]
    %v2155 = vld [vmem:[%s8 + $0x39c] sm:$0xff]
    %v2156 = vld [vmem:[%s8 + $0x3a4] sm:$0xff]
    %v2157 = vld [vmem:[%s8 + $0x3ac] sm:$0xff]
    %v2158 = vld [vmem:[%s8 + $0x3b4] sm:$0xf]
    %v2159 = vld [vmem:[%s8 + $0x3b8] sm:$0xff]
    %v2160 = vld [vmem:[%s8 + $0x3c0] sm:$0xff]
    %v2161 = vld [vmem:[%s8 + $0x3c8] sm:$0xff]
    %v2162 = vld [vmem:[%s8 + $0x3d0] sm:$0xf]
    %v2163 = vld [vmem:[%s8 + $0x3d4] sm:$0xff]
    %v2164 = vld [vmem:[%s8 + $0x3dc] sm:$0xff]
    %v2165 = vld [vmem:[%s8 + $0x3e4] sm:$0xff]
    %v2166 = vld [vmem:[%s8 + $0x3ec] sm:$0xf]
    %v2167 = vld [vmem:[%s8 + $0x3f0] sm:$0xff]
    %v2168 = vld [vmem:[%s8 + $0x3f8] sm:$0xff]
    %v2169 = vld [vmem:[%s8 + $0x400] sm:$0xff]
    %v2170 = vld [vmem:[%s8 + $0x408] sm:$0xf]
    %v2171 = vld [vmem:[%s8 + $0x40c] sm:$0xff]
    %v2172 = vld [vmem:[%s8 + $0x414] sm:$0xff]
    %v2173 = vld [vmem:[%s8 + $0x41c] sm:$0xff]
    %v2174 = vld [vmem:[%s8 + $0x424] sm:$0xf]
    %v2175 = vld [vmem:[%s8 + $0x428] sm:$0xff]
    %v2176 = vld [vmem:[%s8 + $0x430] sm:$0xff]
    %v2177 = vld [vmem:[%s8 + $0x438] sm:$0xff]
    %v2178 = vld [vmem:[%s8 + $0x440] sm:$0xf]
    %v2179 = vld [vmem:[%s8 + $0x444] sm:$0xff]
    %v2180 = vld [vmem:[%s8 + $0x44c] sm:$0xff]
    %v2181 = vld [vmem:[%s8 + $0x454] sm:$0xff]
    %v2182 = vld [vmem:[%s8 + $0x45c] sm:$0xf]
    %v2183 = vld [vmem:[%s8 + $0x460] sm:$0xff]
    %v2184 = vld [vmem:[%s8 + $0x468] sm:$0xff]
    %v2185 = vld [vmem:[%s8 + $0x470] sm:$0xff]
    %v2186 = vld [vmem:[%s8 + $0x478] sm:$0xf]
    %v2187 = vld [vmem:[%s8 + $0x47c] sm:$0xff]
    %v2188 = vld [vmem:[%s8 + $0x484] sm:$0xff]
    %v2189 = vld [vmem:[%s8 + $0x48c] sm:$0xff]
    %v2190 = vld [vmem:[%s8 + $0x494] sm:$0xf]
    %v2191 = vld [vmem:[%s8 + $0x498] sm:$0xff]
    %v2192 = vld [vmem:[%s8 + $0x4a0] sm:$0xff]
    %v2193 = vld [vmem:[%s8 + $0x4a8] sm:$0xff]
    %v2194 = vld [vmem:[%s8 + $0x4b0] sm:$0xf]
    %v2195 = vld [vmem:[%s8 + $0x4b4] sm:$0xff]
    %v2196 = vld [vmem:[%s8 + $0x4bc] sm:$0xff]
    %v2197 = vld [vmem:[%s8 + $0x4c4] sm:$0xff]
    %v2198 = vld [vmem:[%s8 + $0x4cc] sm:$0xf]
    %v2199 = vld [vmem:[%s8 + $0x4d0] sm:$0xff]
    %v2200 = vld [vmem:[%s8 + $0x4d8] sm:$0xff]
    %v2201 = vld [vmem:[%s8 + $0x4e0] sm:$0xff]
    %v2202 = vld [vmem:[%s8 + $0x4e8] sm:$0xf]
    %v2203 = vld [vmem:[%s8 + $0x4ec] sm:$0xff]
    %v2204 = vld [vmem:[%s8 + $0x4f4] sm:$0xff]
    %v2205 = vld [vmem:[%s8 + $0x4fc] sm:$0xff]
    %v2206 = vld [vmem:[%s8 + $0x504] sm:$0xf]
    %v2207 = vld [vmem:[%s8 + $0x508] sm:$0xff]
    %v2208 = vld [vmem:[%s8 + $0x510] sm:$0xff]
    %v2209 = vld [vmem:[%s8 + $0x518] sm:$0xff]
    %v2210 = vld [vmem:[%s8 + $0x520] sm:$0xf]
    %v2211 = vld [vmem:[%s8 + $0x524] sm:$0xff]
    %v2212 = vld [vmem:[%s8 + $0x52c] sm:$0xff]
    %v2213 = vld [vmem:[%s8 + $0x534] sm:$0xff]
    %v2214 = vld [vmem:[%s8 + $0x53c] sm:$0xf]
    %v2215 = vld [vmem:[%s8 + $0x540] sm:$0xff]
    %v2216 = vld [vmem:[%s8 + $0x548] sm:$0xff]
    %v2217 = vld [vmem:[%s8 + $0x550] sm:$0xff]
    %v2218 = vld [vmem:[%s8 + $0x558] sm:$0xf]
    %v2219 = vld [vmem:[%s8 + $0x55c] sm:$0xff]
    %v2220 = vld [vmem:[%s8 + $0x564] sm:$0xff]
    %v2221 = vld [vmem:[%s8 + $0x56c] sm:$0xff]
    %v2222 = vld [vmem:[%s8 + $0x574] sm:$0xf]
    %v2223 = vld [vmem:[%s9] sm:$0x7f]
    %v2225 = vperm.slane %v2223, 0
    %v2226 = vperm.slane %v2223, 1
    %v2227 = vperm.slane %v2223, 2
    %v2228 = vperm.slane %v2223, 3
    %v2229 = vperm.slane %v2223, 4
    %v2230 = vperm.slane %v2223, 5
    %v2231 = vperm.slane %v2223, 6
    %v2439 = vunpack.c.l.b16 %v2023
    %v2440 = vunpack.c.h.b16 %v2023
    %v2441 = vunpack.c.l.b16 %v2024
    %v2442 = vunpack.c.h.b16 %v2024
    %v2443 = vunpack.c.l.b16 %v2025
    %v2444 = vunpack.c.h.b16 %v2025
    %v2445 = vunpack.c.l.b16 %v2026
    %v2446 = vunpack.c.l.b16 %v2027
    %v2447 = vunpack.c.h.b16 %v2027
    %v2448 = vunpack.c.l.b16 %v2028
    %v2449 = vunpack.c.h.b16 %v2028
    %v2450 = vunpack.c.l.b16 %v2029
    %v2451 = vunpack.c.h.b16 %v2029
    %v2452 = vunpack.c.l.b16 %v2030
    %v2453 = vunpack.c.l.b16 %v2031
    %v2454 = vunpack.c.h.b16 %v2031
    %v2455 = vunpack.c.l.b16 %v2032
    %v2456 = vunpack.c.h.b16 %v2032
    %v2457 = vunpack.c.l.b16 %v2033
    %v2458 = vunpack.c.h.b16 %v2033
    %v2459 = vunpack.c.l.b16 %v2034
    %v2460 = vunpack.c.l.b16 %v2035
    %v2461 = vunpack.c.h.b16 %v2035
    %v2462 = vunpack.c.l.b16 %v2036
    %v2463 = vunpack.c.h.b16 %v2036
    %v2464 = vunpack.c.l.b16 %v2037
    %v2465 = vunpack.c.h.b16 %v2037
    %v2466 = vunpack.c.l.b16 %v2038
    %v2467 = vunpack.c.l.b16 %v2039
    %v2468 = vunpack.c.h.b16 %v2039
    %v2469 = vunpack.c.l.b16 %v2040
    %v2470 = vunpack.c.h.b16 %v2040
    %v2471 = vunpack.c.l.b16 %v2041
    %v2472 = vunpack.c.h.b16 %v2041
    %v2473 = vunpack.c.l.b16 %v2042
    %v2474 = vunpack.c.l.b16 %v2043
    %v2475 = vunpack.c.h.b16 %v2043
    %v2476 = vunpack.c.l.b16 %v2044
    %v2477 = vunpack.c.h.b16 %v2044
    %v2478 = vunpack.c.l.b16 %v2045
    %v2479 = vunpack.c.h.b16 %v2045
    %v2480 = vunpack.c.l.b16 %v2046
    %v2481 = vunpack.c.l.b16 %v2047
    %v2482 = vunpack.c.h.b16 %v2047
    %v2483 = vunpack.c.l.b16 %v2048
    %v2484 = vunpack.c.h.b16 %v2048
    %v2485 = vunpack.c.l.b16 %v2049
    %v2486 = vunpack.c.h.b16 %v2049
    %v2487 = vunpack.c.l.b16 %v2050
    %v2488 = vunpack.c.l.b16 %v2051
    %v2489 = vunpack.c.h.b16 %v2051
    %v2490 = vunpack.c.l.b16 %v2052
    %v2491 = vunpack.c.h.b16 %v2052
    %v2492 = vunpack.c.l.b16 %v2053
    %v2493 = vunpack.c.h.b16 %v2053
    %v2494 = vunpack.c.l.b16 %v2054
    %v2495 = vunpack.c.l.b16 %v2055
    %v2496 = vunpack.c.h.b16 %v2055
    %v2497 = vunpack.c.l.b16 %v2056
    %v2498 = vunpack.c.h.b16 %v2056
    %v2499 = vunpack.c.l.b16 %v2057
    %v2500 = vunpack.c.h.b16 %v2057
    %v2501 = vunpack.c.l.b16 %v2058
    %v2502 = vunpack.c.l.b16 %v2059
    %v2503 = vunpack.c.h.b16 %v2059
    %v2504 = vunpack.c.l.b16 %v2060
    %v2505 = vunpack.c.h.b16 %v2060
    %v2506 = vunpack.c.l.b16 %v2061
    %v2507 = vunpack.c.h.b16 %v2061
    %v2508 = vunpack.c.l.b16 %v2062
    %v2509 = vunpack.c.l.b16 %v2063
    %v2510 = vunpack.c.h.b16 %v2063
    %v2511 = vunpack.c.l.b16 %v2064
    %v2512 = vunpack.c.h.b16 %v2064
    %v2513 = vunpack.c.l.b16 %v2065
    %v2514 = vunpack.c.h.b16 %v2065
    %v2515 = vunpack.c.l.b16 %v2066
    %v2516 = vunpack.c.l.b16 %v2067
    %v2517 = vunpack.c.h.b16 %v2067
    %v2518 = vunpack.c.l.b16 %v2068
    %v2519 = vunpack.c.h.b16 %v2068
    %v2520 = vunpack.c.l.b16 %v2069
    %v2521 = vunpack.c.h.b16 %v2069
    %v2522 = vunpack.c.l.b16 %v2070
    %v2523 = vunpack.c.l.b16 %v2071
    %v2524 = vunpack.c.h.b16 %v2071
    %v2525 = vunpack.c.l.b16 %v2072
    %v2526 = vunpack.c.h.b16 %v2072
    %v2527 = vunpack.c.l.b16 %v2073
    %v2528 = vunpack.c.h.b16 %v2073
    %v2529 = vunpack.c.l.b16 %v2074
    %v2530 = vunpack.c.l.b16 %v2075
    %v2531 = vunpack.c.h.b16 %v2075
    %v2532 = vunpack.c.l.b16 %v2076
    %v2533 = vunpack.c.h.b16 %v2076
    %v2534 = vunpack.c.l.b16 %v2077
    %v2535 = vunpack.c.h.b16 %v2077
    %v2536 = vunpack.c.l.b16 %v2078
    %v2537 = vunpack.c.l.b16 %v2079
    %v2538 = vunpack.c.h.b16 %v2079
    %v2539 = vunpack.c.l.b16 %v2080
    %v2540 = vunpack.c.h.b16 %v2080
    %v2541 = vunpack.c.l.b16 %v2081
    %v2542 = vunpack.c.h.b16 %v2081
    %v2543 = vunpack.c.l.b16 %v2082
    %v2544 = vunpack.c.l.b16 %v2083
    %v2545 = vunpack.c.h.b16 %v2083
    %v2546 = vunpack.c.l.b16 %v2084
    %v2547 = vunpack.c.h.b16 %v2084
    %v2548 = vunpack.c.l.b16 %v2085
    %v2549 = vunpack.c.h.b16 %v2085
    %v2550 = vunpack.c.l.b16 %v2086
    %v2551 = vunpack.c.l.b16 %v2087
    %v2552 = vunpack.c.h.b16 %v2087
    %v2553 = vunpack.c.l.b16 %v2088
    %v2554 = vunpack.c.h.b16 %v2088
    %v2555 = vunpack.c.l.b16 %v2089
    %v2556 = vunpack.c.h.b16 %v2089
    %v2557 = vunpack.c.l.b16 %v2090
    %v2558 = vunpack.c.l.b16 %v2091
    %v2559 = vunpack.c.h.b16 %v2091
    %v2560 = vunpack.c.l.b16 %v2092
    %v2561 = vunpack.c.h.b16 %v2092
    %v2562 = vunpack.c.l.b16 %v2093
    %v2563 = vunpack.c.h.b16 %v2093
    %v2564 = vunpack.c.l.b16 %v2094
    %v2565 = vunpack.c.l.b16 %v2095
    %v2566 = vunpack.c.h.b16 %v2095
    %v2567 = vunpack.c.l.b16 %v2096
    %v2568 = vunpack.c.h.b16 %v2096
    %v2569 = vunpack.c.l.b16 %v2097
    %v2570 = vunpack.c.h.b16 %v2097
    %v2571 = vunpack.c.l.b16 %v2098
    %v2572 = vunpack.c.l.b16 %v2099
    %v2573 = vunpack.c.h.b16 %v2099
    %v2574 = vunpack.c.l.b16 %v2100
    %v2575 = vunpack.c.h.b16 %v2100
    %v2576 = vunpack.c.l.b16 %v2101
    %v2577 = vunpack.c.h.b16 %v2101
    %v2578 = vunpack.c.l.b16 %v2102
    %v2579 = vunpack.c.l.b16 %v2103
    %v2580 = vunpack.c.h.b16 %v2103
    %v2581 = vunpack.c.l.b16 %v2104
    %v2582 = vunpack.c.h.b16 %v2104
    %v2583 = vunpack.c.l.b16 %v2105
    %v2584 = vunpack.c.h.b16 %v2105
    %v2585 = vunpack.c.l.b16 %v2106
    %v2586 = vunpack.c.l.b16 %v2107
    %v2587 = vunpack.c.h.b16 %v2107
    %v2588 = vunpack.c.l.b16 %v2108
    %v2589 = vunpack.c.h.b16 %v2108
    %v2590 = vunpack.c.l.b16 %v2109
    %v2591 = vunpack.c.h.b16 %v2109
    %v2592 = vunpack.c.l.b16 %v2110
    %v2593 = vunpack.c.l.b16 %v2111
    %v2594 = vunpack.c.h.b16 %v2111
    %v2595 = vunpack.c.l.b16 %v2112
    %v2596 = vunpack.c.h.b16 %v2112
    %v2597 = vunpack.c.l.b16 %v2113
    %v2598 = vunpack.c.h.b16 %v2113
    %v2599 = vunpack.c.l.b16 %v2114
    %v2600 = vunpack.c.l.b16 %v2115
    %v2601 = vunpack.c.h.b16 %v2115
    %v2602 = vunpack.c.l.b16 %v2116
    %v2603 = vunpack.c.h.b16 %v2116
    %v2604 = vunpack.c.l.b16 %v2117
    %v2605 = vunpack.c.h.b16 %v2117
    %v2606 = vunpack.c.l.b16 %v2118
    %v2607 = vunpack.c.l.b16 %v2119
    %v2608 = vunpack.c.h.b16 %v2119
    %v2609 = vunpack.c.l.b16 %v2120
    %v2610 = vunpack.c.h.b16 %v2120
    %v2611 = vunpack.c.l.b16 %v2121
    %v2612 = vunpack.c.h.b16 %v2121
    %v2613 = vunpack.c.l.b16 %v2122
    %v2614 = vunpack.c.l.b16 %v2123
    %v2615 = vunpack.c.h.b16 %v2123
    %v2616 = vunpack.c.l.b16 %v2124
    %v2617 = vunpack.c.h.b16 %v2124
    %v2618 = vunpack.c.l.b16 %v2125
    %v2619 = vunpack.c.h.b16 %v2125
    %v2620 = vunpack.c.l.b16 %v2126
    %v2621 = vunpack.c.l.b16 %v2127
    %v2622 = vunpack.c.h.b16 %v2127
    %v2623 = vunpack.c.l.b16 %v2128
    %v2624 = vunpack.c.h.b16 %v2128
    %v2625 = vunpack.c.l.b16 %v2129
    %v2626 = vunpack.c.h.b16 %v2129
    %v2627 = vunpack.c.l.b16 %v2130
    %v2628 = vunpack.c.l.b16 %v2131
    %v2629 = vunpack.c.h.b16 %v2131
    %v2630 = vunpack.c.l.b16 %v2132
    %v2631 = vunpack.c.h.b16 %v2132
    %v2632 = vunpack.c.l.b16 %v2133
    %v2633 = vunpack.c.h.b16 %v2133
    %v2634 = vunpack.c.l.b16 %v2134
    %v2635 = vunpack.c.l.b16 %v2135
    %v2636 = vunpack.c.h.b16 %v2135
    %v2637 = vunpack.c.l.b16 %v2136
    %v2638 = vunpack.c.h.b16 %v2136
    %v2639 = vunpack.c.l.b16 %v2137
    %v2640 = vunpack.c.h.b16 %v2137
    %v2641 = vunpack.c.l.b16 %v2138
    %v2642 = vunpack.c.l.b16 %v2139
    %v2643 = vunpack.c.h.b16 %v2139
    %v2644 = vunpack.c.l.b16 %v2140
    %v2645 = vunpack.c.h.b16 %v2140
    %v2646 = vunpack.c.l.b16 %v2141
    %v2647 = vunpack.c.h.b16 %v2141
    %v2648 = vunpack.c.l.b16 %v2142
    %v2649 = vunpack.c.l.b16 %v2143
    %v2650 = vunpack.c.h.b16 %v2143
    %v2651 = vunpack.c.l.b16 %v2144
    %v2652 = vunpack.c.h.b16 %v2144
    %v2653 = vunpack.c.l.b16 %v2145
    %v2654 = vunpack.c.h.b16 %v2145
    %v2655 = vunpack.c.l.b16 %v2146
    %v2656 = vunpack.c.l.b16 %v2147
    %v2657 = vunpack.c.h.b16 %v2147
    %v2658 = vunpack.c.l.b16 %v2148
    %v2659 = vunpack.c.h.b16 %v2148
    %v2660 = vunpack.c.l.b16 %v2149
    %v2661 = vunpack.c.h.b16 %v2149
    %v2662 = vunpack.c.l.b16 %v2150
    %v2663 = vunpack.c.l.b16 %v2151
    %v2664 = vunpack.c.h.b16 %v2151
    %v2665 = vunpack.c.l.b16 %v2152
    %v2666 = vunpack.c.h.b16 %v2152
    %v2667 = vunpack.c.l.b16 %v2153
    %v2668 = vunpack.c.h.b16 %v2153
    %v2669 = vunpack.c.l.b16 %v2154
    %v2670 = vunpack.c.l.b16 %v2155
    %v2671 = vunpack.c.h.b16 %v2155
    %v2672 = vunpack.c.l.b16 %v2156
    %v2673 = vunpack.c.h.b16 %v2156
    %v2674 = vunpack.c.l.b16 %v2157
    %v2675 = vunpack.c.h.b16 %v2157
    %v2676 = vunpack.c.l.b16 %v2158
    %v2677 = vunpack.c.l.b16 %v2159
    %v2678 = vunpack.c.h.b16 %v2159
    %v2679 = vunpack.c.l.b16 %v2160
    %v2680 = vunpack.c.h.b16 %v2160
    %v2681 = vunpack.c.l.b16 %v2161
    %v2682 = vunpack.c.h.b16 %v2161
    %v2683 = vunpack.c.l.b16 %v2162
    %v2684 = vunpack.c.l.b16 %v2163
    %v2685 = vunpack.c.h.b16 %v2163
    %v2686 = vunpack.c.l.b16 %v2164
    %v2687 = vunpack.c.h.b16 %v2164
    %v2688 = vunpack.c.l.b16 %v2165
    %v2689 = vunpack.c.h.b16 %v2165
    %v2690 = vunpack.c.l.b16 %v2166
    %v2691 = vunpack.c.l.b16 %v2167
    %v2692 = vunpack.c.h.b16 %v2167
    %v2693 = vunpack.c.l.b16 %v2168
    %v2694 = vunpack.c.h.b16 %v2168
    %v2695 = vunpack.c.l.b16 %v2169
    %v2696 = vunpack.c.h.b16 %v2169
    %v2697 = vunpack.c.l.b16 %v2170
    %v2698 = vunpack.c.l.b16 %v2171
    %v2699 = vunpack.c.h.b16 %v2171
    %v2700 = vunpack.c.l.b16 %v2172
    %v2701 = vunpack.c.h.b16 %v2172
    %v2702 = vunpack.c.l.b16 %v2173
    %v2703 = vunpack.c.h.b16 %v2173
    %v2704 = vunpack.c.l.b16 %v2174
    %v2705 = vunpack.c.l.b16 %v2175
    %v2706 = vunpack.c.h.b16 %v2175
    %v2707 = vunpack.c.l.b16 %v2176
    %v2708 = vunpack.c.h.b16 %v2176
    %v2709 = vunpack.c.l.b16 %v2177
    %v2710 = vunpack.c.h.b16 %v2177
    %v2711 = vunpack.c.l.b16 %v2178
    %v2712 = vunpack.c.l.b16 %v2179
    %v2713 = vunpack.c.h.b16 %v2179
    %v2714 = vunpack.c.l.b16 %v2180
    %v2715 = vunpack.c.h.b16 %v2180
    %v2716 = vunpack.c.l.b16 %v2181
    %v2717 = vunpack.c.h.b16 %v2181
    %v2718 = vunpack.c.l.b16 %v2182
    %v2719 = vunpack.c.l.b16 %v2183
    %v2720 = vunpack.c.h.b16 %v2183
    %v2721 = vunpack.c.l.b16 %v2184
    %v2722 = vunpack.c.h.b16 %v2184
    %v2723 = vunpack.c.l.b16 %v2185
    %v2724 = vunpack.c.h.b16 %v2185
    %v2725 = vunpack.c.l.b16 %v2186
    %v2726 = vunpack.c.l.b16 %v2187
    %v2727 = vunpack.c.h.b16 %v2187
    %v2728 = vunpack.c.l.b16 %v2188
    %v2729 = vunpack.c.h.b16 %v2188
    %v2730 = vunpack.c.l.b16 %v2189
    %v2731 = vunpack.c.h.b16 %v2189
    %v2732 = vunpack.c.l.b16 %v2190
    %v2733 = vunpack.c.l.b16 %v2191
    %v2734 = vunpack.c.h.b16 %v2191
    %v2735 = vunpack.c.l.b16 %v2192
    %v2736 = vunpack.c.h.b16 %v2192
    %v2737 = vunpack.c.l.b16 %v2193
    %v2738 = vunpack.c.h.b16 %v2193
    %v2739 = vunpack.c.l.b16 %v2194
    %v2740 = vunpack.c.l.b16 %v2195
    %v2741 = vunpack.c.h.b16 %v2195
    %v2742 = vunpack.c.l.b16 %v2196
    %v2743 = vunpack.c.h.b16 %v2196
    %v2744 = vunpack.c.l.b16 %v2197
    %v2745 = vunpack.c.h.b16 %v2197
    %v2746 = vunpack.c.l.b16 %v2198
    %v2747 = vunpack.c.l.b16 %v2199
    %v2748 = vunpack.c.h.b16 %v2199
    %v2749 = vunpack.c.l.b16 %v2200
    %v2750 = vunpack.c.h.b16 %v2200
    %v2751 = vunpack.c.l.b16 %v2201
    %v2752 = vunpack.c.h.b16 %v2201
    %v2753 = vunpack.c.l.b16 %v2202
    %v2754 = vunpack.c.l.b16 %v2203
    %v2755 = vunpack.c.h.b16 %v2203
    %v2756 = vunpack.c.l.b16 %v2204
    %v2757 = vunpack.c.h.b16 %v2204
    %v2758 = vunpack.c.l.b16 %v2205
    %v2759 = vunpack.c.h.b16 %v2205
    %v2760 = vunpack.c.l.b16 %v2206
    %v2761 = vunpack.c.l.b16 %v2207
    %v2762 = vunpack.c.h.b16 %v2207
    %v2763 = vunpack.c.l.b16 %v2208
    %v2764 = vunpack.c.h.b16 %v2208
    %v2765 = vunpack.c.l.b16 %v2209
    %v2766 = vunpack.c.h.b16 %v2209
    %v2767 = vunpack.c.l.b16 %v2210
    %v2768 = vunpack.c.l.b16 %v2211
    %v2769 = vunpack.c.h.b16 %v2211
    %v2770 = vunpack.c.l.b16 %v2212
    %v2771 = vunpack.c.h.b16 %v2212
    %v2772 = vunpack.c.l.b16 %v2213
    %v2773 = vunpack.c.h.b16 %v2213
    %v2774 = vunpack.c.l.b16 %v2214
    %v2775 = vunpack.c.l.b16 %v2215
    %v2776 = vunpack.c.h.b16 %v2215
    %v2777 = vunpack.c.l.b16 %v2216
    %v2778 = vunpack.c.h.b16 %v2216
    %v2779 = vunpack.c.l.b16 %v2217
    %v2780 = vunpack.c.h.b16 %v2217
    %v2781 = vunpack.c.l.b16 %v2218
    %v2782 = vunpack.c.l.b16 %v2219
    %v2783 = vunpack.c.h.b16 %v2219
    %v2784 = vunpack.c.l.b16 %v2220
    %v2785 = vunpack.c.h.b16 %v2220
    %v2786 = vunpack.c.l.b16 %v2221
    %v2787 = vunpack.c.h.b16 %v2221
    %v2788 = vunpack.c.l.b16 %v2222
    %v2789 = vpack.c.b16 %v2446, %v2439
    %v2790 = vpack.c.b16 %v2447, %v2440
    %v2791 = vpack.c.b16 %v2448, %v2441
    %v2792 = vpack.c.b16 %v2449, %v2442
    %v2793 = vpack.c.b16 %v2450, %v2443
    %v2794 = vpack.c.b16 %v2451, %v2444
    %v2795 = vpack.c.b16 %v2452, %v2445
    %v2796 = vpack.c.b16 %v2460, %v2453
    %v2797 = vpack.c.b16 %v2461, %v2454
    %v2798 = vpack.c.b16 %v2462, %v2455
    %v2799 = vpack.c.b16 %v2463, %v2456
    %v2800 = vpack.c.b16 %v2464, %v2457
    %v2801 = vpack.c.b16 %v2465, %v2458
    %v2802 = vpack.c.b16 %v2466, %v2459
    %v2803 = vpack.c.b16 %v2474, %v2467
    %v2804 = vpack.c.b16 %v2475, %v2468
    %v2805 = vpack.c.b16 %v2476, %v2469
    %v2806 = vpack.c.b16 %v2477, %v2470
    %v2807 = vpack.c.b16 %v2478, %v2471
    %v2808 = vpack.c.b16 %v2479, %v2472
    %v2809 = vpack.c.b16 %v2480, %v2473
    %v2810 = vpack.c.b16 %v2488, %v2481
    %v2811 = vpack.c.b16 %v2489, %v2482
    %v2812 = vpack.c.b16 %v2490, %v2483
    %v2813 = vpack.c.b16 %v2491, %v2484
    %v2814 = vpack.c.b16 %v2492, %v2485
    %v2815 = vpack.c.b16 %v2493, %v2486
    %v2816 = vpack.c.b16 %v2494, %v2487
    %v2817 = vpack.c.b16 %v2502, %v2495
    %v2818 = vpack.c.b16 %v2503, %v2496
    %v2819 = vpack.c.b16 %v2504, %v2497
    %v2820 = vpack.c.b16 %v2505, %v2498
    %v2821 = vpack.c.b16 %v2506, %v2499
    %v2822 = vpack.c.b16 %v2507, %v2500
    %v2823 = vpack.c.b16 %v2508, %v2501
    %v2824 = vpack.c.b16 %v2516, %v2509
    %v2825 = vpack.c.b16 %v2517, %v2510
    %v2826 = vpack.c.b16 %v2518, %v2511
    %v2827 = vpack.c.b16 %v2519, %v2512
    %v2828 = vpack.c.b16 %v2520, %v2513
    %v2829 = vpack.c.b16 %v2521, %v2514
    %v2830 = vpack.c.b16 %v2522, %v2515
    %v2831 = vpack.c.b16 %v2530, %v2523
    %v2832 = vpack.c.b16 %v2531, %v2524
    %v2833 = vpack.c.b16 %v2532, %v2525
    %v2834 = vpack.c.b16 %v2533, %v2526
    %v2835 = vpack.c.b16 %v2534, %v2527
    %v2836 = vpack.c.b16 %v2535, %v2528
    %v2837 = vpack.c.b16 %v2536, %v2529
    %v2838 = vpack.c.b16 %v2544, %v2537
    %v2839 = vpack.c.b16 %v2545, %v2538
    %v2840 = vpack.c.b16 %v2546, %v2539
    %v2841 = vpack.c.b16 %v2547, %v2540
    %v2842 = vpack.c.b16 %v2548, %v2541
    %v2843 = vpack.c.b16 %v2549, %v2542
    %v2844 = vpack.c.b16 %v2550, %v2543
    %v2845 = vpack.c.b16 %v2558, %v2551
    %v2846 = vpack.c.b16 %v2559, %v2552
    %v2847 = vpack.c.b16 %v2560, %v2553
    %v2848 = vpack.c.b16 %v2561, %v2554
    %v2849 = vpack.c.b16 %v2562, %v2555
    %v2850 = vpack.c.b16 %v2563, %v2556
    %v2851 = vpack.c.b16 %v2564, %v2557
    %v2852 = vpack.c.b16 %v2572, %v2565
    %v2853 = vpack.c.b16 %v2573, %v2566
    %v2854 = vpack.c.b16 %v2574, %v2567
    %v2855 = vpack.c.b16 %v2575, %v2568
    %v2856 = vpack.c.b16 %v2576, %v2569
    %v2857 = vpack.c.b16 %v2577, %v2570
    %v2858 = vpack.c.b16 %v2578, %v2571
    %v2859 = vpack.c.b16 %v2586, %v2579
    %v2860 = vpack.c.b16 %v2587, %v2580
    %v2861 = vpack.c.b16 %v2588, %v2581
    %v2862 = vpack.c.b16 %v2589, %v2582
    %v2863 = vpack.c.b16 %v2590, %v2583
    %v2864 = vpack.c.b16 %v2591, %v2584
    %v2865 = vpack.c.b16 %v2592, %v2585
    %v2866 = vpack.c.b16 %v2600, %v2593
    %v2867 = vpack.c.b16 %v2601, %v2594
    %v2868 = vpack.c.b16 %v2602, %v2595
    %v2869 = vpack.c.b16 %v2603, %v2596
    %v2870 = vpack.c.b16 %v2604, %v2597
    %v2871 = vpack.c.b16 %v2605, %v2598
    %v2872 = vpack.c.b16 %v2606, %v2599
    %v2873 = vpack.c.b16 %v2614, %v2607
    %v2874 = vpack.c.b16 %v2615, %v2608
    %v2875 = vpack.c.b16 %v2616, %v2609
    %v2876 = vpack.c.b16 %v2617, %v2610
    %v2877 = vpack.c.b16 %v2618, %v2611
    %v2878 = vpack.c.b16 %v2619, %v2612
    %v2879 = vpack.c.b16 %v2620, %v2613
    %v2880 = vpack.c.b16 %v2628, %v2621
    %v2881 = vpack.c.b16 %v2629, %v2622
    %v2882 = vpack.c.b16 %v2630, %v2623
    %v2883 = vpack.c.b16 %v2631, %v2624
    %v2884 = vpack.c.b16 %v2632, %v2625
    %v2885 = vpack.c.b16 %v2633, %v2626
    %v2886 = vpack.c.b16 %v2634, %v2627
    %v2887 = vpack.c.b16 %v2642, %v2635
    %v2888 = vpack.c.b16 %v2643, %v2636
    %v2889 = vpack.c.b16 %v2644, %v2637
    %v2890 = vpack.c.b16 %v2645, %v2638
    %v2891 = vpack.c.b16 %v2646, %v2639
    %v2892 = vpack.c.b16 %v2647, %v2640
    %v2893 = vpack.c.b16 %v2648, %v2641
    %v2894 = vpack.c.b16 %v2656, %v2649
    %v2895 = vpack.c.b16 %v2657, %v2650
    %v2896 = vpack.c.b16 %v2658, %v2651
    %v2897 = vpack.c.b16 %v2659, %v2652
    %v2898 = vpack.c.b16 %v2660, %v2653
    %v2899 = vpack.c.b16 %v2661, %v2654
    %v2900 = vpack.c.b16 %v2662, %v2655
    %v2901 = vpack.c.b16 %v2670, %v2663
    %v2902 = vpack.c.b16 %v2671, %v2664
    %v2903 = vpack.c.b16 %v2672, %v2665
    %v2904 = vpack.c.b16 %v2673, %v2666
    %v2905 = vpack.c.b16 %v2674, %v2667
    %v2906 = vpack.c.b16 %v2675, %v2668
    %v2907 = vpack.c.b16 %v2676, %v2669
    %v2908 = vpack.c.b16 %v2684, %v2677
    %v2909 = vpack.c.b16 %v2685, %v2678
    %v2910 = vpack.c.b16 %v2686, %v2679
    %v2911 = vpack.c.b16 %v2687, %v2680
    %v2912 = vpack.c.b16 %v2688, %v2681
    %v2913 = vpack.c.b16 %v2689, %v2682
    %v2914 = vpack.c.b16 %v2690, %v2683
    %v2915 = vpack.c.b16 %v2698, %v2691
    %v2916 = vpack.c.b16 %v2699, %v2692
    %v2917 = vpack.c.b16 %v2700, %v2693
    %v2918 = vpack.c.b16 %v2701, %v2694
    %v2919 = vpack.c.b16 %v2702, %v2695
    %v2920 = vpack.c.b16 %v2703, %v2696
    %v2921 = vpack.c.b16 %v2704, %v2697
    %v2922 = vpack.c.b16 %v2712, %v2705
    %v2923 = vpack.c.b16 %v2713, %v2706
    %v2924 = vpack.c.b16 %v2714, %v2707
    %v2925 = vpack.c.b16 %v2715, %v2708
    %v2926 = vpack.c.b16 %v2716, %v2709
    %v2927 = vpack.c.b16 %v2717, %v2710
    %v2928 = vpack.c.b16 %v2718, %v2711
    %v2929 = vpack.c.b16 %v2726, %v2719
    %v2930 = vpack.c.b16 %v2727, %v2720
    %v2931 = vpack.c.b16 %v2728, %v2721
    %v2932 = vpack.c.b16 %v2729, %v2722
    %v2933 = vpack.c.b16 %v2730, %v2723
    %v2934 = vpack.c.b16 %v2731, %v2724
    %v2935 = vpack.c.b16 %v2732, %v2725
    %v2936 = vpack.c.b16 %v2740, %v2733
    %v2937 = vpack.c.b16 %v2741, %v2734
    %v2938 = vpack.c.b16 %v2742, %v2735
    %v2939 = vpack.c.b16 %v2743, %v2736
    %v2940 = vpack.c.b16 %v2744, %v2737
    %v2941 = vpack.c.b16 %v2745, %v2738
    %v2942 = vpack.c.b16 %v2746, %v2739
    %v2943 = vpack.c.b16 %v2754, %v2747
    %v2944 = vpack.c.b16 %v2755, %v2748
    %v2945 = vpack.c.b16 %v2756, %v2749
    %v2946 = vpack.c.b16 %v2757, %v2750
    %v2947 = vpack.c.b16 %v2758, %v2751
    %v2948 = vpack.c.b16 %v2759, %v2752
    %v2949 = vpack.c.b16 %v2760, %v2753
    %v2950 = vpack.c.b16 %v2768, %v2761
    %v2951 = vpack.c.b16 %v2769, %v2762
    %v2952 = vpack.c.b16 %v2770, %v2763
    %v2953 = vpack.c.b16 %v2771, %v2764
    %v2954 = vpack.c.b16 %v2772, %v2765
    %v2955 = vpack.c.b16 %v2773, %v2766
    %v2956 = vpack.c.b16 %v2774, %v2767
    %v2957 = vpack.c.b16 %v2782, %v2775
    %v2958 = vpack.c.b16 %v2783, %v2776
    %v2959 = vpack.c.b16 %v2784, %v2777
    %v2960 = vpack.c.b16 %v2785, %v2778
    %v2961 = vpack.c.b16 %v2786, %v2779
    %v2962 = vpack.c.b16 %v2787, %v2780
    %v2963 = vpack.c.b16 %v2788, %v2781
    %v3140 = vsel %vm1254, %v2022, 0
    %3142 = vmatpush.bf16.msra.mxu0 %v2838
    %3143 = vmatpush.bf16.msra.mxu0 %v2831
    %3144 = vmatpush.bf16.msra.mxu0 %v2824
    %3145 = vmatpush.bf16.msra.mxu0 %v2817
    %3146 = vmatpush.bf16.msra.mxu0 %v2810
    %3147 = vmatpush.bf16.msra.mxu0 %v2803
    %3148 = vmatpush.bf16.msra.mxu0 %v2796
    %3149 = vmatpush.bf16.msra.mxu0 %v2789
    %3150 = vmatmul.bf16.gmra.mxu0 %v2019
    %v3151 = vpop.f32.mrf.mxu0
    %v3152 = vadd.f32 %v2225, %v3151
    %v3153 = vpop.f32.mrf.mxu0
    %3154 = vdwg.mxu0
    %3155 = vmatpush.bf16.msra.mxu0 %v2894
    %3156 = vmatpush.bf16.msra.mxu0 %v2887
    %3157 = vmatpush.bf16.msra.mxu0 %v2880
    %3158 = vmatpush.bf16.msra.mxu0 %v2873
    %3159 = vmatpush.bf16.msra.mxu0 %v2866
    %3160 = vmatpush.bf16.msra.mxu0 %v2859
    %3161 = vmatpush.bf16.msra.mxu0 %v2852
    %3162 = vmatpush.bf16.msra.mxu0 %v2845
    %3163 = vmatmul.bf16.gmra.mxu0 %v2020
    %v3164 = vpop.f32.mrf.mxu0
    %v3165 = vadd.f32 %v3152, %v3164
    %v3166 = vpop.f32.mrf.mxu0
    %3167 = vdwg.mxu0
    %3168 = vmatpush.bf16.msra.mxu0 %v2950
    %3169 = vmatpush.bf16.msra.mxu0 %v2943
    %3170 = vmatpush.bf16.msra.mxu0 %v2936
    %3171 = vmatpush.bf16.msra.mxu0 %v2929
    %3172 = vmatpush.bf16.msra.mxu0 %v2922
    %3173 = vmatpush.bf16.msra.mxu0 %v2915
    %3174 = vmatpush.bf16.msra.mxu0 %v2908
    %3175 = vmatpush.bf16.msra.mxu0 %v2901
    %3176 = vmatmul.bf16.gmra.mxu0 %v2021
    %v3177 = vpop.f32.mrf.mxu0
    %v3178 = vadd.f32 %v3165, %v3177
    %v3179 = vpop.f32.mrf.mxu0
    %3180 = vdwg.mxu0
    %3181 = vmatpush.bf16.msra.mxu0 0
    %3182 = vmatpush.bf16.msra.mxu0 0
    %3183 = vmatpush.bf16.msra.mxu0 0
    %3184 = vmatpush.bf16.msra.mxu0 0
    %3185 = vmatpush.bf16.msra.mxu0 0
    %3186 = vmatpush.bf16.msra.mxu0 0
    %3187 = vmatpush.bf16.msra.mxu0 0
    %3188 = vmatpush.bf16.msra.mxu0 %v2957
    %3189 = vmatmul.bf16.gmra.mxu0 %v3140
    %v3190 = vpop.f32.mrf.mxu0
    %v3191 = vadd.f32 %v3178, %v3190
    %v3192 = vpop.f32.mrf.mxu0
    %3193 = vdwg.mxu0
    %3194 = vmatpush.bf16.msra.mxu0 %v2839
    %3195 = vmatpush.bf16.msra.mxu0 %v2832
    %3196 = vmatpush.bf16.msra.mxu0 %v2825
    %3197 = vmatpush.bf16.msra.mxu0 %v2818
    %3198 = vmatpush.bf16.msra.mxu0 %v2811
    %3199 = vmatpush.bf16.msra.mxu0 %v2804
    %3200 = vmatpush.bf16.msra.mxu0 %v2797
    %3201 = vmatpush.bf16.msra.mxu0 %v2790
    %3202 = vmatmul.bf16.gmra.mxu0 %v2019
    %v3203 = vpop.f32.mrf.mxu0
    %v3204 = vadd.f32 %v2226, %v3203
    %v3205 = vpop.f32.mrf.mxu0
    %3206 = vdwg.mxu0
    %3207 = vmatpush.bf16.msra.mxu0 %v2895
    %3208 = vmatpush.bf16.msra.mxu0 %v2888
    %3209 = vmatpush.bf16.msra.mxu0 %v2881
    %3210 = vmatpush.bf16.msra.mxu0 %v2874
    %3211 = vmatpush.bf16.msra.mxu0 %v2867
    %3212 = vmatpush.bf16.msra.mxu0 %v2860
    %3213 = vmatpush.bf16.msra.mxu0 %v2853
    %3214 = vmatpush.bf16.msra.mxu0 %v2846
    %3215 = vmatmul.bf16.gmra.mxu0 %v2020
    %v3216 = vpop.f32.mrf.mxu0
    %v3217 = vadd.f32 %v3204, %v3216
    %v3218 = vpop.f32.mrf.mxu0
    %3219 = vdwg.mxu0
    %3220 = vmatpush.bf16.msra.mxu0 %v2951
    %3221 = vmatpush.bf16.msra.mxu0 %v2944
    %3222 = vmatpush.bf16.msra.mxu0 %v2937
    %3223 = vmatpush.bf16.msra.mxu0 %v2930
    %3224 = vmatpush.bf16.msra.mxu0 %v2923
    %3225 = vmatpush.bf16.msra.mxu0 %v2916
    %3226 = vmatpush.bf16.msra.mxu0 %v2909
    %3227 = vmatpush.bf16.msra.mxu0 %v2902
    %3228 = vmatmul.bf16.gmra.mxu0 %v2021
    %v3229 = vpop.f32.mrf.mxu0
    %v3230 = vadd.f32 %v3217, %v3229
    %v3231 = vpop.f32.mrf.mxu0
    %3232 = vdwg.mxu0
    %3233 = vmatpush.bf16.msra.mxu0 0
    %3234 = vmatpush.bf16.msra.mxu0 0
    %3235 = vmatpush.bf16.msra.mxu0 0
    %3236 = vmatpush.bf16.msra.mxu0 0
    %3237 = vmatpush.bf16.msra.mxu0 0
    %3238 = vmatpush.bf16.msra.mxu0 0
    %3239 = vmatpush.bf16.msra.mxu0 0
    %3240 = vmatpush.bf16.msra.mxu0 %v2958
    %3241 = vmatmul.bf16.gmra.mxu0 %v3140
    %v3242 = vpop.f32.mrf.mxu0
    %v3243 = vadd.f32 %v3230, %v3242
    %v3244 = vpop.f32.mrf.mxu0
    %3245 = vdwg.mxu0
    %3246 = vmatpush.bf16.msra.mxu0 %v2840
    %3247 = vmatpush.bf16.msra.mxu0 %v2833
    %3248 = vmatpush.bf16.msra.mxu0 %v2826
    %3249 = vmatpush.bf16.msra.mxu0 %v2819
    %3250 = vmatpush.bf16.msra.mxu0 %v2812
    %3251 = vmatpush.bf16.msra.mxu0 %v2805
    %3252 = vmatpush.bf16.msra.mxu0 %v2798
    %3253 = vmatpush.bf16.msra.mxu0 %v2791
    %3254 = vmatmul.bf16.gmra.mxu0 %v2019
    %v3255 = vpop.f32.mrf.mxu0
    %v3256 = vadd.f32 %v2227, %v3255
    %v3257 = vpop.f32.mrf.mxu0
    %3258 = vdwg.mxu0
    %3259 = vmatpush.bf16.msra.mxu0 %v2896
    %3260 = vmatpush.bf16.msra.mxu0 %v2889
    %3261 = vmatpush.bf16.msra.mxu0 %v2882
    %3262 = vmatpush.bf16.msra.mxu0 %v2875
    %3263 = vmatpush.bf16.msra.mxu0 %v2868
    %3264 = vmatpush.bf16.msra.mxu0 %v2861
    %3265 = vmatpush.bf16.msra.mxu0 %v2854
    %3266 = vmatpush.bf16.msra.mxu0 %v2847
    %3267 = vmatmul.bf16.gmra.mxu0 %v2020
    %v3268 = vpop.f32.mrf.mxu0
    %v3269 = vadd.f32 %v3256, %v3268
    %v3270 = vpop.f32.mrf.mxu0
    %3271 = vdwg.mxu0
    %3272 = vmatpush.bf16.msra.mxu0 %v2952
    %3273 = vmatpush.bf16.msra.mxu0 %v2945
    %3274 = vmatpush.bf16.msra.mxu0 %v2938
    %3275 = vmatpush.bf16.msra.mxu0 %v2931
    %3276 = vmatpush.bf16.msra.mxu0 %v2924
    %3277 = vmatpush.bf16.msra.mxu0 %v2917
    %3278 = vmatpush.bf16.msra.mxu0 %v2910
    %3279 = vmatpush.bf16.msra.mxu0 %v2903
    %3280 = vmatmul.bf16.gmra.mxu0 %v2021
    %v3281 = vpop.f32.mrf.mxu0
    %v3282 = vadd.f32 %v3269, %v3281
    %v3283 = vpop.f32.mrf.mxu0
    %3284 = vdwg.mxu0
    %3285 = vmatpush.bf16.msra.mxu0 0
    %3286 = vmatpush.bf16.msra.mxu0 0
    %3287 = vmatpush.bf16.msra.mxu0 0
    %3288 = vmatpush.bf16.msra.mxu0 0
    %3289 = vmatpush.bf16.msra.mxu0 0
    %3290 = vmatpush.bf16.msra.mxu0 0
    %3291 = vmatpush.bf16.msra.mxu0 0
    %3292 = vmatpush.bf16.msra.mxu0 %v2959
    %3293 = vmatmul.bf16.gmra.mxu0 %v3140
    %v3294 = vpop.f32.mrf.mxu0
    %v3295 = vadd.f32 %v3282, %v3294
    %v3296 = vpop.f32.mrf.mxu0
    %3297 = vdwg.mxu0
    %3298 = vmatpush.bf16.msra.mxu0 %v2841
    %3299 = vmatpush.bf16.msra.mxu0 %v2834
    %3300 = vmatpush.bf16.msra.mxu0 %v2827
    %3301 = vmatpush.bf16.msra.mxu0 %v2820
    %3302 = vmatpush.bf16.msra.mxu0 %v2813
    %3303 = vmatpush.bf16.msra.mxu0 %v2806
    %3304 = vmatpush.bf16.msra.mxu0 %v2799
    %3305 = vmatpush.bf16.msra.mxu0 %v2792
    %3306 = vmatmul.bf16.gmra.mxu0 %v2019
    %v3307 = vpop.f32.mrf.mxu0
    %v3308 = vadd.f32 %v2228, %v3307
    %v3309 = vpop.f32.mrf.mxu0
    %3310 = vdwg.mxu0
    %3311 = vmatpush.bf16.msra.mxu0 %v2897
    %3312 = vmatpush.bf16.msra.mxu0 %v2890
    %3313 = vmatpush.bf16.msra.mxu0 %v2883
    %3314 = vmatpush.bf16.msra.mxu0 %v2876
    %3315 = vmatpush.bf16.msra.mxu0 %v2869
    %3316 = vmatpush.bf16.msra.mxu0 %v2862
    %3317 = vmatpush.bf16.msra.mxu0 %v2855
    %3318 = vmatpush.bf16.msra.mxu0 %v2848
    %3319 = vmatmul.bf16.gmra.mxu0 %v2020
    %v3320 = vpop.f32.mrf.mxu0
    %v3321 = vadd.f32 %v3308, %v3320
    %v3322 = vpop.f32.mrf.mxu0
    %3323 = vdwg.mxu0
    %3324 = vmatpush.bf16.msra.mxu0 %v2953
    %3325 = vmatpush.bf16.msra.mxu0 %v2946
    %3326 = vmatpush.bf16.msra.mxu0 %v2939
    %3327 = vmatpush.bf16.msra.mxu0 %v2932
    %3328 = vmatpush.bf16.msra.mxu0 %v2925
    %3329 = vmatpush.bf16.msra.mxu0 %v2918
    %3330 = vmatpush.bf16.msra.mxu0 %v2911
    %3331 = vmatpush.bf16.msra.mxu0 %v2904
    %3332 = vmatmul.bf16.gmra.mxu0 %v2021
    %v3333 = vpop.f32.mrf.mxu0
    %v3334 = vadd.f32 %v3321, %v3333
    %v3335 = vpop.f32.mrf.mxu0
    %3336 = vdwg.mxu0
    %3337 = vmatpush.bf16.msra.mxu0 0
    %3338 = vmatpush.bf16.msra.mxu0 0
    %3339 = vmatpush.bf16.msra.mxu0 0
    %3340 = vmatpush.bf16.msra.mxu0 0
    %3341 = vmatpush.bf16.msra.mxu0 0
    %3342 = vmatpush.bf16.msra.mxu0 0
    %3343 = vmatpush.bf16.msra.mxu0 0
    %3344 = vmatpush.bf16.msra.mxu0 %v2960
    %3345 = vmatmul.bf16.gmra.mxu0 %v3140
    %v3346 = vpop.f32.mrf.mxu0
    %v3347 = vadd.f32 %v3334, %v3346
    %v3348 = vpop.f32.mrf.mxu0
    %3349 = vdwg.mxu0
    %3350 = vmatpush.bf16.msra.mxu0 %v2842
    %3351 = vmatpush.bf16.msra.mxu0 %v2835
    %3352 = vmatpush.bf16.msra.mxu0 %v2828
    %3353 = vmatpush.bf16.msra.mxu0 %v2821
    %3354 = vmatpush.bf16.msra.mxu0 %v2814
    %3355 = vmatpush.bf16.msra.mxu0 %v2807
    %3356 = vmatpush.bf16.msra.mxu0 %v2800
    %3357 = vmatpush.bf16.msra.mxu0 %v2793
    %3358 = vmatmul.bf16.gmra.mxu0 %v2019
    %v3359 = vpop.f32.mrf.mxu0
    %v3360 = vadd.f32 %v2229, %v3359
    %v3361 = vpop.f32.mrf.mxu0
    %3362 = vdwg.mxu0
    %3363 = vmatpush.bf16.msra.mxu0 %v2898
    %3364 = vmatpush.bf16.msra.mxu0 %v2891
    %3365 = vmatpush.bf16.msra.mxu0 %v2884
    %3366 = vmatpush.bf16.msra.mxu0 %v2877
    %3367 = vmatpush.bf16.msra.mxu0 %v2870
    %3368 = vmatpush.bf16.msra.mxu0 %v2863
    %3369 = vmatpush.bf16.msra.mxu0 %v2856
    %3370 = vmatpush.bf16.msra.mxu0 %v2849
    %3371 = vmatmul.bf16.gmra.mxu0 %v2020
    %v3372 = vpop.f32.mrf.mxu0
    %v3373 = vadd.f32 %v3360, %v3372
    %v3374 = vpop.f32.mrf.mxu0
    %3375 = vdwg.mxu0
    %3376 = vmatpush.bf16.msra.mxu0 %v2954
    %3377 = vmatpush.bf16.msra.mxu0 %v2947
    %3378 = vmatpush.bf16.msra.mxu0 %v2940
    %3379 = vmatpush.bf16.msra.mxu0 %v2933
    %3380 = vmatpush.bf16.msra.mxu0 %v2926
    %3381 = vmatpush.bf16.msra.mxu0 %v2919
    %3382 = vmatpush.bf16.msra.mxu0 %v2912
    %3383 = vmatpush.bf16.msra.mxu0 %v2905
    %3384 = vmatmul.bf16.gmra.mxu0 %v2021
    %v3385 = vpop.f32.mrf.mxu0
    %v3386 = vadd.f32 %v3373, %v3385
    %v3387 = vpop.f32.mrf.mxu0
    %3388 = vdwg.mxu0
    %3389 = vmatpush.bf16.msra.mxu0 0
    %3390 = vmatpush.bf16.msra.mxu0 0
    %3391 = vmatpush.bf16.msra.mxu0 0
    %3392 = vmatpush.bf16.msra.mxu0 0
    %3393 = vmatpush.bf16.msra.mxu0 0
    %3394 = vmatpush.bf16.msra.mxu0 0
    %3395 = vmatpush.bf16.msra.mxu0 0
    %3396 = vmatpush.bf16.msra.mxu0 %v2961
    %3397 = vmatmul.bf16.gmra.mxu0 %v3140
    %v3398 = vpop.f32.mrf.mxu0
    %v3399 = vadd.f32 %v3386, %v3398
    %v3400 = vpop.f32.mrf.mxu0
    %3401 = vdwg.mxu0
    %3402 = vmatpush.bf16.msra.mxu0 %v2843
    %3403 = vmatpush.bf16.msra.mxu0 %v2836
    %3404 = vmatpush.bf16.msra.mxu0 %v2829
    %3405 = vmatpush.bf16.msra.mxu0 %v2822
    %3406 = vmatpush.bf16.msra.mxu0 %v2815
    %3407 = vmatpush.bf16.msra.mxu0 %v2808
    %3408 = vmatpush.bf16.msra.mxu0 %v2801
    %3409 = vmatpush.bf16.msra.mxu0 %v2794
    %3410 = vmatmul.bf16.gmra.mxu0 %v2019
    %v3411 = vpop.f32.mrf.mxu0
    %v3412 = vadd.f32 %v2230, %v3411
    %v3413 = vpop.f32.mrf.mxu0
    %3414 = vdwg.mxu0
    %3415 = vmatpush.bf16.msra.mxu0 %v2899
    %3416 = vmatpush.bf16.msra.mxu0 %v2892
    %3417 = vmatpush.bf16.msra.mxu0 %v2885
    %3418 = vmatpush.bf16.msra.mxu0 %v2878
    %3419 = vmatpush.bf16.msra.mxu0 %v2871
    %3420 = vmatpush.bf16.msra.mxu0 %v2864
    %3421 = vmatpush.bf16.msra.mxu0 %v2857
    %3422 = vmatpush.bf16.msra.mxu0 %v2850
    %3423 = vmatmul.bf16.gmra.mxu0 %v2020
    %v3424 = vpop.f32.mrf.mxu0
    %v3425 = vadd.f32 %v3412, %v3424
    %v3426 = vpop.f32.mrf.mxu0
    %3427 = vdwg.mxu0
    %3428 = vmatpush.bf16.msra.mxu0 %v2955
    %3429 = vmatpush.bf16.msra.mxu0 %v2948
    %3430 = vmatpush.bf16.msra.mxu0 %v2941
    %3431 = vmatpush.bf16.msra.mxu0 %v2934
    %3432 = vmatpush.bf16.msra.mxu0 %v2927
    %3433 = vmatpush.bf16.msra.mxu0 %v2920
    %3434 = vmatpush.bf16.msra.mxu0 %v2913
    %3435 = vmatpush.bf16.msra.mxu0 %v2906
    %3436 = vmatmul.bf16.gmra.mxu0 %v2021
    %v3437 = vpop.f32.mrf.mxu0
    %v3438 = vadd.f32 %v3425, %v3437
    %v3439 = vpop.f32.mrf.mxu0
    %3440 = vdwg.mxu0
    %3441 = vmatpush.bf16.msra.mxu0 0
    %3442 = vmatpush.bf16.msra.mxu0 0
    %3443 = vmatpush.bf16.msra.mxu0 0
    %3444 = vmatpush.bf16.msra.mxu0 0
    %3445 = vmatpush.bf16.msra.mxu0 0
    %3446 = vmatpush.bf16.msra.mxu0 0
    %3447 = vmatpush.bf16.msra.mxu0 0
    %3448 = vmatpush.bf16.msra.mxu0 %v2962
    %3449 = vmatmul.bf16.gmra.mxu0 %v3140
    %v3450 = vpop.f32.mrf.mxu0
    %v3451 = vadd.f32 %v3438, %v3450
    %v3452 = vpop.f32.mrf.mxu0
    %3453 = vdwg.mxu0
    %3454 = vmatpush.bf16.msra.mxu0 %v2844
    %3455 = vmatpush.bf16.msra.mxu0 %v2837
    %3456 = vmatpush.bf16.msra.mxu0 %v2830
    %3457 = vmatpush.bf16.msra.mxu0 %v2823
    %3458 = vmatpush.bf16.msra.mxu0 %v2816
    %3459 = vmatpush.bf16.msra.mxu0 %v2809
    %3460 = vmatpush.bf16.msra.mxu0 %v2802
    %3461 = vmatpush.bf16.msra.mxu0 %v2795
    %3462 = vmatmul.bf16.gmra.mxu0 %v2019
    %v3463 = vpop.f32.mrf.mxu0
    %v3464 = vadd.f32 %v2231, %v3463
    %v3465 = vpop.f32.mrf.mxu0
    %3466 = vdwg.mxu0
    %3467 = vmatpush.bf16.msra.mxu0 %v2900
    %3468 = vmatpush.bf16.msra.mxu0 %v2893
    %3469 = vmatpush.bf16.msra.mxu0 %v2886
    %3470 = vmatpush.bf16.msra.mxu0 %v2879
    %3471 = vmatpush.bf16.msra.mxu0 %v2872
    %3472 = vmatpush.bf16.msra.mxu0 %v2865
    %3473 = vmatpush.bf16.msra.mxu0 %v2858
    %3474 = vmatpush.bf16.msra.mxu0 %v2851
    %3475 = vmatmul.bf16.gmra.mxu0 %v2020
    %v3476 = vpop.f32.mrf.mxu0
    %v3477 = vadd.f32 %v3464, %v3476
    %v3478 = vpop.f32.mrf.mxu0
    %3479 = vdwg.mxu0
    %3480 = vmatpush.bf16.msra.mxu0 %v2956
    %3481 = vmatpush.bf16.msra.mxu0 %v2949
    %3482 = vmatpush.bf16.msra.mxu0 %v2942
    %3483 = vmatpush.bf16.msra.mxu0 %v2935
    %3484 = vmatpush.bf16.msra.mxu0 %v2928
    %3485 = vmatpush.bf16.msra.mxu0 %v2921
    %3486 = vmatpush.bf16.msra.mxu0 %v2914
    %3487 = vmatpush.bf16.msra.mxu0 %v2907
    %3488 = vmatmul.bf16.gmra.mxu0 %v2021
    %v3489 = vpop.f32.mrf.mxu0
    %v3490 = vadd.f32 %v3477, %v3489
    %v3491 = vpop.f32.mrf.mxu0
    %3492 = vdwg.mxu0
    %3493 = vmatpush.bf16.msra.mxu0 0
    %3494 = vmatpush.bf16.msra.mxu0 0
    %3495 = vmatpush.bf16.msra.mxu0 0
    %3496 = vmatpush.bf16.msra.mxu0 0
    %3497 = vmatpush.bf16.msra.mxu0 0
    %3498 = vmatpush.bf16.msra.mxu0 0
    %3499 = vmatpush.bf16.msra.mxu0 0
    %3500 = vmatpush.bf16.msra.mxu0 %v2963
    %3501 = vmatmul.bf16.gmra.mxu0 %v3140
    %v3502 = vpop.f32.mrf.mxu0
    %v3503 = vadd.f32 %v3490, %v3502
    %v3504 = vpop.f32.mrf.mxu0
    %3505 = vdwg.mxu0
    %v3506 = vxor.u32 %v3191, 2147483648
    %v3507 = vxor.u32 %v3243, 2147483648
    %v3508 = vxor.u32 %v3295, 2147483648
    %v3509 = vxor.u32 %v3347, 2147483648
    %v3510 = vxor.u32 %v3399, 2147483648
    %v3511 = vxor.u32 %v3451, 2147483648
    %v3512 = vxor.u32 %v3503, 2147483648
    %v3513 = vmul.f32 %v3506, 1.442695
    %v3514 = vpow.pop %v3513
    %v3515 = vmul.f32 %v3507, 1.442695
    %v3516 = vpow.pop %v3515
    %v3517 = vmul.f32 %v3508, 1.442695
    %v3518 = vpow.pop %v3517
    %v3519 = vmul.f32 %v3509, 1.442695
    %v3520 = vpow.pop %v3519
    %v3521 = vmul.f32 %v3510, 1.442695
    %v3522 = vpow.pop %v3521
    %v3523 = vmul.f32 %v3511, 1.442695
    %v3524 = vpow.pop %v3523
    %v3525 = vmul.f32 %v3512, 1.442695
    %v3526 = vpow.pop %v3525
    %v3527 = vadd.f32 %v3514, 1.0
    %v3528 = vadd.f32 %v3516, 1.0
    %v3529 = vadd.f32 %v3518, 1.0
    %v3530 = vadd.f32 %v3520, 1.0
    %v3531 = vadd.f32 %v3522, 1.0
    %v3532 = vadd.f32 %v3524, 1.0
    %v3533 = vadd.f32 %v3526, 1.0
    %v3534 = vrcp.pop %v3527
    %v3535 = vmul.f32 %v3527, %v3534
    %v3536 = vsub.f32 1.0, %v3535
    %v3537 = vmul.f32 %v3534, %v3536
    %v3538 = vadd.f32 %v3534, %v3537
    %vm3539 = vweird.f32 %v3527
    %vm3540 = vweird.f32 %v3534
    %vm3541 = vmor %vm3539, %vm3540
    %v3542 = vsel %vm3541, %v3534, %v3538
    %v3543 = vand.u32 2147483647, %v3527
    %vm3544 = vcmp.eq.f32.partialorder %v3543, 8.507059e+37
    %v3545 = vand.u32 %v3527, 2147483648
    %v3546 = vor.u32 1.1754944e-38, %v3545
    %v3547 = vsel %vm3544, %v3546, %v3542
    %v3548 = vmul.f32 1.0, %v3547
    %v3549 = vrcp.pop %v3528
    %v3550 = vmul.f32 %v3528, %v3549
    %v3551 = vsub.f32 1.0, %v3550
    %v3552 = vmul.f32 %v3549, %v3551
    %v3553 = vadd.f32 %v3549, %v3552
    %vm3554 = vweird.f32 %v3528
    %vm3555 = vweird.f32 %v3549
    %vm3556 = vmor %vm3554, %vm3555
    %v3557 = vsel %vm3556, %v3549, %v3553
    %v3558 = vand.u32 2147483647, %v3528
    %vm3559 = vcmp.eq.f32.partialorder %v3558, 8.507059e+37
    %v3560 = vand.u32 %v3528, 2147483648
    %v3561 = vor.u32 1.1754944e-38, %v3560
    %v3562 = vsel %vm3559, %v3561, %v3557
    %v3563 = vmul.f32 1.0, %v3562
    %v3564 = vrcp.pop %v3529
    %v3565 = vmul.f32 %v3529, %v3564
    %v3566 = vsub.f32 1.0, %v3565
    %v3567 = vmul.f32 %v3564, %v3566
    %v3568 = vadd.f32 %v3564, %v3567
    %vm3569 = vweird.f32 %v3529
    %vm3570 = vweird.f32 %v3564
    %vm3571 = vmor %vm3569, %vm3570
    %v3572 = vsel %vm3571, %v3564, %v3568
    %v3573 = vand.u32 2147483647, %v3529
    %vm3574 = vcmp.eq.f32.partialorder %v3573, 8.507059e+37
    %v3575 = vand.u32 %v3529, 2147483648
    %v3576 = vor.u32 1.1754944e-38, %v3575
    %v3577 = vsel %vm3574, %v3576, %v3572
    %v3578 = vmul.f32 1.0, %v3577
    %v3579 = vrcp.pop %v3530
    %v3580 = vmul.f32 %v3530, %v3579
    %v3581 = vsub.f32 1.0, %v3580
    %v3582 = vmul.f32 %v3579, %v3581
    %v3583 = vadd.f32 %v3579, %v3582
    %vm3584 = vweird.f32 %v3530
    %vm3585 = vweird.f32 %v3579
    %vm3586 = vmor %vm3584, %vm3585
    %v3587 = vsel %vm3586, %v3579, %v3583
    %v3588 = vand.u32 2147483647, %v3530
    %vm3589 = vcmp.eq.f32.partialorder %v3588, 8.507059e+37
    %v3590 = vand.u32 %v3530, 2147483648
    %v3591 = vor.u32 1.1754944e-38, %v3590
    %v3592 = vsel %vm3589, %v3591, %v3587
    %v3593 = vmul.f32 1.0, %v3592
    %v3594 = vrcp.pop %v3531
    %v3595 = vmul.f32 %v3531, %v3594
    %v3596 = vsub.f32 1.0, %v3595
    %v3597 = vmul.f32 %v3594, %v3596
    %v3598 = vadd.f32 %v3594, %v3597
    %vm3599 = vweird.f32 %v3531
    %vm3600 = vweird.f32 %v3594
    %vm3601 = vmor %vm3599, %vm3600
    %v3602 = vsel %vm3601, %v3594, %v3598
    %v3603 = vand.u32 2147483647, %v3531
    %vm3604 = vcmp.eq.f32.partialorder %v3603, 8.507059e+37
    %v3605 = vand.u32 %v3531, 2147483648
    %v3606 = vor.u32 1.1754944e-38, %v3605
    %v3607 = vsel %vm3604, %v3606, %v3602
    %v3608 = vmul.f32 1.0, %v3607
    %v3609 = vrcp.pop %v3532
    %v3610 = vmul.f32 %v3532, %v3609
    %v3611 = vsub.f32 1.0, %v3610
    %v3612 = vmul.f32 %v3609, %v3611
    %v3613 = vadd.f32 %v3609, %v3612
    %vm3614 = vweird.f32 %v3532
    %vm3615 = vweird.f32 %v3609
    %vm3616 = vmor %vm3614, %vm3615
    %v3617 = vsel %vm3616, %v3609, %v3613
    %v3618 = vand.u32 2147483647, %v3532
    %vm3619 = vcmp.eq.f32.partialorder %v3618, 8.507059e+37
    %v3620 = vand.u32 %v3532, 2147483648
    %v3621 = vor.u32 1.1754944e-38, %v3620
    %v3622 = vsel %vm3619, %v3621, %v3617
    %v3623 = vmul.f32 1.0, %v3622
    %v3624 = vrcp.pop %v3533
    %v3625 = vmul.f32 %v3533, %v3624
    %v3626 = vsub.f32 1.0, %v3625
    %v3627 = vmul.f32 %v3624, %v3626
    %v3628 = vadd.f32 %v3624, %v3627
    %vm3629 = vweird.f32 %v3533
    %vm3630 = vweird.f32 %v3624
    %vm3631 = vmor %vm3629, %vm3630
    %v3632 = vsel %vm3631, %v3624, %v3628
    %v3633 = vand.u32 2147483647, %v3533
    %vm3634 = vcmp.eq.f32.partialorder %v3633, 8.507059e+37
    %v3635 = vand.u32 %v3533, 2147483648
    %v3636 = vor.u32 1.1754944e-38, %v3635
    %v3637 = vsel %vm3634, %v3636, %v3632
    %v3638 = vmul.f32 1.0, %v3637
    %3639 = vst [vmem:[#allocation2] sm:$0xff] %v3548
    %3640 = vst [vmem:[#allocation2 + $0x8] sm:$0xff] %v3563
    %3641 = vst [vmem:[#allocation2 + $0x10] sm:$0xff] %v3578
    %3642 = vst [vmem:[#allocation2 + $0x18] sm:$0xff] %v3593
    %3643 = vst [vmem:[#allocation2 + $0x20] sm:$0xff] %v3608
    %3644 = vst [vmem:[#allocation2 + $0x28] sm:$0xff] %v3623
    %3645 = vst.msk [vmem:[#allocation2 + $0x30] sm:$0xff] %vm1254, %v3638
    %vm3646 = vcmask 326656
    %3647 = vst.msk [vmem:[#allocation4] sm:$0xff] %vm3646, %v1886
    // Predicated region
    $region42: #{tpu_custom_call.1} parent=1 // pred_check
      _
    $region43: #{tpu_custom_call.1} parent=1 // pred_check_branch
      %3649 = sbr.rel (0) target = $region45
    $region44: #{tpu_custom_call.1} parent=1 // pred_region
      %3651 = vsyncadd [#allocation3], 0
      %s3653 = sshll.u32 [#allocation2], 4
      %s3654 = int_to_ptr.vmem [resolvable:$true] %s3653
      %s3655 = sshll.u32 %s10, 4
      %s3656 = int_to_ptr.hbm [resolvable:$true] %s3655
      %3658 = dma.vmem_to_hbm [thread:$0]  %s3654, 896, %s3656, [#allocation3]
    $region45: #{tpu_custom_call.1} parent=1 // pred_fallthru
      _
    // Predicated region
    $region46: #{tpu_custom_call.1} parent=1 // pred_check
      _
    $region47: #{tpu_custom_call.1} parent=1 // pred_check_branch
      %3660 = sbr.rel (0) target = $region49
    $region48: #{tpu_custom_call.1} parent=1 // pred_region
      %3662 = vsyncadd [#allocation5], 0
      %s3664 = sshll.u32 [#allocation4], 4
      %s3665 = int_to_ptr.vmem [resolvable:$true] %s3664
      %s3666 = sshll.u32 %s11, 4
      %s3667 = int_to_ptr.hbm [resolvable:$true] %s3666
      %3669 = dma.vmem_to_hbm [thread:$0]  %s3665, 128, %s3667, [#allocation5]
    $region49: #{tpu_custom_call.1} parent=1 // pred_fallthru
      _
    // Predicated region
    $region50: #{tpu_custom_call.1} parent=1 // pred_check
      _
    $region51: #{tpu_custom_call.1} parent=1 // pred_check_branch
      %3671 = sbr.rel (0) target = $region53
    $region52: #{tpu_custom_call.1} parent=1 // pred_region
      %3673 = dma.done [#allocation3], 896
    $region53: #{tpu_custom_call.1} parent=1 // pred_fallthru
      _
    // Predicated region
    $region54: #{tpu_custom_call.1} parent=1 // pred_check
      _
    $region55: #{tpu_custom_call.1} parent=1 // pred_check_branch
      %3675 = sbr.rel (0) target = $region57
    $region56: #{tpu_custom_call.1} parent=1 // pred_region
      %3677 = dma.done [#allocation5], 128
    $region57: #{tpu_custom_call.1} parent=1 // pred_fallthru
      _
    %3678 = vsyncpa [#allocation3], 1
    %3679 = vsyncpa [#allocation5], 1

</llo_original>
